<compile_context>
chip_gen: v5e
topology: v5e:2x2
jax: 0.10.0
libtpu: 0.0.40
codegen_flags: <defaults>
</compile_context>

<pallas_src>
import functools
import math

import jax
import jax.numpy as jnp
from jax import lax
from jax.experimental import pallas as pl
from jax.experimental.pallas import tpu as pltpu


# ----------------------------------------------------------------------------
# In-kernel helpers
# ----------------------------------------------------------------------------
def _eye(n, dtype=jnp.float32):
    r = lax.broadcasted_iota(jnp.int32, (n, n), 0)
    c = lax.broadcasted_iota(jnp.int32, (n, n), 1)
    return (r == c).astype(dtype)


def _gen_normalize(a):
    # TODO(synk): gen_normalize / normalize are not defined in the reference
    # code; using standard GCN symmetric normalization D^-1/2 (A + I) D^-1/2,
    # implemented as elementwise row/column scaling (no MXU matmuls).
    n = a.shape[0]
    eye = _eye(n)
    a_hat = a + eye
    d_inv = lax.rsqrt(jnp.maximum(jnp.sum(a_hat, axis=1, keepdims=True), 1e-12))
    # (n,1) -> (1,n) without a transpose: diag-place then sublane-reduce.
    d_inv_row = jnp.sum(eye * d_inv, axis=0, keepdims=True)
    return a_hat * d_inv * d_inv_row


def _cos_sim(x):
    # Pairwise cosine similarity of rows of x (matches F.cosine_similarity eps).
    nrm = jnp.maximum(jnp.sqrt(jnp.sum(x * x, axis=-1, keepdims=True)), 1e-8)
    xh = x / nrm
    return lax.dot_general(xh, xh, (((1,), (1,)), ((), ())),
                           preferred_element_type=jnp.float32)


def _bf16_dot(a, w_bf16):
    # bf16 MXU inputs (weights are pre-stored bf16), f32 accumulation.
    return jnp.dot(a.astype(jnp.bfloat16), w_bf16,
                   preferred_element_type=jnp.float32)


# ----------------------------------------------------------------------------
# Kernel 1: fused ImgNN + TextNN MLP, gridded over the hidden dim.
#   x_cat:  (2B, d_img+d_txt) block-diagonal input
#   w1_cat: (d_img+d_txt, hidden) bf16
#   w2:     (2, hidden, d_min)    bf16  (per-modality layer-2 weights)
#   b/g/be: (2, hidden) / (2, d_min) f32 (per-modality bias / BN affine)
# ----------------------------------------------------------------------------
def _modality_kernel(x_ref, w1_ref, b1_ref, g1_ref, be1_ref,
                     w2_ref, b2_ref, g2_ref, be2_ref, o_ref, acc_ref):
    k = pl.program_id(0)
    half = o_ref.shape[0] // 2

    @pl.when(k == 0)
    def _():
        acc_ref[...] = jnp.zeros_like(acc_ref)

    def bn_tanh(h, b, g, be):
        # Linear bias + BatchNorm1d (training-mode batch stats, eps=1e-5) + Tanh
        h = h + b
        mean = jnp.mean(h, axis=0, keepdims=True)
        var = jnp.mean(jnp.square(h - mean), axis=0, keepdims=True)
        return jnp.tanh(g * (h - mean) * lax.rsqrt(var + 1e-5) + be)

    # Layer 1: one fused matmul over both modalities (block-diagonal input).
    x = x_ref[...].astype(jnp.bfloat16)                       # (2B, Din)
    h = jnp.dot(x, w1_ref[...], preferred_element_type=jnp.float32)   # (2B, tk)

    h_img = bn_tanh(h[:half], b1_ref[0:1, :], g1_ref[0:1, :], be1_ref[0:1, :])
    h_txt = bn_tanh(h[half:], b1_ref[1:2, :], g1_ref[1:2, :], be1_ref[1:2, :])

    # Layer 2: accumulate partial products over hidden tiles (f32 scratch).
    acc_ref[:half, :] += jnp.dot(h_img.astype(jnp.bfloat16), w2_ref[0],
                                 preferred_element_type=jnp.float32)
    acc_ref[half:, :] += jnp.dot(h_txt.astype(jnp.bfloat16), w2_ref[1],
                                 preferred_element_type=jnp.float32)

    @pl.when(k == pl.num_programs(0) - 1)
    def _():
        z = acc_ref[...]
        o_ref[:half, :] = bn_tanh(z[:half], b2_ref[0:1, :],
                                  g2_ref[0:1, :], be2_ref[0:1, :])
        o_ref[half:, :] = bn_tanh(z[half:], b2_ref[1:2, :],
                                  g2_ref[1:2, :], be2_ref[1:2, :])


def modality_forward(p, feature_img, feature_text, *, tk=512):
    B, d_img = feature_img.shape
    d_txt = feature_text.shape[1]
    din = d_img + d_txt
    hidden = p["mod_w1"].shape[1]
    d_min = p["mod_w2"].shape[2]
    tk = min(tk, hidden)
    assert hidden % tk == 0

    # Block-diagonal stacked input: rows [0:B] = img features, [B:2B] = text.
    x_img = jnp.pad(feature_img, ((0, 0), (0, d_txt)))
    x_txt = jnp.pad(feature_text, ((0, 0), (d_img, 0)))
    x_cat = jnp.concatenate([x_img, x_txt], axis=0)           # (2B, Din)

    in_specs = [
        pl.BlockSpec((2 * B, din), lambda k: (0, 0)),          # x_cat (resident)
        pl.BlockSpec((din, tk), lambda k: (0, k)),             # W1 column tile
        pl.BlockSpec((2, tk), lambda k: (0, k)),               # b1
        pl.BlockSpec((2, tk), lambda k: (0, k)),               # g1
        pl.BlockSpec((2, tk), lambda k: (0, k)),               # be1
        pl.BlockSpec((2, tk, d_min), lambda k: (0, k, 0)),     # W2 row tile
        pl.BlockSpec((2, d_min), lambda k: (0, 0)),            # b2
        pl.BlockSpec((2, d_min), lambda k: (0, 0)),            # g2
        pl.BlockSpec((2, d_min), lambda k: (0, 0)),            # be2
    ]
    return pl.pallas_call(
        _modality_kernel,
        out_shape=jax.ShapeDtypeStruct((2 * B, d_min), jnp.float32),
        grid=(hidden // tk,),
        in_specs=in_specs,
        out_specs=pl.BlockSpec((2 * B, d_min), lambda k: (0, 0)),
        scratch_shapes=[pltpu.VMEM((2 * B, d_min), jnp.float32)],
        compiler_params=pltpu.CompilerParams(
            dimension_semantics=("arbitrary",),
            vmem_limit_bytes=48 * 1024 * 1024),
    )(x_cat, p["mod_w1"], p["mod_b1"], p["mod_g1"], p["mod_be1"],
      p["mod_w2"], p["mod_b2"], p["mod_g2"], p["mod_be2"])


# ----------------------------------------------------------------------------
# Kernel 2: fused label-graph branch + adjacency fusion + simple GCNs + hash
# heads (gridless, fully VMEM resident). eta / lam are compile-time constants.
# ----------------------------------------------------------------------------
def _graph_kernel(inp_ref, wadj1_ref, wadj2_ref, gc1l_ref, gc2l_ref,
                  cls1w_ref, cls1b_ref, cls2w_ref, cls2b_ref,
                  hlw_ref, hlb_ref, wm_ref, y_ref,
                  vcat_ref, adjse_ref, fcsew_ref, fcseb_ref,
                  fcfew_ref, fcfeb_ref, gc1s_ref, gc2s_ref,
                  hiw_ref, hib_ref, htw_ref, htb_ref,
                  label2_ref, m_label_ref, lp1_ref, lp2_ref,
                  imgs_ref, texts_ref, adjsf_ref, adjfs_ref,
                  *, eta, lam):
    # ---------------- label graph branch ----------------
    inp = inp_ref[...]                                        # (n_cls, in_ch)
    adj_l = _cos_sim(inp)
    # TODO(synk): set_to_zero is not defined in the reference; assumed:
    # zero entries below the threshold (0.4 hardcoded, matching the PyTorch
    # forward which uses 0.4 for the label adjacency and eta for features).
    adj_l = jnp.where(adj_l < 0.4, 0.0, adj_l)

    a1 = _gen_normalize(adj_l * wadj1_ref[...])
    a2 = _gen_normalize(adj_l * wadj2_ref[...])

    # GraphConvolution (dropout=0, no bias): adj @ (x @ W), f32.
    label1 = jnp.dot(a1, jnp.dot(inp, gc1l_ref[...],
                                 preferred_element_type=jnp.float32),
                     preferred_element_type=jnp.float32)
    label2 = jnp.dot(a2, jnp.dot(label1, gc2l_ref[...],
                                 preferred_element_type=jnp.float32),
                     preferred_element_type=jnp.float32)

    def classifier(h):
        z = jnp.maximum(
            jnp.dot(h, cls1w_ref[...], preferred_element_type=jnp.float32)
            + cls1b_ref[...], 0.0)
        return (jnp.dot(z, cls2w_ref[...], preferred_element_type=jnp.float32)
                + cls2b_ref[...])

    lp1_ref[...] = classifier(label1)
    lp2_ref[...] = classifier(label2)

    # hash_label: Linear -> Tanh
    l2h = jnp.tanh(jnp.dot(label2, hlw_ref[...],
                           preferred_element_type=jnp.float32) + hlb_ref[...])
    label2_ref[...] = l2h
    # m_label = tanh(y @ (label2 * weight_m))
    m_label_ref[...] = jnp.tanh(
        jnp.dot(y_ref[...], l2h * wm_ref[...],
                preferred_element_type=jnp.float32))

    # ---------------- adjacency fusion + simple GCNs + hash ----------------
    vcat = vcat_ref[...]                                      # (2B, d_min)
    half = vcat.shape[0] // 2

    adj_fe = _cos_sim(vcat)            # block matrix [[fe11, fe12],[fe12.T, fe22]]
    adj_fe = jnp.where(adj_fe < eta, 0.0, adj_fe)             # set_to_zero(., eta)

    adj_se = adjse_ref[...]                                   # (2B, 2B) tiled
    adj_se_w = (jnp.dot(adj_se, fcsew_ref[...],
                        preferred_element_type=jnp.float32) + fcseb_ref[...])
    adj_fe_w = (jnp.dot(adj_fe, fcfew_ref[...],
                        preferred_element_type=jnp.float32) + fcfeb_ref[...])
    adj_sf = adj_se + adj_fe_w
    adj_fs = adj_fe + adj_se_w
    adjsf_ref[...] = adj_sf
    adjfs_ref[...] = adj_fs

    adj_a = _gen_normalize(lam * adj_sf + (1.0 - lam) * adj_fs)  # normalize(adj_a, 2B)

    # simple GCNs + ReLU (bf16 weight matmuls, adjacency side kept f32).
    x = jnp.maximum(jnp.dot(adj_a, _bf16_dot(vcat, gc1s_ref[...]),
                            preferred_element_type=jnp.float32), 0.0)
    x = jnp.maximum(jnp.dot(adj_a, _bf16_dot(x, gc2s_ref[...]),
                            preferred_element_type=jnp.float32), 0.0)

    imgs_ref[...] = jnp.tanh(_bf16_dot(x[:half], hiw_ref[...]) + hib_ref[...])
    texts_ref[...] = jnp.tanh(_bf16_dot(x[half:], htw_ref[...]) + htb_ref[...])


def graph_label_hash(p, vcat, adj_se_full, y_f, *, eta, lam):
    n_cls = p["inp"].shape[0]
    hash_dim = p["hash_label_w"].shape[1]
    B = y_f.shape[0]
    n2 = vcat.shape[0]
    vspec = pl.BlockSpec(memory_space=pltpu.MemorySpace.VMEM)
    ins = (p["inp"], p["w_adj1"], p["w_adj2"],
           p["gc1_label_w"], p["gc2_label_w"],
           p["cls_l1_w"], p["cls_l1_b"].reshape(1, -1),
           p["cls_l2_w"], p["cls_l2_b"].reshape(1, -1),
           p["hash_label_w"], p["hash_label_b"].reshape(1, -1),
           p["weight_m"], y_f,
           vcat, adj_se_full,
           p["fc_se_w"], p["fc_se_b"].reshape(1, -1),
           p["fc_fe_w"], p["fc_fe_b"].reshape(1, -1),
           p["gc1_simple_w"], p["gc2_simple_w"],
           p["hash_img_w"], p["hash_img_b"].reshape(1, -1),
           p["hash_txt_w"], p["hash_txt_b"].reshape(1, -1))
    kernel = functools.partial(_graph_kernel, eta=float(eta), lam=float(lam))
    return pl.pallas_call(
        kernel,
        out_shape=(jax.ShapeDtypeStruct((n_cls, hash_dim), jnp.float32),  # label2
                   jax.ShapeDtypeStruct((B, hash_dim), jnp.float32),      # m_label
                   jax.ShapeDtypeStruct((n_cls, n_cls), jnp.float32),     # lp1
                   jax.ShapeDtypeStruct((n_cls, n_cls), jnp.float32),     # lp2
                   jax.ShapeDtypeStruct((B, hash_dim), jnp.float32),      # imgs
                   jax.ShapeDtypeStruct((B, hash_dim), jnp.float32),      # texts
                   jax.ShapeDtypeStruct((n2, n2), jnp.float32),           # adj_sf
                   jax.ShapeDtypeStruct((n2, n2), jnp.float32)),          # adj_fs
        in_specs=[vspec] * len(ins),
        out_specs=(vspec,) * 8,
        compiler_params=pltpu.CompilerParams(
            vmem_limit_bytes=48 * 1024 * 1024),
    )(*ins)


# ----------------------------------------------------------------------------
# Plain-jnp tail helpers (tiny scalar losses, per review)
# ----------------------------------------------------------------------------
def soft_cross_entropy(logits, target):
    # nn.CrossEntropyLoss with class-probability targets.
    logp = jax.nn.log_softmax(logits, axis=-1)
    return -jnp.mean(jnp.sum(target * logp, axis=-1))


# ----------------------------------------------------------------------------
# Parameters (deterministic synthetic init, PyTorch-like ranges)
# ----------------------------------------------------------------------------
def init_params(key, *, d_img, d_txt, d_min, n_cls, in_ch, hash_dim, batch_size,
                hidden=2048):
    keys = list(jax.random.split(key, 64))
    it = iter(keys)

    def lin(in_dim, out_dim):
        k1, k2 = jax.random.split(next(it))
        bound = 1.0 / math.sqrt(in_dim)
        w = jax.random.uniform(k1, (in_dim, out_dim), jnp.float32, -bound, bound)
        b = jax.random.uniform(k2, (out_dim,), jnp.float32, -bound, bound)
        return w, b

    def gcn_w(in_dim, out_dim):
        bound = 1.0 / math.sqrt(out_dim)
        return jax.random.uniform(next(it), (in_dim, out_dim), jnp.float32,
                                  -bound, bound)

    p = {}

    # ImgNN / TextNN, fused layout for the single-matmul-per-layer kernel.
    w_i1, b_i1 = lin(d_img, hidden)
    w_t1, b_t1 = lin(d_txt, hidden)
    w_i2, b_i2 = lin(hidden, d_min)
    w_t2, b_t2 = lin(hidden, d_min)
    # bf16 weights (halves weight DMA bytes); f32 BN params / biases.
    p["mod_w1"] = jnp.concatenate([w_i1, w_t1], axis=0).astype(jnp.bfloat16)
    p["mod_b1"] = jnp.stack([b_i1, b_t1])                      # (2, hidden)
    p["mod_g1"] = jnp.ones((2, hidden), jnp.float32)
    p["mod_be1"] = jnp.zeros((2, hidden), jnp.float32)
    p["mod_w2"] = jnp.stack([w_i2, w_t2]).astype(jnp.bfloat16)  # (2, hidden, d_min)
    p["mod_b2"] = jnp.stack([b_i2, b_t2])                       # (2, d_min)
    p["mod_g2"] = jnp.ones((2, d_min), jnp.float32)
    p["mod_be2"] = jnp.zeros((2, d_min), jnp.float32)

    # label graph (kept f32 — small, adjacency-sensitive)
    p["inp"] = jax.random.uniform(next(it), (n_cls, in_ch), jnp.float32)
    p["w_adj1"] = jax.random.uniform(next(it), (n_cls, n_cls), jnp.float32)
    p["w_adj2"] = jax.random.uniform(next(it), (n_cls, n_cls), jnp.float32)
    p["weight_m"] = jax.random.uniform(next(it), (n_cls, hash_dim), jnp.float32)
    p["gc1_label_w"] = gcn_w(in_ch, d_min)
    p["gc2_label_w"] = gcn_w(d_min, d_min)
    # classifier (minus_one_dim -> 512 -> num_classes)
    p["cls_l1_w"], p["cls_l1_b"] = lin(d_min, 512)
    p["cls_l2_w"], p["cls_l2_b"] = lin(512, n_cls)
    # fc_se / fc_fe
    p["fc_se_w"], p["fc_se_b"] = lin(2 * batch_size, 2 * batch_size)
    p["fc_fe_w"], p["fc_fe_b"] = lin(2 * batch_size, 2 * batch_size)
    # simple graph convs (bf16 weights)
    p["gc1_simple_w"] = gcn_w(d_min, d_min).astype(jnp.bfloat16)
    p["gc2_simple_w"] = gcn_w(d_min, d_min).astype(jnp.bfloat16)
    # hash heads (bf16 weights for img/txt, f32 biases; hash_label kept f32)
    hiw, hib = lin(d_min, hash_dim)
    htw, htb = lin(d_min, hash_dim)
    p["hash_img_w"], p["hash_img_b"] = hiw.astype(jnp.bfloat16), hib
    p["hash_txt_w"], p["hash_txt_b"] = htw.astype(jnp.bfloat16), htb
    p["hash_label_w"], p["hash_label_b"] = lin(d_min, hash_dim)
    return p


# ----------------------------------------------------------------------------
# TeaNN forward
# ----------------------------------------------------------------------------
def teann_forward(p, feature_img, feature_text, adj_se, y,
                  *, eta, lAmbda, batch_size, num_classes):
    del batch_size  # implied by the input shapes

    # --- fused ImgNN / TextNN: output rows [0:B]=view1, [B:2B]=view2 ---
    vcat = modality_forward(p, feature_img, feature_text)

    # --- fused label graph + adjacency + simple GCNs + hash heads ---
    y_f = y.astype(jnp.float32)
    # TODO(synk): move the (2,2) tiling in-kernel for large B (negligible here).
    adj_se_full = jnp.tile(adj_se, (2, 2))
    (label2, m_label, lp1, lp2, imgs, texts, adj_sf, adj_fs) = graph_label_hash(
        p, vcat, adj_se_full, y_f, eta=eta, lam=lAmbda)

    # --- tiny scalar losses in plain jnp ---
    matrix_i = jnp.eye(num_classes, dtype=jnp.float32)
    loss_cla1 = soft_cross_entropy(lp1, matrix_i)
    loss_cla2 = soft_cross_entropy(lp2, matrix_i)
    loss_cla_triplet = jnp.maximum(loss_cla2 - loss_cla1 + 0.01, 0.0)
    loss_cla = 0.5 * (loss_cla1 + loss_cla2)

    label2_norm = jnp.sqrt(jnp.sum(label2 * label2, axis=1))
    norm_img = jnp.sqrt(jnp.sum(imgs * imgs, axis=1))[:, None] * label2_norm[None, :] + 1e-6
    norm_txt = jnp.sqrt(jnp.sum(texts * texts, axis=1))[:, None] * label2_norm[None, :] + 1e-6
    norm_m = jnp.sqrt(jnp.sum(m_label * m_label, axis=1))[:, None] * label2_norm[None, :] + 1e-6

    label2_t = label2.T
    y_img = (imgs @ label2_t) / norm_img
    y_text = (texts @ label2_t) / norm_txt
    y_m_label = (m_label @ label2_t) / norm_m

    loss_simple_cla = (
        jnp.mean(jnp.sqrt(jnp.sum((y_img - y_f) ** 2, axis=1)))
        + jnp.mean(jnp.sqrt(jnp.sum((y_text - y_f) ** 2, axis=1)))
        + jnp.mean(jnp.sqrt(jnp.sum((y_m_label - y_f) ** 2, axis=1)))
    )

    return (imgs, texts, m_label, loss_cla, loss_cla_triplet, loss_simple_cla,
            adj_sf, adj_fs)


# ----------------------------------------------------------------------------
if __name__ == "__main__":
    # Small shapes consistent with the module's forward signature.
    B = 8            # batch_size (multiple of 8 keeps the half-slices aligned)
    D_IMG = 64       # img_input_dim
    D_TXT = 32       # text_input_dim
    D_MIN = 128      # minus_one_dim
    N_CLS = 10       # num_classes
    IN_CH = 300      # in_channel (self.inp cols)
    HASH = 128       # hash_dim
    HIDDEN = 2048    # hardcoded hidden width in ImgNN / TextNN

    key = jax.random.PRNGKey(0)
    kp, k1, k2, k3, k4 = jax.random.split(key, 5)
    params = init_params(kp, d_img=D_IMG, d_txt=D_TXT, d_min=D_MIN, n_cls=N_CLS,
                         in_ch=IN_CH, hash_dim=HASH, batch_size=B, hidden=HIDDEN)

    feature_img = jax.random.normal(k1, (B, D_IMG), jnp.float32)
    feature_text = jax.random.normal(k2, (B, D_TXT), jnp.float32)
    adj_se = jax.random.uniform(k3, (B, B), jnp.float32)
    y = (jax.random.uniform(k4, (B, N_CLS)) > 0.5).astype(jnp.float32)

    fwd = jax.jit(functools.partial(teann_forward, eta=0.4, lAmbda=0.5,
                                    batch_size=B, num_classes=N_CLS))
    outs = fwd(params, feature_img, feature_text, adj_se, y)
    outs = jax.block_until_ready(outs)

    # Light sanity checks on output shapes / finiteness.
    assert outs[0].shape == (B, HASH)            # imgs
    assert outs[1].shape == (B, HASH)            # texts
    assert outs[2].shape == (B, HASH)            # m_label
    assert outs[6].shape == (2 * B, 2 * B)       # adj_sf
    assert outs[7].shape == (2 * B, 2 * B)       # adj_fs
    assert all(bool(jnp.all(jnp.isfinite(o))) for o in outs)

    print("KERNEL_OK")
</pallas_src>

<mosaic_0001>
module attributes {stable_mosaic.version = 11 : i64} {
  func.func @_modality_kernel(%arg0: i32, %arg1: memref<16x96xf32, #tpu.memory_space<vmem>>, %arg2: memref<96x512xbf16, #tpu.memory_space<vmem>>, %arg3: memref<2x512xf32, #tpu.memory_space<vmem>>, %arg4: memref<2x512xf32, #tpu.memory_space<vmem>>, %arg5: memref<2x512xf32, #tpu.memory_space<vmem>>, %arg6: memref<2x512x128xbf16, #tpu.memory_space<vmem>>, %arg7: memref<2x128xf32, #tpu.memory_space<vmem>>, %arg8: memref<2x128xf32, #tpu.memory_space<vmem>>, %arg9: memref<2x128xf32, #tpu.memory_space<vmem>>, %arg10: memref<16x128xf32, #tpu.memory_space<vmem>>, %arg11: memref<16x128xf32, #tpu.memory_space<vmem>>) attributes {dimension_semantics = [#tpu.dimension_semantics<arbitrary>], iteration_bounds = array<i64: 4>, scalar_prefetch = 0 : i64, scratch_operands = 1 : i64, tpu.core_type = #tpu.core_type<tc>, window_params = [{pipeline_mode = #tpu.pipeline_mode<synchronous>, transform_indices = @transform_0, window_bounds = array<i64: 16, 96>}, {transform_indices = @transform_1, window_bounds = array<i64: 96, 512>}, {transform_indices = @transform_2, window_bounds = array<i64: 2, 512>}, {transform_indices = @transform_3, window_bounds = array<i64: 2, 512>}, {transform_indices = @transform_4, window_bounds = array<i64: 2, 512>}, {transform_indices = @transform_5, window_bounds = array<i64: 2, 512, 128>}, {pipeline_mode = #tpu.pipeline_mode<synchronous>, transform_indices = @transform_6, window_bounds = array<i64: 2, 128>}, {pipeline_mode = #tpu.pipeline_mode<synchronous>, transform_indices = @transform_7, window_bounds = array<i64: 2, 128>}, {pipeline_mode = #tpu.pipeline_mode<synchronous>, transform_indices = @transform_8, window_bounds = array<i64: 2, 128>}, {pipeline_mode = #tpu.pipeline_mode<synchronous>, transform_indices = @transform_9, window_bounds = array<i64: 16, 128>}]} {
    %c0_i32 = arith.constant 0 : i32
    %0 = arith.cmpi eq, %arg0, %c0_i32 : i32
    %1 = arith.extui %0 : i1 to i32
    %c0_i32_0 = arith.constant 0 : i32
    %2 = arith.cmpi ne, %1, %c0_i32_0 : i32
    scf.if %2 {
      %cst_41 = arith.constant 0.000000e+00 : f32
      %82 = vector.broadcast %cst_41 : f32 to vector<16x128xf32>
      %c0_42 = arith.constant 0 : index
      %c0_43 = arith.constant 0 : index
      %83 = vector.load %arg11[%c0_42, %c0_43] : memref<16x128xf32, #tpu.memory_space<vmem>>, vector<16x128xf32>
      tpu.vector_store %arg11[%c0_42, %c0_43], %82 {strides = array<i32>} : memref<16x128xf32, #tpu.memory_space<vmem>>, vector<16x128xf32>,
    } else {
    }
    %c0 = arith.constant 0 : index
    %c0_1 = arith.constant 0 : index
    %3 = vector.load %arg1[%c0, %c0_1] : memref<16x96xf32, #tpu.memory_space<vmem>>, vector<16x96xf32>
    %4 = arith.truncf %3 : vector<16x96xf32> to vector<16x96xbf16>
    %c0_2 = arith.constant 0 : index
    %c0_3 = arith.constant 0 : index
    %5 = vector.load %arg2[%c0_2, %c0_3] : memref<96x512xbf16, #tpu.memory_space<vmem>>, vector<96x512xbf16>
    %cst = arith.constant dense<0.000000e+00> : vector<16x512xf32>
    %6 = tpu.matmul %4, %5, %cst {dimension_numbers = #tpu.dot_dimension_numbers<[1], [0], [0], [1], [0, 0, 1, 1], [], []>} : vector<16x96xbf16>, vector<96x512xbf16>, vector<16x512xf32> -> vector<16x512xf32>
    %7 = vector.extract_strided_slice %6 {offsets = [0, 0], sizes = [8, 512], strides = [1, 1]} : vector<16x512xf32> to vector<8x512xf32>
    %c0_4 = arith.constant 0 : index
    %c0_5 = arith.constant 0 : index
    %8 = vector.load %arg3[%c0_4, %c0_5] : memref<2x512xf32, #tpu.memory_space<vmem>>, vector<1x512xf32>
    %c0_6 = arith.constant 0 : index
    %c0_7 = arith.constant 0 : index
    %9 = vector.load %arg4[%c0_6, %c0_7] : memref<2x512xf32, #tpu.memory_space<vmem>>, vector<1x512xf32>
    %c0_8 = arith.constant 0 : index
    %c0_9 = arith.constant 0 : index
    %10 = vector.load %arg5[%c0_8, %c0_9] : memref<2x512xf32, #tpu.memory_space<vmem>>, vector<1x512xf32>
    %11 = vector.broadcast %8 : vector<1x512xf32> to vector<8x512xf32>
    %12 = arith.addf %7, %11 : vector<8x512xf32>
    %cst_10 = arith.constant dense<0.000000e+00> : vector<512xf32>
    %13 = vector.multi_reduction <add>, %12, %cst_10 [0] : vector<8x512xf32> to vector<512xf32>
    %14 = vector.shape_cast %13 : vector<512xf32> to vector<1x512xf32>
    %cst_11 = arith.constant 8.000000e+00 : f32
    %15 = vector.broadcast %cst_11 : f32 to vector<1x512xf32>
    %16 = arith.divf %14, %15 : vector<1x512xf32>
    %17 = vector.broadcast %16 : vector<1x512xf32> to vector<8x512xf32>
    %18 = arith.subf %12, %17 : vector<8x512xf32>
    %19 = arith.mulf %18, %18 : vector<8x512xf32>
    %cst_12 = arith.constant dense<0.000000e+00> : vector<512xf32>
    %20 = vector.multi_reduction <add>, %19, %cst_12 [0] : vector<8x512xf32> to vector<512xf32>
    %21 = vector.shape_cast %20 : vector<512xf32> to vector<1x512xf32>
    %cst_13 = arith.constant 8.000000e+00 : f32
    %22 = vector.broadcast %cst_13 : f32 to vector<1x512xf32>
    %23 = arith.divf %21, %22 : vector<1x512xf32>
    %24 = vector.broadcast %16 : vector<1x512xf32> to vector<8x512xf32>
    %25 = arith.subf %12, %24 : vector<8x512xf32>
    %26 = vector.broadcast %9 : vector<1x512xf32> to vector<8x512xf32>
    %27 = arith.mulf %26, %25 : vector<8x512xf32>
    %cst_14 = arith.constant 9.99999974E-6 : f32
    %28 = vector.broadcast %cst_14 : f32 to vector<1x512xf32>
    %29 = arith.addf %23, %28 : vector<1x512xf32>
    %30 = math.rsqrt %29 : vector<1x512xf32>
    %31 = vector.broadcast %30 : vector<1x512xf32> to vector<8x512xf32>
    %32 = arith.mulf %27, %31 : vector<8x512xf32>
    %33 = vector.broadcast %10 : vector<1x512xf32> to vector<8x512xf32>
    %34 = arith.addf %32, %33 : vector<8x512xf32>
    %35 = math.tanh %34 : vector<8x512xf32>
    %36 = vector.extract_strided_slice %6 {offsets = [8, 0], sizes = [8, 512], strides = [1, 1]} : vector<16x512xf32> to vector<8x512xf32>
    %c1 = arith.constant 1 : index
    %c0_15 = arith.constant 0 : index
    %37 = vector.load %arg3[%c1, %c0_15] : memref<2x512xf32, #tpu.memory_space<vmem>>, vector<1x512xf32>
    %c1_16 = arith.constant 1 : index
    %c0_17 = arith.constant 0 : index
    %38 = vector.load %arg4[%c1_16, %c0_17] : memref<2x512xf32, #tpu.memory_space<vmem>>, vector<1x512xf32>
    %c1_18 = arith.constant 1 : index
    %c0_19 = arith.constant 0 : index
    %39 = vector.load %arg5[%c1_18, %c0_19] : memref<2x512xf32, #tpu.memory_space<vmem>>, vector<1x512xf32>
    %40 = vector.broadcast %37 : vector<1x512xf32> to vector<8x512xf32>
    %41 = arith.addf %36, %40 : vector<8x512xf32>
    %cst_20 = arith.constant dense<0.000000e+00> : vector<512xf32>
    %42 = vector.multi_reduction <add>, %41, %cst_20 [0] : vector<8x512xf32> to vector<512xf32>
    %43 = vector.shape_cast %42 : vector<512xf32> to vector<1x512xf32>
    %cst_21 = arith.constant 8.000000e+00 : f32
    %44 = vector.broadcast %cst_21 : f32 to vector<1x512xf32>
    %45 = arith.divf %43, %44 : vector<1x512xf32>
    %46 = vector.broadcast %45 : vector<1x512xf32> to vector<8x512xf32>
    %47 = arith.subf %41, %46 : vector<8x512xf32>
    %48 = arith.mulf %47, %47 : vector<8x512xf32>
    %cst_22 = arith.constant dense<0.000000e+00> : vector<512xf32>
    %49 = vector.multi_reduction <add>, %48, %cst_22 [0] : vector<8x512xf32> to vector<512xf32>
    %50 = vector.shape_cast %49 : vector<512xf32> to vector<1x512xf32>
    %cst_23 = arith.constant 8.000000e+00 : f32
    %51 = vector.broadcast %cst_23 : f32 to vector<1x512xf32>
    %52 = arith.divf %50, %51 : vector<1x512xf32>
    %53 = vector.broadcast %45 : vector<1x512xf32> to vector<8x512xf32>
    %54 = arith.subf %41, %53 : vector<8x512xf32>
    %55 = vector.broadcast %38 : vector<1x512xf32> to vector<8x512xf32>
    %56 = arith.mulf %55, %54 : vector<8x512xf32>
    %cst_24 = arith.constant 9.99999974E-6 : f32
    %57 = vector.broadcast %cst_24 : f32 to vector<1x512xf32>
    %58 = arith.addf %52, %57 : vector<1x512xf32>
    %59 = math.rsqrt %58 : vector<1x512xf32>
    %60 = vector.broadcast %59 : vector<1x512xf32> to vector<8x512xf32>
    %61 = arith.mulf %56, %60 : vector<8x512xf32>
    %62 = vector.broadcast %39 : vector<1x512xf32> to vector<8x512xf32>
    %63 = arith.addf %61, %62 : vector<8x512xf32>
    %64 = math.tanh %63 : vector<8x512xf32>
    %c0_25 = arith.constant 0 : index
    %c0_26 = arith.constant 0 : index
    %65 = vector.load %arg11[%c0_25, %c0_26] : memref<16x128xf32, #tpu.memory_space<vmem>>, vector<8x128xf32>
    %66 = arith.truncf %35 : vector<8x512xf32> to vector<8x512xbf16>
    %c0_27 = arith.constant 0 : index
    %c0_28 = arith.constant 0 : index
    %c0_29 = arith.constant 0 : index
    %67 = vector.load %arg6[%c0_27, %c0_28, %c0_29] : memref<2x512x128xbf16, #tpu.memory_space<vmem>>, vector<1x512x128xbf16>
    %68 = vector.shape_cast %67 : vector<1x512x128xbf16> to vector<512x128xbf16>
    %cst_30 = arith.constant dense<0.000000e+00> : vector<8x128xf32>
    %69 = tpu.matmul %66, %68, %cst_30 {dimension_numbers = #tpu.dot_dimension_numbers<[1], [0], [0], [1], [0, 0, 1, 1], [], []>} : vector<8x512xbf16>, vector<512x128xbf16>, vector<8x128xf32> -> vector<8x128xf32>
    %70 = arith.addf %65, %69 : vector<8x128xf32>
    %c0_31 = arith.constant 0 : index
    %c0_32 = arith.constant 0 : index
    %71 = vector.load %arg11[%c0_31, %c0_32] : memref<16x128xf32, #tpu.memory_space<vmem>>, vector<8x128xf32>
    tpu.vector_store %arg11[%c0_31, %c0_32], %70 {strides = array<i32>} : memref<16x128xf32, #tpu.memory_space<vmem>>, vector<8x128xf32>,
    %c8 = arith.constant 8 : index
    %c0_33 = arith.constant 0 : index
    %72 = vector.load %arg11[%c8, %c0_33] : memref<16x128xf32, #tpu.memory_space<vmem>>, vector<8x128xf32>
    %73 = arith.truncf %64 : vector<8x512xf32> to vector<8x512xbf16>
    %c1_34 = arith.constant 1 : index
    %c0_35 = arith.constant 0 : index
    %c0_36 = arith.constant 0 : index
    %74 = vector.load %arg6[%c1_34, %c0_35, %c0_36] : memref<2x512x128xbf16, #tpu.memory_space<vmem>>, vector<1x512x128xbf16>
    %75 = vector.shape_cast %74 : vector<1x512x128xbf16> to vector<512x128xbf16>
    %cst_37 = arith.constant dense<0.000000e+00> : vector<8x128xf32>
    %76 = tpu.matmul %73, %75, %cst_37 {dimension_numbers = #tpu.dot_dimension_numbers<[1], [0], [0], [1], [0, 0, 1, 1], [], []>} : vector<8x512xbf16>, vector<512x128xbf16>, vector<8x128xf32> -> vector<8x128xf32>
    %77 = arith.addf %72, %76 : vector<8x128xf32>
    %c8_38 = arith.constant 8 : index
    %c0_39 = arith.constant 0 : index
    %78 = vector.load %arg11[%c8_38, %c0_39] : memref<16x128xf32, #tpu.memory_space<vmem>>, vector<8x128xf32>
    tpu.vector_store %arg11[%c8_38, %c0_39], %77 {strides = array<i32>} : memref<16x128xf32, #tpu.memory_space<vmem>>, vector<8x128xf32>,
    %c3_i32 = arith.constant 3 : i32
    %79 = arith.cmpi eq, %arg0, %c3_i32 : i32
    %80 = arith.extui %79 : i1 to i32
    %c0_i32_40 = arith.constant 0 : i32
    %81 = arith.cmpi ne, %80, %c0_i32_40 : i32
    scf.if %81 {
      %c0_41 = arith.constant 0 : index
      %c0_42 = arith.constant 0 : index
      %82 = vector.load %arg11[%c0_41, %c0_42] : memref<16x128xf32, #tpu.memory_space<vmem>>, vector<16x128xf32>
      %83 = vector.extract_strided_slice %82 {offsets = [0, 0], sizes = [8, 128], strides = [1, 1]} : vector<16x128xf32> to vector<8x128xf32>
      %c0_43 = arith.constant 0 : index
      %c0_44 = arith.constant 0 : index
      %84 = vector.load %arg7[%c0_43, %c0_44] : memref<2x128xf32, #tpu.memory_space<vmem>>, vector<1x128xf32>
      %c0_45 = arith.constant 0 : index
      %c0_46 = arith.constant 0 : index
      %85 = vector.load %arg8[%c0_45, %c0_46] : memref<2x128xf32, #tpu.memory_space<vmem>>, vector<1x128xf32>
      %c0_47 = arith.constant 0 : index
      %c0_48 = arith.constant 0 : index
      %86 = vector.load %arg9[%c0_47, %c0_48] : memref<2x128xf32, #tpu.memory_space<vmem>>, vector<1x128xf32>
      %87 = vector.broadcast %84 : vector<1x128xf32> to vector<8x128xf32>
      %88 = arith.addf %83, %87 : vector<8x128xf32>
      %cst_49 = arith.constant dense<0.000000e+00> : vector<128xf32>
      %89 = vector.multi_reduction <add>, %88, %cst_49 [0] : vector<8x128xf32> to vector<128xf32>
      %90 = vector.shape_cast %89 : vector<128xf32> to vector<1x128xf32>
      %cst_50 = arith.constant 8.000000e+00 : f32
      %91 = vector.broadcast %cst_50 : f32 to vector<1x128xf32>
      %92 = arith.divf %90, %91 : vector<1x128xf32>
      %93 = vector.broadcast %92 : vector<1x128xf32> to vector<8x128xf32>
      %94 = arith.subf %88, %93 : vector<8x128xf32>
      %95 = arith.mulf %94, %94 : vector<8x128xf32>
      %cst_51 = arith.constant dense<0.000000e+00> : vector<128xf32>
      %96 = vector.multi_reduction <add>, %95, %cst_51 [0] : vector<8x128xf32> to vector<128xf32>
      %97 = vector.shape_cast %96 : vector<128xf32> to vector<1x128xf32>
      %cst_52 = arith.constant 8.000000e+00 : f32
      %98 = vector.broadcast %cst_52 : f32 to vector<1x128xf32>
      %99 = arith.divf %97, %98 : vector<1x128xf32>
      %100 = vector.broadcast %92 : vector<1x128xf32> to vector<8x128xf32>
      %101 = arith.subf %88, %100 : vector<8x128xf32>
      %102 = vector.broadcast %85 : vector<1x128xf32> to vector<8x128xf32>
      %103 = arith.mulf %102, %101 : vector<8x128xf32>
      %cst_53 = arith.constant 9.99999974E-6 : f32
      %104 = vector.broadcast %cst_53 : f32 to vector<1x128xf32>
      %105 = arith.addf %99, %104 : vector<1x128xf32>
      %106 = math.rsqrt %105 : vector<1x128xf32>
      %107 = vector.broadcast %106 : vector<1x128xf32> to vector<8x128xf32>
      %108 = arith.mulf %103, %107 : vector<8x128xf32>
      %109 = vector.broadcast %86 : vector<1x128xf32> to vector<8x128xf32>
      %110 = arith.addf %108, %109 : vector<8x128xf32>
      %111 = math.tanh %110 : vector<8x128xf32>
      %c0_54 = arith.constant 0 : index
      %c0_55 = arith.constant 0 : index
      %112 = vector.load %arg10[%c0_54, %c0_55] : memref<16x128xf32, #tpu.memory_space<vmem>>, vector<8x128xf32>
      tpu.vector_store %arg10[%c0_54, %c0_55], %111 {strides = array<i32>} : memref<16x128xf32, #tpu.memory_space<vmem>>, vector<8x128xf32>,
      %113 = vector.extract_strided_slice %82 {offsets = [8, 0], sizes = [8, 128], strides = [1, 1]} : vector<16x128xf32> to vector<8x128xf32>
      %c1_56 = arith.constant 1 : index
      %c0_57 = arith.constant 0 : index
      %114 = vector.load %arg7[%c1_56, %c0_57] : memref<2x128xf32, #tpu.memory_space<vmem>>, vector<1x128xf32>
      %c1_58 = arith.constant 1 : index
      %c0_59 = arith.constant 0 : index
      %115 = vector.load %arg8[%c1_58, %c0_59] : memref<2x128xf32, #tpu.memory_space<vmem>>, vector<1x128xf32>
      %c1_60 = arith.constant 1 : index
      %c0_61 = arith.constant 0 : index
      %116 = vector.load %arg9[%c1_60, %c0_61] : memref<2x128xf32, #tpu.memory_space<vmem>>, vector<1x128xf32>
      %117 = vector.broadcast %114 : vector<1x128xf32> to vector<8x128xf32>
      %118 = arith.addf %113, %117 : vector<8x128xf32>
      %cst_62 = arith.constant dense<0.000000e+00> : vector<128xf32>
      %119 = vector.multi_reduction <add>, %118, %cst_62 [0] : vector<8x128xf32> to vector<128xf32>
      %120 = vector.shape_cast %119 : vector<128xf32> to vector<1x128xf32>
      %cst_63 = arith.constant 8.000000e+00 : f32
      %121 = vector.broadcast %cst_63 : f32 to vector<1x128xf32>
      %122 = arith.divf %120, %121 : vector<1x128xf32>
      %123 = vector.broadcast %122 : vector<1x128xf32> to vector<8x128xf32>
      %124 = arith.subf %118, %123 : vector<8x128xf32>
      %125 = arith.mulf %124, %124 : vector<8x128xf32>
      %cst_64 = arith.constant dense<0.000000e+00> : vector<128xf32>
      %126 = vector.multi_reduction <add>, %125, %cst_64 [0] : vector<8x128xf32> to vector<128xf32>
      %127 = vector.shape_cast %126 : vector<128xf32> to vector<1x128xf32>
      %cst_65 = arith.constant 8.000000e+00 : f32
      %128 = vector.broadcast %cst_65 : f32 to vector<1x128xf32>
      %129 = arith.divf %127, %128 : vector<1x128xf32>
      %130 = vector.broadcast %122 : vector<1x128xf32> to vector<8x128xf32>
      %131 = arith.subf %118, %130 : vector<8x128xf32>
      %132 = vector.broadcast %115 : vector<1x128xf32> to vector<8x128xf32>
      %133 = arith.mulf %132, %131 : vector<8x128xf32>
      %cst_66 = arith.constant 9.99999974E-6 : f32
      %134 = vector.broadcast %cst_66 : f32 to vector<1x128xf32>
      %135 = arith.addf %129, %134 : vector<1x128xf32>
      %136 = math.rsqrt %135 : vector<1x128xf32>
      %137 = vector.broadcast %136 : vector<1x128xf32> to vector<8x128xf32>
      %138 = arith.mulf %133, %137 : vector<8x128xf32>
      %139 = vector.broadcast %116 : vector<1x128xf32> to vector<8x128xf32>
      %140 = arith.addf %138, %139 : vector<8x128xf32>
      %141 = math.tanh %140 : vector<8x128xf32>
      %c8_67 = arith.constant 8 : index
      %c0_68 = arith.constant 0 : index
      %142 = vector.load %arg10[%c8_67, %c0_68] : memref<16x128xf32, #tpu.memory_space<vmem>>, vector<8x128xf32>
      tpu.vector_store %arg10[%c8_67, %c0_68], %141 {strides = array<i32>} : memref<16x128xf32, #tpu.memory_space<vmem>>, vector<8x128xf32>,
    } else {
    }
    return
  }
  func.func @transform_0(%arg0: i32) -> (i32, i32) {
    %c0_i32 = arith.constant 0 : i32
    %c0_i32_0 = arith.constant 0 : i32
    %c0_i32_1 = arith.constant 0 : i32
    return %c0_i32, %c0_i32_0 : i32, i32
  }
  func.func @transform_1(%arg0: i32) -> (i32, i32) {
    %c0_i32 = arith.constant 0 : i32
    %c0_i32_0 = arith.constant 0 : i32
    return %c0_i32, %arg0 : i32, i32
  }
  func.func @transform_2(%arg0: i32) -> (i32, i32) {
    %c0_i32 = arith.constant 0 : i32
    %c0_i32_0 = arith.constant 0 : i32
    return %c0_i32, %arg0 : i32, i32
  }
  func.func @transform_3(%arg0: i32) -> (i32, i32) {
    %c0_i32 = arith.constant 0 : i32
    %c0_i32_0 = arith.constant 0 : i32
    return %c0_i32, %arg0 : i32, i32
  }
  func.func @transform_4(%arg0: i32) -> (i32, i32) {
    %c0_i32 = arith.constant 0 : i32
    %c0_i32_0 = arith.constant 0 : i32
    return %c0_i32, %arg0 : i32, i32
  }
  func.func @transform_5(%arg0: i32) -> (i32, i32, i32) {
    %c0_i32 = arith.constant 0 : i32
    %c0_i32_0 = arith.constant 0 : i32
    %c0_i32_1 = arith.constant 0 : i32
    return %c0_i32, %arg0, %c0_i32_0 : i32, i32, i32
  }
  func.func @transform_6(%arg0: i32) -> (i32, i32) {
    %c0_i32 = arith.constant 0 : i32
    %c0_i32_0 = arith.constant 0 : i32
    %c0_i32_1 = arith.constant 0 : i32
    return %c0_i32, %c0_i32_0 : i32, i32
  }
  func.func @transform_7(%arg0: i32) -> (i32, i32) {
    %c0_i32 = arith.constant 0 : i32
    %c0_i32_0 = arith.constant 0 : i32
    %c0_i32_1 = arith.constant 0 : i32
    return %c0_i32, %c0_i32_0 : i32, i32
  }
  func.func @transform_8(%arg0: i32) -> (i32, i32) {
    %c0_i32 = arith.constant 0 : i32
    %c0_i32_0 = arith.constant 0 : i32
    %c0_i32_1 = arith.constant 0 : i32
    return %c0_i32, %c0_i32_0 : i32, i32
  }
  func.func @transform_9(%arg0: i32) -> (i32, i32) {
    %c0_i32 = arith.constant 0 : i32
    %c0_i32_0 = arith.constant 0 : i32
    %c0_i32_1 = arith.constant 0 : i32
    return %c0_i32, %c0_i32_0 : i32, i32
  }
}

module attributes {stable_mosaic.version = 11 : i64} {
  func.func @_graph_kernel(%arg0: memref<10x300xf32, #tpu.memory_space<vmem>>, %arg1: memref<10x10xf32, #tpu.memory_space<vmem>>, %arg2: memref<10x10xf32, #tpu.memory_space<vmem>>, %arg3: memref<300x128xf32, #tpu.memory_space<vmem>>, %arg4: memref<128x128xf32, #tpu.memory_space<vmem>>, %arg5: memref<128x512xf32, #tpu.memory_space<vmem>>, %arg6: memref<1x512xf32, #tpu.memory_space<vmem>>, %arg7: memref<512x10xf32, #tpu.memory_space<vmem>>, %arg8: memref<1x10xf32, #tpu.memory_space<vmem>>, %arg9: memref<128x128xf32, #tpu.memory_space<vmem>>, %arg10: memref<1x128xf32, #tpu.memory_space<vmem>>, %arg11: memref<10x128xf32, #tpu.memory_space<vmem>>, %arg12: memref<8x10xf32, #tpu.memory_space<vmem>>, %arg13: memref<16x128xf32, #tpu.memory_space<vmem>>, %arg14: memref<16x16xf32, #tpu.memory_space<vmem>>, %arg15: memref<16x16xf32, #tpu.memory_space<vmem>>, %arg16: memref<1x16xf32, #tpu.memory_space<vmem>>, %arg17: memref<16x16xf32, #tpu.memory_space<vmem>>, %arg18: memref<1x16xf32, #tpu.memory_space<vmem>>, %arg19: memref<128x128xbf16, #tpu.memory_space<vmem>>, %arg20: memref<128x128xbf16, #tpu.memory_space<vmem>>, %arg21: memref<128x128xbf16, #tpu.memory_space<vmem>>, %arg22: memref<1x128xf32, #tpu.memory_space<vmem>>, %arg23: memref<128x128xbf16, #tpu.memory_space<vmem>>, %arg24: memref<1x128xf32, #tpu.memory_space<vmem>>, %arg25: memref<10x128xf32, #tpu.memory_space<vmem>>, %arg26: memref<8x128xf32, #tpu.memory_space<vmem>>, %arg27: memref<10x10xf32, #tpu.memory_space<vmem>>, %arg28: memref<10x10xf32, #tpu.memory_space<vmem>>, %arg29: memref<8x128xf32, #tpu.memory_space<vmem>>, %arg30: memref<8x128xf32, #tpu.memory_space<vmem>>, %arg31: memref<16x16xf32, #tpu.memory_space<vmem>>, %arg32: memref<16x16xf32, #tpu.memory_space<vmem>>) attributes {dimension_semantics = [], scalar_prefetch = 0 : i64, scratch_operands = 0 : i64, tpu.core_type = #tpu.core_type<tc>} {
    %c0 = arith.constant 0 : index
    %c0_0 = arith.constant 0 : index
    %0 = vector.load %arg0[%c0, %c0_0] : memref<10x300xf32, #tpu.memory_space<vmem>>, vector<10x300xf32>
    %1 = arith.mulf %0, %0 : vector<10x300xf32>
    %cst = arith.constant dense<0.000000e+00> : vector<10xf32>
    %2 = vector.multi_reduction <add>, %1, %cst [1] : vector<10x300xf32> to vector<10xf32>
    %3 = vector.shape_cast %2 : vector<10xf32> to vector<10x1xf32>
    %4 = math.sqrt %3 : vector<10x1xf32>
    %cst_1 = arith.constant 9.99999993E-9 : f32
    %5 = vector.broadcast %cst_1 : f32 to vector<10x1xf32>
    %6 = arith.maximumf %4, %5 : vector<10x1xf32>
    %7 = vector.broadcast %6 : vector<10x1xf32> to vector<10x300xf32>
    %8 = arith.divf %0, %7 : vector<10x300xf32>
    %cst_2 = arith.constant dense<0.000000e+00> : vector<10x10xf32>
    %9 = tpu.matmul %8, %8, %cst_2 {dimension_numbers = #tpu.dot_dimension_numbers<[1], [1], [0], [0], [0, 0, 1, 0], [], []>} : vector<10x300xf32>, vector<10x300xf32>, vector<10x10xf32> -> vector<10x10xf32>
    %cst_3 = arith.constant 4.000000e-01 : f32
    %10 = vector.broadcast %cst_3 : f32 to vector<10x10xf32>
    %11 = arith.cmpf olt, %9, %10 : vector<10x10xf32>
    %cst_4 = arith.constant 0.000000e+00 : f32
    %12 = vector.broadcast %cst_4 : f32 to vector<10x10xf32>
    %13 = arith.select %11, %12, %9 : vector<10x10xi1>, vector<10x10xf32>
    %c0_5 = arith.constant 0 : index
    %c0_6 = arith.constant 0 : index
    %14 = vector.load %arg1[%c0_5, %c0_6] : memref<10x10xf32, #tpu.memory_space<vmem>>, vector<10x10xf32>
    %15 = arith.mulf %13, %14 : vector<10x10xf32>
    %16 = tpu.iota {dimensions = array<i32: 0>} : vector<10x10xi32>
    %17 = tpu.iota {dimensions = array<i32: 1>} : vector<10x10xi32>
    %18 = arith.cmpi eq, %16, %17 : vector<10x10xi32>
    %19 = arith.extui %18 : vector<10x10xi1> to vector<10x10xi32>
    %20 = arith.sitofp %19 : vector<10x10xi32> to vector<10x10xf32>
    %21 = arith.addf %15, %20 : vector<10x10xf32>
    %cst_7 = arith.constant dense<0.000000e+00> : vector<10xf32>
    %22 = vector.multi_reduction <add>, %21, %cst_7 [1] : vector<10x10xf32> to vector<10xf32>
    %23 = vector.shape_cast %22 : vector<10xf32> to vector<10x1xf32>
    %cst_8 = arith.constant 9.99999996E-13 : f32
    %24 = vector.broadcast %cst_8 : f32 to vector<10x1xf32>
    %25 = arith.maximumf %23, %24 : vector<10x1xf32>
    %26 = math.rsqrt %25 : vector<10x1xf32>
    %27 = vector.broadcast %26 : vector<10x1xf32> to vector<10x10xf32>
    %28 = arith.mulf %20, %27 : vector<10x10xf32>
    %cst_9 = arith.constant dense<0.000000e+00> : vector<10xf32>
    %29 = vector.multi_reduction <add>, %28, %cst_9 [0] : vector<10x10xf32> to vector<10xf32>
    %30 = vector.shape_cast %29 : vector<10xf32> to vector<1x10xf32>
    %31 = vector.broadcast %26 : vector<10x1xf32> to vector<10x10xf32>
    %32 = arith.mulf %21, %31 : vector<10x10xf32>
    %33 = vector.broadcast %30 : vector<1x10xf32> to vector<10x10xf32>
    %34 = arith.mulf %32, %33 : vector<10x10xf32>
    %c0_10 = arith.constant 0 : index
    %c0_11 = arith.constant 0 : index
    %35 = vector.load %arg2[%c0_10, %c0_11] : memref<10x10xf32, #tpu.memory_space<vmem>>, vector<10x10xf32>
    %36 = arith.mulf %13, %35 : vector<10x10xf32>
    %37 = tpu.iota {dimensions = array<i32: 0>} : vector<10x10xi32>
    %38 = tpu.iota {dimensions = array<i32: 1>} : vector<10x10xi32>
    %39 = arith.cmpi eq, %37, %38 : vector<10x10xi32>
    %40 = arith.extui %39 : vector<10x10xi1> to vector<10x10xi32>
    %41 = arith.sitofp %40 : vector<10x10xi32> to vector<10x10xf32>
    %42 = arith.addf %36, %41 : vector<10x10xf32>
    %cst_12 = arith.constant dense<0.000000e+00> : vector<10xf32>
    %43 = vector.multi_reduction <add>, %42, %cst_12 [1] : vector<10x10xf32> to vector<10xf32>
    %44 = vector.shape_cast %43 : vector<10xf32> to vector<10x1xf32>
    %cst_13 = arith.constant 9.99999996E-13 : f32
    %45 = vector.broadcast %cst_13 : f32 to vector<10x1xf32>
    %46 = arith.maximumf %44, %45 : vector<10x1xf32>
    %47 = math.rsqrt %46 : vector<10x1xf32>
    %48 = vector.broadcast %47 : vector<10x1xf32> to vector<10x10xf32>
    %49 = arith.mulf %41, %48 : vector<10x10xf32>
    %cst_14 = arith.constant dense<0.000000e+00> : vector<10xf32>
    %50 = vector.multi_reduction <add>, %49, %cst_14 [0] : vector<10x10xf32> to vector<10xf32>
    %51 = vector.shape_cast %50 : vector<10xf32> to vector<1x10xf32>
    %52 = vector.broadcast %47 : vector<10x1xf32> to vector<10x10xf32>
    %53 = arith.mulf %42, %52 : vector<10x10xf32>
    %54 = vector.broadcast %51 : vector<1x10xf32> to vector<10x10xf32>
    %55 = arith.mulf %53, %54 : vector<10x10xf32>
    %c0_15 = arith.constant 0 : index
    %c0_16 = arith.constant 0 : index
    %56 = vector.load %arg3[%c0_15, %c0_16] : memref<300x128xf32, #tpu.memory_space<vmem>>, vector<300x128xf32>
    %cst_17 = arith.constant dense<0.000000e+00> : vector<10x128xf32>
    %57 = tpu.matmul %0, %56, %cst_17 {dimension_numbers = #tpu.dot_dimension_numbers<[1], [0], [0], [1], [0, 0, 1, 1], [], []>} : vector<10x300xf32>, vector<300x128xf32>, vector<10x128xf32> -> vector<10x128xf32>
    %cst_18 = arith.constant dense<0.000000e+00> : vector<10x128xf32>
    %58 = tpu.matmul %34, %57, %cst_18 {dimension_numbers = #tpu.dot_dimension_numbers<[1], [0], [0], [1], [0, 0, 1, 1], [], []>} : vector<10x10xf32>, vector<10x128xf32>, vector<10x128xf32> -> vector<10x128xf32>
    %c0_19 = arith.constant 0 : index
    %c0_20 = arith.constant 0 : index
    %59 = vector.load %arg4[%c0_19, %c0_20] : memref<128x128xf32, #tpu.memory_space<vmem>>, vector<128x128xf32>
    %cst_21 = arith.constant dense<0.000000e+00> : vector<10x128xf32>
    %60 = tpu.matmul %58, %59, %cst_21 {dimension_numbers = #tpu.dot_dimension_numbers<[1], [0], [0], [1], [0, 0, 1, 1], [], []>} : vector<10x128xf32>, vector<128x128xf32>, vector<10x128xf32> -> vector<10x128xf32>
    %cst_22 = arith.constant dense<0.000000e+00> : vector<10x128xf32>
    %61 = tpu.matmul %55, %60, %cst_22 {dimension_numbers = #tpu.dot_dimension_numbers<[1], [0], [0], [1], [0, 0, 1, 1], [], []>} : vector<10x10xf32>, vector<10x128xf32>, vector<10x128xf32> -> vector<10x128xf32>
    %c0_23 = arith.constant 0 : index
    %c0_24 = arith.constant 0 : index
    %62 = vector.load %arg5[%c0_23, %c0_24] : memref<128x512xf32, #tpu.memory_space<vmem>>, vector<128x512xf32>
    %cst_25 = arith.constant dense<0.000000e+00> : vector<10x512xf32>
    %63 = tpu.matmul %58, %62, %cst_25 {dimension_numbers = #tpu.dot_dimension_numbers<[1], [0], [0], [1], [0, 0, 1, 1], [], []>} : vector<10x128xf32>, vector<128x512xf32>, vector<10x512xf32> -> vector<10x512xf32>
    %c0_26 = arith.constant 0 : index
    %c0_27 = arith.constant 0 : index
    %64 = vector.load %arg6[%c0_26, %c0_27] : memref<1x512xf32, #tpu.memory_space<vmem>>, vector<1x512xf32>
    %65 = vector.broadcast %64 : vector<1x512xf32> to vector<10x512xf32>
    %66 = arith.addf %63, %65 : vector<10x512xf32>
    %cst_28 = arith.constant 0.000000e+00 : f32
    %67 = vector.broadcast %cst_28 : f32 to vector<10x512xf32>
    %68 = arith.maximumf %66, %67 : vector<10x512xf32>
    %c0_29 = arith.constant 0 : index
    %c0_30 = arith.constant 0 : index
    %69 = vector.load %arg7[%c0_29, %c0_30] : memref<512x10xf32, #tpu.memory_space<vmem>>, vector<512x10xf32>
    %cst_31 = arith.constant dense<0.000000e+00> : vector<10x10xf32>
    %70 = tpu.matmul %68, %69, %cst_31 {dimension_numbers = #tpu.dot_dimension_numbers<[1], [0], [0], [1], [0, 0, 1, 1], [], []>} : vector<10x512xf32>, vector<512x10xf32>, vector<10x10xf32> -> vector<10x10xf32>
    %c0_32 = arith.constant 0 : index
    %c0_33 = arith.constant 0 : index
    %71 = vector.load %arg8[%c0_32, %c0_33] : memref<1x10xf32, #tpu.memory_space<vmem>>, vector<1x10xf32>
    %72 = vector.broadcast %71 : vector<1x10xf32> to vector<10x10xf32>
    %73 = arith.addf %70, %72 : vector<10x10xf32>
    %c0_34 = arith.constant 0 : index
    %c0_35 = arith.constant 0 : index
    %74 = vector.load %arg27[%c0_34, %c0_35] : memref<10x10xf32, #tpu.memory_space<vmem>>, vector<10x10xf32>
    tpu.vector_store %arg27[%c0_34, %c0_35], %73 {strides = array<i32>} : memref<10x10xf32, #tpu.memory_space<vmem>>, vector<10x10xf32>,
    %c0_36 = arith.constant 0 : index
    %c0_37 = arith.constant 0 : index
    %75 = vector.load %arg5[%c0_36, %c0_37] : memref<128x512xf32, #tpu.memory_space<vmem>>, vector<128x512xf32>
    %cst_38 = arith.constant dense<0.000000e+00> : vector<10x512xf32>
    %76 = tpu.matmul %61, %75, %cst_38 {dimension_numbers = #tpu.dot_dimension_numbers<[1], [0], [0], [1], [0, 0, 1, 1], [], []>} : vector<10x128xf32>, vector<128x512xf32>, vector<10x512xf32> -> vector<10x512xf32>
    %c0_39 = arith.constant 0 : index
    %c0_40 = arith.constant 0 : index
    %77 = vector.load %arg6[%c0_39, %c0_40] : memref<1x512xf32, #tpu.memory_space<vmem>>, vector<1x512xf32>
    %78 = vector.broadcast %77 : vector<1x512xf32> to vector<10x512xf32>
    %79 = arith.addf %76, %78 : vector<10x512xf32>
    %cst_41 = arith.constant 0.000000e+00 : f32
    %80 = vector.broadcast %cst_41 : f32 to vector<10x512xf32>
    %81 = arith.maximumf %79, %80 : vector<10x512xf32>
    %c0_42 = arith.constant 0 : index
    %c0_43 = arith.constant 0 : index
    %82 = vector.load %arg7[%c0_42, %c0_43] : memref<512x10xf32, #tpu.memory_space<vmem>>, vector<512x10xf32>
    %cst_44 = arith.constant dense<0.000000e+00> : vector<10x10xf32>
    %83 = tpu.matmul %81, %82, %cst_44 {dimension_numbers = #tpu.dot_dimension_numbers<[1], [0], [0], [1], [0, 0, 1, 1], [], []>} : vector<10x512xf32>, vector<512x10xf32>, vector<10x10xf32> -> vector<10x10xf32>
    %c0_45 = arith.constant 0 : index
    %c0_46 = arith.constant 0 : index
    %84 = vector.load %arg8[%c0_45, %c0_46] : memref<1x10xf32, #tpu.memory_space<vmem>>, vector<1x10xf32>
    %85 = vector.broadcast %84 : vector<1x10xf32> to vector<10x10xf32>
    %86 = arith.addf %83, %85 : vector<10x10xf32>
    %c0_47 = arith.constant 0 : index
    %c0_48 = arith.constant 0 : index
    %87 = vector.load %arg28[%c0_47, %c0_48] : memref<10x10xf32, #tpu.memory_space<vmem>>, vector<10x10xf32>
    tpu.vector_store %arg28[%c0_47, %c0_48], %86 {strides = array<i32>} : memref<10x10xf32, #tpu.memory_space<vmem>>, vector<10x10xf32>,
    %c0_49 = arith.constant 0 : index
    %c0_50 = arith.constant 0 : index
    %88 = vector.load %arg9[%c0_49, %c0_50] : memref<128x128xf32, #tpu.memory_space<vmem>>, vector<128x128xf32>
    %cst_51 = arith.constant dense<0.000000e+00> : vector<10x128xf32>
    %89 = tpu.matmul %61, %88, %cst_51 {dimension_numbers = #tpu.dot_dimension_numbers<[1], [0], [0], [1], [0, 0, 1, 1], [], []>} : vector<10x128xf32>, vector<128x128xf32>, vector<10x128xf32> -> vector<10x128xf32>
    %c0_52 = arith.constant 0 : index
    %c0_53 = arith.constant 0 : index
    %90 = vector.load %arg10[%c0_52, %c0_53] : memref<1x128xf32, #tpu.memory_space<vmem>>, vector<1x128xf32>
    %91 = vector.broadcast %90 : vector<1x128xf32> to vector<10x128xf32>
    %92 = arith.addf %89, %91 : vector<10x128xf32>
    %93 = math.tanh %92 : vector<10x128xf32>
    %c0_54 = arith.constant 0 : index
    %c0_55 = arith.constant 0 : index
    %94 = vector.load %arg25[%c0_54, %c0_55] : memref<10x128xf32, #tpu.memory_space<vmem>>, vector<10x128xf32>
    tpu.vector_store %arg25[%c0_54, %c0_55], %93 {strides = array<i32>} : memref<10x128xf32, #tpu.memory_space<vmem>>, vector<10x128xf32>,
    %c0_56 = arith.constant 0 : index
    %c0_57 = arith.constant 0 : index
    %95 = vector.load %arg12[%c0_56, %c0_57] : memref<8x10xf32, #tpu.memory_space<vmem>>, vector<8x10xf32>
    %c0_58 = arith.constant 0 : index
    %c0_59 = arith.constant 0 : index
    %96 = vector.load %arg11[%c0_58, %c0_59] : memref<10x128xf32, #tpu.memory_space<vmem>>, vector<10x128xf32>
    %97 = arith.mulf %93, %96 : vector<10x128xf32>
    %cst_60 = arith.constant dense<0.000000e+00> : vector<8x128xf32>
    %98 = tpu.matmul %95, %97, %cst_60 {dimension_numbers = #tpu.dot_dimension_numbers<[1], [0], [0], [1], [0, 0, 1, 1], [], []>} : vector<8x10xf32>, vector<10x128xf32>, vector<8x128xf32> -> vector<8x128xf32>
    %99 = math.tanh %98 : vector<8x128xf32>
    %c0_61 = arith.constant 0 : index
    %c0_62 = arith.constant 0 : index
    %100 = vector.load %arg26[%c0_61, %c0_62] : memref<8x128xf32, #tpu.memory_space<vmem>>, vector<8x128xf32>
    tpu.vector_store %arg26[%c0_61, %c0_62], %99 {strides = array<i32>} : memref<8x128xf32, #tpu.memory_space<vmem>>, vector<8x128xf32>,
    %c0_63 = arith.constant 0 : index
    %c0_64 = arith.constant 0 : index
    %101 = vector.load %arg13[%c0_63, %c0_64] : memref<16x128xf32, #tpu.memory_space<vmem>>, vector<16x128xf32>
    %102 = arith.mulf %101, %101 : vector<16x128xf32>
    %cst_65 = arith.constant dense<0.000000e+00> : vector<16xf32>
    %103 = vector.multi_reduction <add>, %102, %cst_65 [1] : vector<16x128xf32> to vector<16xf32>
    %104 = vector.shape_cast %103 : vector<16xf32> to vector<16x1xf32>
    %105 = math.sqrt %104 : vector<16x1xf32>
    %cst_66 = arith.constant 9.99999993E-9 : f32
    %106 = vector.broadcast %cst_66 : f32 to vector<16x1xf32>
    %107 = arith.maximumf %105, %106 : vector<16x1xf32>
    %108 = vector.broadcast %107 : vector<16x1xf32> to vector<16x128xf32>
    %109 = arith.divf %101, %108 : vector<16x128xf32>
    %cst_67 = arith.constant dense<0.000000e+00> : vector<16x16xf32>
    %110 = tpu.matmul %109, %109, %cst_67 {dimension_numbers = #tpu.dot_dimension_numbers<[1], [1], [0], [0], [0, 0, 1, 0], [], []>} : vector<16x128xf32>, vector<16x128xf32>, vector<16x16xf32> -> vector<16x16xf32>
    %cst_68 = arith.constant 4.000000e-01 : f32
    %111 = vector.broadcast %cst_68 : f32 to vector<16x16xf32>
    %112 = arith.cmpf olt, %110, %111 : vector<16x16xf32>
    %cst_69 = arith.constant 0.000000e+00 : f32
    %113 = vector.broadcast %cst_69 : f32 to vector<16x16xf32>
    %114 = arith.select %112, %113, %110 : vector<16x16xi1>, vector<16x16xf32>
    %c0_70 = arith.constant 0 : index
    %c0_71 = arith.constant 0 : index
    %115 = vector.load %arg14[%c0_70, %c0_71] : memref<16x16xf32, #tpu.memory_space<vmem>>, vector<16x16xf32>
    %c0_72 = arith.constant 0 : index
    %c0_73 = arith.constant 0 : index
    %116 = vector.load %arg15[%c0_72, %c0_73] : memref<16x16xf32, #tpu.memory_space<vmem>>, vector<16x16xf32>
    %cst_74 = arith.constant dense<0.000000e+00> : vector<16x16xf32>
    %117 = tpu.matmul %115, %116, %cst_74 {dimension_numbers = #tpu.dot_dimension_numbers<[1], [0], [0], [1], [0, 0, 1, 1], [], []>} : vector<16x16xf32>, vector<16x16xf32>, vector<16x16xf32> -> vector<16x16xf32>
    %c0_75 = arith.constant 0 : index
    %c0_76 = arith.constant 0 : index
    %118 = vector.load %arg16[%c0_75, %c0_76] : memref<1x16xf32, #tpu.memory_space<vmem>>, vector<1x16xf32>
    %119 = vector.broadcast %118 : vector<1x16xf32> to vector<16x16xf32>
    %120 = arith.addf %117, %119 : vector<16x16xf32>
    %c0_77 = arith.constant 0 : index
    %c0_78 = arith.constant 0 : index
    %121 = vector.load %arg17[%c0_77, %c0_78] : memref<16x16xf32, #tpu.memory_space<vmem>>, vector<16x16xf32>
    %cst_79 = arith.constant dense<0.000000e+00> : vector<16x16xf32>
    %122 = tpu.matmul %114, %121, %cst_79 {dimension_numbers = #tpu.dot_dimension_numbers<[1], [0], [0], [1], [0, 0, 1, 1], [], []>} : vector<16x16xf32>, vector<16x16xf32>, vector<16x16xf32> -> vector<16x16xf32>
    %c0_80 = arith.constant 0 : index
    %c0_81 = arith.constant 0 : index
    %123 = vector.load %arg18[%c0_80, %c0_81] : memref<1x16xf32, #tpu.memory_space<vmem>>, vector<1x16xf32>
    %124 = vector.broadcast %123 : vector<1x16xf32> to vector<16x16xf32>
    %125 = arith.addf %122, %124 : vector<16x16xf32>
    %126 = arith.addf %115, %125 : vector<16x16xf32>
    %127 = arith.addf %114, %120 : vector<16x16xf32>
    %c0_82 = arith.constant 0 : index
    %c0_83 = arith.constant 0 : index
    %128 = vector.load %arg31[%c0_82, %c0_83] : memref<16x16xf32, #tpu.memory_space<vmem>>, vector<16x16xf32>
    tpu.vector_store %arg31[%c0_82, %c0_83], %126 {strides = array<i32>} : memref<16x16xf32, #tpu.memory_space<vmem>>, vector<16x16xf32>,
    %c0_84 = arith.constant 0 : index
    %c0_85 = arith.constant 0 : index
    %129 = vector.load %arg32[%c0_84, %c0_85] : memref<16x16xf32, #tpu.memory_space<vmem>>, vector<16x16xf32>
    tpu.vector_store %arg32[%c0_84, %c0_85], %127 {strides = array<i32>} : memref<16x16xf32, #tpu.memory_space<vmem>>, vector<16x16xf32>,
    %cst_86 = arith.constant 5.000000e-01 : f32
    %130 = vector.broadcast %cst_86 : f32 to vector<16x16xf32>
    %131 = arith.mulf %130, %126 : vector<16x16xf32>
    %cst_87 = arith.constant 5.000000e-01 : f32
    %132 = vector.broadcast %cst_87 : f32 to vector<16x16xf32>
    %133 = arith.mulf %132, %127 : vector<16x16xf32>
    %134 = arith.addf %131, %133 : vector<16x16xf32>
    %135 = tpu.iota {dimensions = array<i32: 0>} : vector<16x16xi32>
    %136 = tpu.iota {dimensions = array<i32: 1>} : vector<16x16xi32>
    %137 = arith.cmpi eq, %135, %136 : vector<16x16xi32>
    %138 = arith.extui %137 : vector<16x16xi1> to vector<16x16xi32>
    %139 = arith.sitofp %138 : vector<16x16xi32> to vector<16x16xf32>
    %140 = arith.addf %134, %139 : vector<16x16xf32>
    %cst_88 = arith.constant dense<0.000000e+00> : vector<16xf32>
    %141 = vector.multi_reduction <add>, %140, %cst_88 [1] : vector<16x16xf32> to vector<16xf32>
    %142 = vector.shape_cast %141 : vector<16xf32> to vector<16x1xf32>
    %cst_89 = arith.constant 9.99999996E-13 : f32
    %143 = vector.broadcast %cst_89 : f32 to vector<16x1xf32>
    %144 = arith.maximumf %142, %143 : vector<16x1xf32>
    %145 = math.rsqrt %144 : vector<16x1xf32>
    %146 = vector.broadcast %145 : vector<16x1xf32> to vector<16x16xf32>
    %147 = arith.mulf %139, %146 : vector<16x16xf32>
    %cst_90 = arith.constant dense<0.000000e+00> : vector<16xf32>
    %148 = vector.multi_reduction <add>, %147, %cst_90 [0] : vector<16x16xf32> to vector<16xf32>
    %149 = vector.shape_cast %148 : vector<16xf32> to vector<1x16xf32>
    %150 = vector.broadcast %145 : vector<16x1xf32> to vector<16x16xf32>
    %151 = arith.mulf %140, %150 : vector<16x16xf32>
    %152 = vector.broadcast %149 : vector<1x16xf32> to vector<16x16xf32>
    %153 = arith.mulf %151, %152 : vector<16x16xf32>
    %c0_91 = arith.constant 0 : index
    %c0_92 = arith.constant 0 : index
    %154 = vector.load %arg19[%c0_91, %c0_92] : memref<128x128xbf16, #tpu.memory_space<vmem>>, vector<128x128xbf16>
    %155 = arith.truncf %101 : vector<16x128xf32> to vector<16x128xbf16>
    %cst_93 = arith.constant dense<0.000000e+00> : vector<16x128xf32>
    %156 = tpu.matmul %155, %154, %cst_93 {dimension_numbers = #tpu.dot_dimension_numbers<[1], [0], [0], [1], [0, 0, 1, 1], [], []>} : vector<16x128xbf16>, vector<128x128xbf16>, vector<16x128xf32> -> vector<16x128xf32>
    %cst_94 = arith.constant dense<0.000000e+00> : vector<16x128xf32>
    %157 = tpu.matmul %153, %156, %cst_94 {dimension_numbers = #tpu.dot_dimension_numbers<[1], [0], [0], [1], [0, 0, 1, 1], [], []>} : vector<16x16xf32>, vector<16x128xf32>, vector<16x128xf32> -> vector<16x128xf32>
    %cst_95 = arith.constant 0.000000e+00 : f32
    %158 = vector.broadcast %cst_95 : f32 to vector<16x128xf32>
    %159 = arith.maximumf %157, %158 : vector<16x128xf32>
    %c0_96 = arith.constant 0 : index
    %c0_97 = arith.constant 0 : index
    %160 = vector.load %arg20[%c0_96, %c0_97] : memref<128x128xbf16, #tpu.memory_space<vmem>>, vector<128x128xbf16>
    %161 = arith.truncf %159 : vector<16x128xf32> to vector<16x128xbf16>
    %cst_98 = arith.constant dense<0.000000e+00> : vector<16x128xf32>
    %162 = tpu.matmul %161, %160, %cst_98 {dimension_numbers = #tpu.dot_dimension_numbers<[1], [0], [0], [1], [0, 0, 1, 1], [], []>} : vector<16x128xbf16>, vector<128x128xbf16>, vector<16x128xf32> -> vector<16x128xf32>
    %cst_99 = arith.constant dense<0.000000e+00> : vector<16x128xf32>
    %163 = tpu.matmul %153, %162, %cst_99 {dimension_numbers = #tpu.dot_dimension_numbers<[1], [0], [0], [1], [0, 0, 1, 1], [], []>} : vector<16x16xf32>, vector<16x128xf32>, vector<16x128xf32> -> vector<16x128xf32>
    %cst_100 = arith.constant 0.000000e+00 : f32
    %164 = vector.broadcast %cst_100 : f32 to vector<16x128xf32>
    %165 = arith.maximumf %163, %164 : vector<16x128xf32>
    %166 = vector.extract_strided_slice %165 {offsets = [0, 0], sizes = [8, 128], strides = [1, 1]} : vector<16x128xf32> to vector<8x128xf32>
    %c0_101 = arith.constant 0 : index
    %c0_102 = arith.constant 0 : index
    %167 = vector.load %arg21[%c0_101, %c0_102] : memref<128x128xbf16, #tpu.memory_space<vmem>>, vector<128x128xbf16>
    %168 = arith.truncf %166 : vector<8x128xf32> to vector<8x128xbf16>
    %cst_103 = arith.constant dense<0.000000e+00> : vector<8x128xf32>
    %169 = tpu.matmul %168, %167, %cst_103 {dimension_numbers = #tpu.dot_dimension_numbers<[1], [0], [0], [1], [0, 0, 1, 1], [], []>} : vector<8x128xbf16>, vector<128x128xbf16>, vector<8x128xf32> -> vector<8x128xf32>
    %c0_104 = arith.constant 0 : index
    %c0_105 = arith.constant 0 : index
    %170 = vector.load %arg22[%c0_104, %c0_105] : memref<1x128xf32, #tpu.memory_space<vmem>>, vector<1x128xf32>
    %171 = vector.broadcast %170 : vector<1x128xf32> to vector<8x128xf32>
    %172 = arith.addf %169, %171 : vector<8x128xf32>
    %173 = math.tanh %172 : vector<8x128xf32>
    %c0_106 = arith.constant 0 : index
    %c0_107 = arith.constant 0 : index
    %174 = vector.load %arg29[%c0_106, %c0_107] : memref<8x128xf32, #tpu.memory_space<vmem>>, vector<8x128xf32>
    tpu.vector_store %arg29[%c0_106, %c0_107], %173 {strides = array<i32>} : memref<8x128xf32, #tpu.memory_space<vmem>>, vector<8x128xf32>,
    %175 = vector.extract_strided_slice %165 {offsets = [8, 0], sizes = [8, 128], strides = [1, 1]} : vector<16x128xf32> to vector<8x128xf32>
    %c0_108 = arith.constant 0 : index
    %c0_109 = arith.constant 0 : index
    %176 = vector.load %arg23[%c0_108, %c0_109] : memref<128x128xbf16, #tpu.memory_space<vmem>>, vector<128x128xbf16>
    %177 = arith.truncf %175 : vector<8x128xf32> to vector<8x128xbf16>
    %cst_110 = arith.constant dense<0.000000e+00> : vector<8x128xf32>
    %178 = tpu.matmul %177, %176, %cst_110 {dimension_numbers = #tpu.dot_dimension_numbers<[1], [0], [0], [1], [0, 0, 1, 1], [], []>} : vector<8x128xbf16>, vector<128x128xbf16>, vector<8x128xf32> -> vector<8x128xf32>
    %c0_111 = arith.constant 0 : index
    %c0_112 = arith.constant 0 : index
    %179 = vector.load %arg24[%c0_111, %c0_112] : memref<1x128xf32, #tpu.memory_space<vmem>>, vector<1x128xf32>
    %180 = vector.broadcast %179 : vector<1x128xf32> to vector<8x128xf32>
    %181 = arith.addf %178, %180 : vector<8x128xf32>
    %182 = math.tanh %181 : vector<8x128xf32>
    %c0_113 = arith.constant 0 : index
    %c0_114 = arith.constant 0 : index
    %183 = vector.load %arg30[%c0_113, %c0_114] : memref<8x128xf32, #tpu.memory_space<vmem>>, vector<8x128xf32>
    tpu.vector_store %arg30[%c0_113, %c0_114], %182 {strides = array<i32>} : memref<8x128xf32, #tpu.memory_space<vmem>>, vector<8x128xf32>,
    return
  }
}

</mosaic_0001>

<llo_original>
// kernel: tile.9
$region0: #{tile.9}
  %s0 = inlined_call_operand.vmem [shape: f32[2,8,2,8], index: 0, kind: input, shape index: {}]
  %s1 = inlined_call_operand.vmem [shape: f32[16,16], index: 1, kind: output, shape index: {}]
  $region1: #{tile.9} parent=0
    #allocation0 [shape = 'u8[65536]{0}', space=vmem, size = 0x10000, scoped, tag = 'scoped mem for input reshape']
    %s3 = ssub.s32 4, 1
    %s4 = scalar_lea.vmem %s0, 30
    %v5 = vld [vmem:[%s4] sm:%s3]
    %s6 = scalar_lea.vmem [#allocation0], 120
    %7 = vst [vmem:[%s6] sm:%s3] %v5
    %s8 = scalar_lea.vmem %s0, 28
    %v9 = vld [vmem:[%s8] sm:%s3]
    %s10 = scalar_lea.vmem [#allocation0], 112
    %11 = vst [vmem:[%s10] sm:%s3] %v9
    %s12 = scalar_lea.vmem %s0, 26
    %v13 = vld [vmem:[%s12] sm:%s3]
    %s14 = scalar_lea.vmem [#allocation0], 104
    %15 = vst [vmem:[%s14] sm:%s3] %v13
    %s16 = scalar_lea.vmem %s0, 24
    %v17 = vld [vmem:[%s16] sm:%s3]
    %s18 = scalar_lea.vmem [#allocation0], 96
    %19 = vst [vmem:[%s18] sm:%s3] %v17
    %s20 = scalar_lea.vmem %s0, 22
    %v21 = vld [vmem:[%s20] sm:%s3]
    %s22 = scalar_lea.vmem [#allocation0], 88
    %23 = vst [vmem:[%s22] sm:%s3] %v21
    %s24 = scalar_lea.vmem %s0, 20
    %v25 = vld [vmem:[%s24] sm:%s3]
    %s26 = scalar_lea.vmem [#allocation0], 80
    %27 = vst [vmem:[%s26] sm:%s3] %v25
    %s28 = scalar_lea.vmem %s0, 18
    %v29 = vld [vmem:[%s28] sm:%s3]
    %s30 = scalar_lea.vmem [#allocation0], 72
    %31 = vst [vmem:[%s30] sm:%s3] %v29
    %s32 = scalar_lea.vmem %s0, 16
    %v33 = vld [vmem:[%s32] sm:%s3]
    %s34 = scalar_lea.vmem [#allocation0], 64
    %35 = vst [vmem:[%s34] sm:%s3] %v33
    %s36 = scalar_lea.vmem %s0, 14
    %v37 = vld [vmem:[%s36] sm:%s3]
    %s38 = scalar_lea.vmem [#allocation0], 56
    %39 = vst [vmem:[%s38] sm:%s3] %v37
    %s40 = scalar_lea.vmem %s0, 12
    %v41 = vld [vmem:[%s40] sm:%s3]
    %s42 = scalar_lea.vmem [#allocation0], 48
    %43 = vst [vmem:[%s42] sm:%s3] %v41
    %s44 = scalar_lea.vmem %s0, 10
    %v45 = vld [vmem:[%s44] sm:%s3]
    %s46 = scalar_lea.vmem [#allocation0], 40
    %47 = vst [vmem:[%s46] sm:%s3] %v45
    %s48 = scalar_lea.vmem %s0, 8
    %v49 = vld [vmem:[%s48] sm:%s3]
    %s50 = scalar_lea.vmem [#allocation0], 32
    %51 = vst [vmem:[%s50] sm:%s3] %v49
    %s52 = scalar_lea.vmem %s0, 6
    %v53 = vld [vmem:[%s52] sm:%s3]
    %s54 = scalar_lea.vmem [#allocation0], 24
    %55 = vst [vmem:[%s54] sm:%s3] %v53
    %s56 = scalar_lea.vmem %s0, 4
    %v57 = vld [vmem:[%s56] sm:%s3]
    %s58 = scalar_lea.vmem [#allocation0], 16
    %59 = vst [vmem:[%s58] sm:%s3] %v57
    %s60 = scalar_lea.vmem %s0, 2
    %v61 = vld [vmem:[%s60] sm:%s3]
    %s62 = scalar_lea.vmem [#allocation0], 8
    %63 = vst [vmem:[%s62] sm:%s3] %v61
    %v64 = vld [vmem:[%s0] sm:%s3]
    %65 = vst [vmem:[#allocation0] sm:%s3] %v64
    %v66 = vld [vmem:[#allocation0] ss:$8 sm:$0xf]
    %v67 = vld [vmem:[#allocation0] ss:$8 sm:$0xf0]
    %vm68 = vcmask 1047556
    %v69 = vsel %vm68, %v67, %v66
    %vm70 = vcmask 64512
    %71 = vst.msk [vmem:[%s1] sm:$0xff] %vm70, %v69
    %s72 = scalar_lea.vmem [#allocation0], 64
    %v73 = vld [vmem:[%s72] ss:$8 sm:$0xf]
    %s74 = scalar_lea.vmem [#allocation0], 64
    %v75 = vld [vmem:[%s74] ss:$8 sm:$0xf0]
    %vm76 = vcmask 1047556
    %v77 = vsel %vm76, %v75, %v73
    %vm78 = vcmask 64512
    %s79 = scalar_lea.vmem %s1, 8
    %80 = vst.msk [vmem:[%s79] sm:$0xff] %vm78, %v77
    %s81 = scalar_lea.vmem [#allocation0], 1
    %v82 = vld [vmem:[%s81] ss:$8 sm:$0xf]
    %s83 = scalar_lea.vmem [#allocation0], 1
    %v84 = vld [vmem:[%s83] ss:$8 sm:$0xf0]
    %vm85 = vcmask 1047556
    %v86 = vsel %vm85, %v84, %v82
    %87 = vrot.lane.b32.xlu0 %v86, 8
    %v88 = vpop.permute.xlu0 %87
    %vm89 = vcmask 130112
    %90 = vst.msk [vmem:[%s1] sm:$0xff] %vm89, %v88
    %s91 = scalar_lea.vmem [#allocation0], 65
    %v92 = vld [vmem:[%s91] ss:$8 sm:$0xf]
    %s93 = scalar_lea.vmem [#allocation0], 65
    %v94 = vld [vmem:[%s93] ss:$8 sm:$0xf0]
    %vm95 = vcmask 1047556
    %v96 = vsel %vm95, %v94, %v92
    %97 = vrot.lane.b32.xlu0 %v96, 8
    %v98 = vpop.permute.xlu0 %97
    %vm99 = vcmask 130112
    %s100 = scalar_lea.vmem %s1, 8
    %101 = vst.msk [vmem:[%s100] sm:$0xff] %vm99, %v98

// kernel: tile.8
$region0: #{tile.8}
  #allocation0 [shape = 's32[1]{0}', space=sflag, size = 0x4, scoped, tag = 'scoped memory for tile.8']
  %s0 = inlined_call_operand.vmem [shape: f32[8,8], index: 0, kind: input, shape index: {}]
  %s1 = inlined_call_operand.vmem [shape: f32[2,8,2,8], index: 1, kind: output, shape index: {}]
  // Predicated region
  $region2: #{tile.8} parent=0 // pred_check
    _
  $region3: #{tile.8} parent=0 // pred_check_branch
    %3 = sbr.rel (0) target = $region5
  $region4: #{tile.8} parent=0 // pred_region
    _
  $region5: #{tile.8} parent=0 // pred_fallthru
    _
  %v4 = vld [vmem:[%s0] ss:$0 sm:$0xff]
  %5 = vst [vmem:[%s1] sm:$0x3] %v4
  %s6 = scalar_lea.vmem %s1, 16
  %7 = vst [vmem:[%s6] sm:$0x3] %v4
  %s8 = scalar_lea.vmem %s0, 1
  %v9 = vld [vmem:[%s8] ss:$0 sm:$0xff]
  %s10 = scalar_lea.vmem %s1, 2
  %11 = vst [vmem:[%s10] sm:$0x3] %v9
  %s12 = scalar_lea.vmem %s1, 18
  %13 = vst [vmem:[%s12] sm:$0x3] %v9
  %s14 = scalar_lea.vmem %s0, 2
  %v15 = vld [vmem:[%s14] ss:$0 sm:$0xff]
  %s16 = scalar_lea.vmem %s1, 4
  %17 = vst [vmem:[%s16] sm:$0x3] %v15
  %s18 = scalar_lea.vmem %s1, 20
  %19 = vst [vmem:[%s18] sm:$0x3] %v15
  %s20 = scalar_lea.vmem %s0, 3
  %v21 = vld [vmem:[%s20] ss:$0 sm:$0xff]
  %s22 = scalar_lea.vmem %s1, 6
  %23 = vst [vmem:[%s22] sm:$0x3] %v21
  %s24 = scalar_lea.vmem %s1, 22
  %25 = vst [vmem:[%s24] sm:$0x3] %v21
  %s26 = scalar_lea.vmem %s0, 4
  %v27 = vld [vmem:[%s26] ss:$0 sm:$0xff]
  %s28 = scalar_lea.vmem %s1, 8
  %29 = vst [vmem:[%s28] sm:$0x3] %v27
  %s30 = scalar_lea.vmem %s1, 24
  %31 = vst [vmem:[%s30] sm:$0x3] %v27
  %s32 = scalar_lea.vmem %s0, 5
  %v33 = vld [vmem:[%s32] ss:$0 sm:$0xff]
  %s34 = scalar_lea.vmem %s1, 10
  %35 = vst [vmem:[%s34] sm:$0x3] %v33
  %s36 = scalar_lea.vmem %s1, 26
  %37 = vst [vmem:[%s36] sm:$0x3] %v33
  %s38 = scalar_lea.vmem %s0, 6
  %v39 = vld [vmem:[%s38] ss:$0 sm:$0xff]
  %s40 = scalar_lea.vmem %s1, 12
  %41 = vst [vmem:[%s40] sm:$0x3] %v39
  %s42 = scalar_lea.vmem %s1, 28
  %43 = vst [vmem:[%s42] sm:$0x3] %v39
  %s44 = scalar_lea.vmem %s0, 7
  %v45 = vld [vmem:[%s44] ss:$0 sm:$0xff]
  %s46 = scalar_lea.vmem %s1, 14
  %47 = vst [vmem:[%s46] sm:$0x3] %v45
  %s48 = scalar_lea.vmem %s1, 30
  %49 = vst [vmem:[%s48] sm:$0x3] %v45

// kernel: teann_forward.2
$region0: #{teann_forward.2}
  #allocation0 [shape = 'u32[]', space=smem, size = 0x4, offset = 0x4, fixed_abs, tag = 'smem constant byte address 0x4 - core index']
  #allocation1 [shape = 'u32[72,128]{1,0:T(1,128)}', space=vmem, size = 0x9000, scoped, tag = 'internal scratch']
  #allocation2 [shape = 'f32[16,128]{1,0:T(8,128)}', space=vmem, size = 0x2000, scoped, tag = 'scratch operand']
  #allocation11 [shape = 's32[]', space=sflag, size = 0x4, offset = 0, fixed_abs, tag = 'sflag constant byte address 0x0 - dummy sync flag']
  %s0 = inlined_call_operand.vmem [shape: f32[16,96], index: 0, kind: input, shape index: {}]
  %s1 = inlined_call_operand.hbm [shape: bf16[96,2048], index: 1, kind: input, shape index: {}]
  %s2 = inlined_call_operand.hbm [shape: f32[2,2048], index: 2, kind: input, shape index: {}]
  %s3 = inlined_call_operand.hbm [shape: f32[2,2048], index: 3, kind: input, shape index: {}]
  %s4 = inlined_call_operand.hbm [shape: f32[2,2048], index: 4, kind: input, shape index: {}]
  %s5 = inlined_call_operand.hbm [shape: bf16[2,2048,128], index: 5, kind: input, shape index: {}]
  %s6 = inlined_call_operand.vmem [shape: f32[2,128], index: 6, kind: input, shape index: {}]
  %s7 = inlined_call_operand.vmem [shape: f32[2,128], index: 7, kind: input, shape index: {}]
  %s8 = inlined_call_operand.vmem [shape: f32[2,128], index: 8, kind: input, shape index: {}]
  %s9 = inlined_call_operand.vmem [shape: f32[16,128], index: 9, kind: output, shape index: {}]
  %s10 = sld [smem:[#allocation0]]
  $region97: #{teann_forward.2} parent=0
    _
  %s12 = ssub.s32 1, %s10
  %s13 = scalar_select 0, %s12, %s10
  $region1: #{teann_forward.2} parent=0
    #allocation3 [shape = 'u8[196608]{0}', space=vmem, size = 0x30000, scoped, tag = 'input window, operand 1']
    #allocation4 [shape = 's32[2]{0}', space=sflag, size = 0x8, scoped, tag = 'scoped memory for teann_forward.2']
    #allocation5 [shape = 'u8[8192]{0}', space=vmem, size = 0x2000, scoped, tag = 'input window, operand 2']
    #allocation6 [shape = 's32[2]{0}', space=sflag, size = 0x8, scoped, tag = 'scoped memory for teann_forward.2']
    #allocation7 [shape = 'u8[8192]{0}', space=vmem, size = 0x2000, scoped, tag = 'input window, operand 3']
    #allocation8 [shape = 'u8[8192]{0}', space=vmem, size = 0x2000, scoped, tag = 'input window, operand 4']
    #allocation9 [shape = 's32[2]{0}', space=sflag, size = 0x8, scoped, tag = 'scoped memory for teann_forward.2']
    #allocation10 [shape = 'u8[524288]{0}', space=vmem, size = 0x80000, scoped, tag = 'input window, operand 5']
    %14 = vsyncpa [#allocation4], 0
    %s15 = scalar_lea.sflag [#allocation4], 1
    %16 = vsyncpa %s15, 0
    %17 = vsyncpa [#allocation6], 0
    %s18 = scalar_lea.sflag [#allocation6], 1
    %19 = vsyncpa %s18, 0
    %20 = vsyncpa [#allocation9], 0
    %s21 = scalar_lea.sflag [#allocation9], 1
    %22 = vsyncpa %s21, 0
    loop: start=0, step=1, limit=6
    $region2: #{teann_forward.2} parent=1 // loop_pre_header
      _
    $region3: #{teann_forward.2} parent=1 // loop_header
      %s24 = sphi 0, %s28
      %p25 = scmp.ge.s32.totalorder %s24, 6
      %s32 = sphi 0, %s32
      %s34 = sphi 0, %s32
      %s35 = sphi 0, %s34
      %s49 = sphi 0, %s35
      %s55 = sphi 0, %s57
      %s58 = sphi 0, %s55
      %s59 = sphi 0, %s58
      %s75 = sphi 0, %s59
      %s81 = sphi 0, %s83
      %s84 = sphi 0, %s81
      %s85 = sphi 0, %s84
      %s101 = sphi 0, %s85
      %s107 = sphi 0, %s109
      %s110 = sphi 0, %s107
      %s111 = sphi 0, %s110
      %s127 = sphi 0, %s111
      %s133 = sphi 0, %s135
      %s136 = sphi 0, %s133
      %s137 = sphi 0, %s136
      %s153 = sphi 0, %s137
      %s159 = sphi 0, %s161
      %s162 = sphi 0, %s159
      %s163 = sphi 0, %s162
      %s179 = sphi 0, %s163
      %s183 = sphi 0, %s183
      %s185 = sphi 0, %s183
      %s186 = sphi 0, %s185
      %s200 = sphi 0, %s186
      %s204 = sphi 0, %s204
      %s206 = sphi 0, %s204
      %s207 = sphi 0, %s206
      %s221 = sphi 0, %s207
      %s225 = sphi 0, %s225
      %s227 = sphi 0, %s225
      %s228 = sphi 0, %s227
      %s242 = sphi 0, %s228
      %s246 = sphi 0, %s246
      %s248 = sphi 0, %s246
      %s249 = sphi 0, %s248
      %s263 = sphi 0, %s249
    $region4: #{teann_forward.2} parent=1 // loop_header_branch
      %27 = sbr.rel (%p25) target = $region8
    $region5: #{teann_forward.2} parent=1 // loop_body
      %s29 = ssub.s32 %s24, 1
      %s30 = ssub.s32 %s24, 2
      %s31 = sadd.s32 %s24, 1
      %s33 = sadd.s32 %s32, 1
      %p36 = scmp.eq.s32.totalorder %s24, 3
      %p37 = scmp.ne.s32.totalorder %s32, %s34
      %p38 = scmp.eq.s32.totalorder %s24, 0
      %p39 = por %p37, %p38
      %p40 = scmp.ne.s32.totalorder %s32, %s34
      %p41 = scmp.eq.s32.totalorder %s29, 3
      %p42 = por %p40, %p41
      %p43 = scmp.ne.s32.totalorder %s34, %s35
      %p44 = scmp.eq.s32.totalorder %s29, 0
      %p45 = por %p43, %p44
      %p46 = scmp.ne.s32.totalorder %s34, %s35
      %p47 = scmp.eq.s32.totalorder %s30, 3
      %p48 = por %p46, %p47
      %p50 = scmp.ne.s32.totalorder %s35, %s49
      %p51 = scmp.eq.s32.totalorder %s30, 0
      %p52 = por %p50, %p51
      %s53 = ssub.s32 %s24, %s31
      %p54 = scmp.eq.s32.totalorder %s53, 0
      %s56 = sadd.s32 %s55, 1
      %s57 = scalar_select %p54, %s55, %s56
      %p60 = pneg %p54
      %p61 = scmp.eq.s32.totalorder %s24, 3
      %p62 = por %p60, %p61
      %p63 = scmp.ne.s32.totalorder %s55, %s58
      %p64 = scmp.eq.s32.totalorder %s24, 0
      %p65 = por %p63, %p64
      %p66 = scmp.ne.s32.totalorder %s55, %s58
      %p67 = scmp.eq.s32.totalorder %s29, 3
      %p68 = por %p66, %p67
      %p69 = scmp.ne.s32.totalorder %s58, %s59
      %p70 = scmp.eq.s32.totalorder %s29, 0
      %p71 = por %p69, %p70
      %p72 = scmp.ne.s32.totalorder %s58, %s59
      %p73 = scmp.eq.s32.totalorder %s30, 3
      %p74 = por %p72, %p73
      %p76 = scmp.ne.s32.totalorder %s59, %s75
      %p77 = scmp.eq.s32.totalorder %s30, 0
      %p78 = por %p76, %p77
      %s79 = ssub.s32 %s24, %s31
      %p80 = scmp.eq.s32.totalorder %s79, 0
      %s82 = sadd.s32 %s81, 1
      %s83 = scalar_select %p80, %s81, %s82
      %p86 = pneg %p80
      %p87 = scmp.eq.s32.totalorder %s24, 3
      %p88 = por %p86, %p87
      %p89 = scmp.ne.s32.totalorder %s81, %s84
      %p90 = scmp.eq.s32.totalorder %s24, 0
      %p91 = por %p89, %p90
      %p92 = scmp.ne.s32.totalorder %s81, %s84
      %p93 = scmp.eq.s32.totalorder %s29, 3
      %p94 = por %p92, %p93
      %p95 = scmp.ne.s32.totalorder %s84, %s85
      %p96 = scmp.eq.s32.totalorder %s29, 0
      %p97 = por %p95, %p96
      %p98 = scmp.ne.s32.totalorder %s84, %s85
      %p99 = scmp.eq.s32.totalorder %s30, 3
      %p100 = por %p98, %p99
      %p102 = scmp.ne.s32.totalorder %s85, %s101
      %p103 = scmp.eq.s32.totalorder %s30, 0
      %p104 = por %p102, %p103
      %s105 = ssub.s32 %s24, %s31
      %p106 = scmp.eq.s32.totalorder %s105, 0
      %s108 = sadd.s32 %s107, 1
      %s109 = scalar_select %p106, %s107, %s108
      %p112 = pneg %p106
      %p113 = scmp.eq.s32.totalorder %s24, 3
      %p114 = por %p112, %p113
      %p115 = scmp.ne.s32.totalorder %s107, %s110
      %p116 = scmp.eq.s32.totalorder %s24, 0
      %p117 = por %p115, %p116
      %p118 = scmp.ne.s32.totalorder %s107, %s110
      %p119 = scmp.eq.s32.totalorder %s29, 3
      %p120 = por %p118, %p119
      %p121 = scmp.ne.s32.totalorder %s110, %s111
      %p122 = scmp.eq.s32.totalorder %s29, 0
      %p123 = por %p121, %p122
      %p124 = scmp.ne.s32.totalorder %s110, %s111
      %p125 = scmp.eq.s32.totalorder %s30, 3
      %p126 = por %p124, %p125
      %p128 = scmp.ne.s32.totalorder %s111, %s127
      %p129 = scmp.eq.s32.totalorder %s30, 0
      %p130 = por %p128, %p129
      %s131 = ssub.s32 %s24, %s31
      %p132 = scmp.eq.s32.totalorder %s131, 0
      %s134 = sadd.s32 %s133, 1
      %s135 = scalar_select %p132, %s133, %s134
      %p138 = pneg %p132
      %p139 = scmp.eq.s32.totalorder %s24, 3
      %p140 = por %p138, %p139
      %p141 = scmp.ne.s32.totalorder %s133, %s136
      %p142 = scmp.eq.s32.totalorder %s24, 0
      %p143 = por %p141, %p142
      %p144 = scmp.ne.s32.totalorder %s133, %s136
      %p145 = scmp.eq.s32.totalorder %s29, 3
      %p146 = por %p144, %p145
      %p147 = scmp.ne.s32.totalorder %s136, %s137
      %p148 = scmp.eq.s32.totalorder %s29, 0
      %p149 = por %p147, %p148
      %p150 = scmp.ne.s32.totalorder %s136, %s137
      %p151 = scmp.eq.s32.totalorder %s30, 3
      %p152 = por %p150, %p151
      %p154 = scmp.ne.s32.totalorder %s137, %s153
      %p155 = scmp.eq.s32.totalorder %s30, 0
      %p156 = por %p154, %p155
      %s157 = ssub.s32 %s24, %s31
      %p158 = scmp.eq.s32.totalorder %s157, 0
      %s160 = sadd.s32 %s159, 1
      %s161 = scalar_select %p158, %s159, %s160
      %p164 = pneg %p158
      %p165 = scmp.eq.s32.totalorder %s24, 3
      %p166 = por %p164, %p165
      %p167 = scmp.ne.s32.totalorder %s159, %s162
      %p168 = scmp.eq.s32.totalorder %s24, 0
      %p169 = por %p167, %p168
      %p170 = scmp.ne.s32.totalorder %s159, %s162
      %p171 = scmp.eq.s32.totalorder %s29, 3
      %p172 = por %p170, %p171
      %p173 = scmp.ne.s32.totalorder %s162, %s163
      %p174 = scmp.eq.s32.totalorder %s29, 0
      %p175 = por %p173, %p174
      %p176 = scmp.ne.s32.totalorder %s162, %s163
      %p177 = scmp.eq.s32.totalorder %s30, 3
      %p178 = por %p176, %p177
      %p180 = scmp.ne.s32.totalorder %s163, %s179
      %p181 = scmp.eq.s32.totalorder %s30, 0
      %p182 = por %p180, %p181
      %s184 = sadd.s32 %s183, 1
      %p187 = scmp.eq.s32.totalorder %s24, 3
      %p188 = scmp.ne.s32.totalorder %s183, %s185
      %p189 = scmp.eq.s32.totalorder %s24, 0
      %p190 = por %p188, %p189
      %p191 = scmp.ne.s32.totalorder %s183, %s185
      %p192 = scmp.eq.s32.totalorder %s29, 3
      %p193 = por %p191, %p192
      %p194 = scmp.ne.s32.totalorder %s185, %s186
      %p195 = scmp.eq.s32.totalorder %s29, 0
      %p196 = por %p194, %p195
      %p197 = scmp.ne.s32.totalorder %s185, %s186
      %p198 = scmp.eq.s32.totalorder %s30, 3
      %p199 = por %p197, %p198
      %p201 = scmp.ne.s32.totalorder %s186, %s200
      %p202 = scmp.eq.s32.totalorder %s30, 0
      %p203 = por %p201, %p202
      %s205 = sadd.s32 %s204, 1
      %p208 = scmp.eq.s32.totalorder %s24, 3
      %p209 = scmp.ne.s32.totalorder %s204, %s206
      %p210 = scmp.eq.s32.totalorder %s24, 0
      %p211 = por %p209, %p210
      %p212 = scmp.ne.s32.totalorder %s204, %s206
      %p213 = scmp.eq.s32.totalorder %s29, 3
      %p214 = por %p212, %p213
      %p215 = scmp.ne.s32.totalorder %s206, %s207
      %p216 = scmp.eq.s32.totalorder %s29, 0
      %p217 = por %p215, %p216
      %p218 = scmp.ne.s32.totalorder %s206, %s207
      %p219 = scmp.eq.s32.totalorder %s30, 3
      %p220 = por %p218, %p219
      %p222 = scmp.ne.s32.totalorder %s207, %s221
      %p223 = scmp.eq.s32.totalorder %s30, 0
      %p224 = por %p222, %p223
      %s226 = sadd.s32 %s225, 1
      %p229 = scmp.eq.s32.totalorder %s24, 3
      %p230 = scmp.ne.s32.totalorder %s225, %s227
      %p231 = scmp.eq.s32.totalorder %s24, 0
      %p232 = por %p230, %p231
      %p233 = scmp.ne.s32.totalorder %s225, %s227
      %p234 = scmp.eq.s32.totalorder %s29, 3
      %p235 = por %p233, %p234
      %p236 = scmp.ne.s32.totalorder %s227, %s228
      %p237 = scmp.eq.s32.totalorder %s29, 0
      %p238 = por %p236, %p237
      %p239 = scmp.ne.s32.totalorder %s227, %s228
      %p240 = scmp.eq.s32.totalorder %s30, 3
      %p241 = por %p239, %p240
      %p243 = scmp.ne.s32.totalorder %s228, %s242
      %p244 = scmp.eq.s32.totalorder %s30, 0
      %p245 = por %p243, %p244
      %s247 = sadd.s32 %s246, 1
      %p250 = scmp.eq.s32.totalorder %s24, 3
      %p251 = scmp.ne.s32.totalorder %s246, %s248
      %p252 = scmp.eq.s32.totalorder %s24, 0
      %p253 = por %p251, %p252
      %p254 = scmp.ne.s32.totalorder %s246, %s248
      %p255 = scmp.eq.s32.totalorder %s29, 3
      %p256 = por %p254, %p255
      %p257 = scmp.ne.s32.totalorder %s248, %s249
      %p258 = scmp.eq.s32.totalorder %s29, 0
      %p259 = por %p257, %p258
      %p260 = scmp.ne.s32.totalorder %s248, %s249
      %p261 = scmp.eq.s32.totalorder %s30, 3
      %p262 = por %p260, %p261
      %p264 = scmp.ne.s32.totalorder %s249, %s263
      %p265 = scmp.eq.s32.totalorder %s30, 0
      %p266 = por %p264, %p265
      %p267 = scmp.le.s32.totalorder 1, %s24
      %p268 = scmp.lt.s32.totalorder %s24, 5
      %p269 = pnand %p267, %p268
      %p270 = pneg %p269
      // Predicated region
      $region9: #{teann_forward.2} parent=5 // pred_check
        _
      $region10: #{teann_forward.2} parent=5 // pred_check_branch
        %272 = sbr.rel (%p269) target = $region12
      $region11: #{teann_forward.2} parent=5 // pred_region
        %s273 = ssub.s32 %s24, 1
        // Predicated region
        $region13: #{teann_forward.2} parent=11 // pred_check
          %p274 = pneg %p45
        $region14: #{teann_forward.2} parent=11 // pred_check_branch
          %276 = sbr.rel (%p274) target = $region16
        $region15: #{teann_forward.2} parent=11 // pred_region
          _
        $region16: #{teann_forward.2} parent=11 // pred_fallthru
          _
        // Predicated region
        $region17: #{teann_forward.2} parent=11 // pred_check
          %p277 = pneg %p196
        $region18: #{teann_forward.2} parent=11 // pred_check_branch
          %279 = sbr.rel (%p277) target = $region20
        $region19: #{teann_forward.2} parent=11 // pred_region
          _
        $region20: #{teann_forward.2} parent=11 // pred_fallthru
          _
        // Predicated region
        $region21: #{teann_forward.2} parent=11 // pred_check
          %p280 = pneg %p217
        $region22: #{teann_forward.2} parent=11 // pred_check_branch
          %282 = sbr.rel (%p280) target = $region24
        $region23: #{teann_forward.2} parent=11 // pred_region
          _
        $region24: #{teann_forward.2} parent=11 // pred_fallthru
          _
        // Predicated region
        $region25: #{teann_forward.2} parent=11 // pred_check
          %p283 = pneg %p238
        $region26: #{teann_forward.2} parent=11 // pred_check_branch
          %285 = sbr.rel (%p283) target = $region28
        $region27: #{teann_forward.2} parent=11 // pred_region
          _
        $region28: #{teann_forward.2} parent=11 // pred_fallthru
          _
      $region12: #{teann_forward.2} parent=5 // pred_fallthru
        _
      %p286 = scmp.lt.s32.totalorder %s24, 4
      // Predicated region
      $region29: #{teann_forward.2} parent=5 // pred_check
        %p287 = pneg %p286
      $region30: #{teann_forward.2} parent=5 // pred_check_branch
        %289 = sbr.rel (%p287) target = $region32
      $region31: #{teann_forward.2} parent=5 // pred_region
        // Predicated region
        $region33: #{teann_forward.2} parent=31 // pred_check
          %p290 = pneg %p65
        $region34: #{teann_forward.2} parent=31 // pred_check_branch
          %292 = sbr.rel (%p290) target = $region36
        $region35: #{teann_forward.2} parent=31 // pred_region
          %s293 = sand.u32 %s55, 1
          %s294 = scalar_lea.sflag [#allocation4], %s293
          %s295 = sand.u32 %s55, 1
          %s296 = smul.addr %s295, 192
          %s297 = scalar_lea.vmem [#allocation3], %s296
          %s298 = smul.u32 4, %s24
          %300 = vsyncadd %s294, 0
          %s301 = smul.addr %s298, 4
          %s302 = scalar_lea.hbm %s1, %s301
          %s303 = sshll.u32 %s302, 4
          %s304 = int_to_ptr.hbm [resolvable:$true] %s303
          %s305 = sshll.u32 %s297, 4
          %s306 = int_to_ptr.vmem [resolvable:$true] %s305
          %311 = dma.hbm_to_vmem [thread:$0]  %s304, 3072, %s306, %s294, 1024, 256, 16
        $region36: #{teann_forward.2} parent=31 // pred_fallthru
          _
        // Predicated region
        $region37: #{teann_forward.2} parent=31 // pred_check
          %p312 = pneg %p91
        $region38: #{teann_forward.2} parent=31 // pred_check_branch
          %314 = sbr.rel (%p312) target = $region40
        $region39: #{teann_forward.2} parent=31 // pred_region
          %s315 = sand.u32 %s24, 1
          %s316 = scalar_lea.sflag [#allocation6], %s315
          %s317 = sand.u32 %s81, 1
          %s318 = smul.addr %s317, 8
          %s319 = scalar_lea.vmem [#allocation5], %s318
          %s320 = smul.u32 4, %s24
          %322 = vsyncadd %s316, 0
          %s323 = smul.addr %s320, 2
          %s324 = scalar_lea.hbm %s2, %s323
          %s326 = sshll.u32 %s324, 4
          %s327 = int_to_ptr.hbm [resolvable:$true] %s326
          %s328 = sshll.u32 %s319, 4
          %s329 = int_to_ptr.vmem [resolvable:$true] %s328
          %331 = dma.hbm_to_vmem [thread:$0]  %s327, 128, %s329, %s316
        $region40: #{teann_forward.2} parent=31 // pred_fallthru
          _
        // Predicated region
        $region41: #{teann_forward.2} parent=31 // pred_check
          %p332 = pneg %p117
        $region42: #{teann_forward.2} parent=31 // pred_check_branch
          %334 = sbr.rel (%p332) target = $region44
        $region43: #{teann_forward.2} parent=31 // pred_region
          %s335 = sand.u32 %s24, 1
          %s336 = scalar_lea.sflag [#allocation6], %s335
          %s337 = sand.u32 %s107, 1
          %s338 = smul.addr %s337, 8
          %s339 = scalar_lea.vmem [#allocation7], %s338
          %s340 = smul.u32 4, %s24
          %342 = vsyncadd %s336, 0
          %s343 = smul.addr %s340, 2
          %s344 = scalar_lea.hbm %s3, %s343
          %s346 = sshll.u32 %s344, 4
          %s347 = int_to_ptr.hbm [resolvable:$true] %s346
          %s348 = sshll.u32 %s339, 4
          %s349 = int_to_ptr.vmem [resolvable:$true] %s348
          %351 = dma.hbm_to_vmem [thread:$0]  %s347, 128, %s349, %s336
        $region44: #{teann_forward.2} parent=31 // pred_fallthru
          _
        // Predicated region
        $region45: #{teann_forward.2} parent=31 // pred_check
          %p352 = pneg %p143
        $region46: #{teann_forward.2} parent=31 // pred_check_branch
          %354 = sbr.rel (%p352) target = $region48
        $region47: #{teann_forward.2} parent=31 // pred_region
          %s355 = sand.u32 %s24, 1
          %s356 = scalar_lea.sflag [#allocation9], %s355
          %s357 = sand.u32 %s133, 1
          %s358 = smul.addr %s357, 8
          %s359 = scalar_lea.vmem [#allocation8], %s358
          %s360 = smul.u32 4, %s24
          %362 = vsyncadd %s356, 0
          %s363 = smul.addr %s360, 2
          %s364 = scalar_lea.hbm %s4, %s363
          %s366 = sshll.u32 %s364, 4
          %s367 = int_to_ptr.hbm [resolvable:$true] %s366
          %s368 = sshll.u32 %s359, 4
          %s369 = int_to_ptr.vmem [resolvable:$true] %s368
          %371 = dma.hbm_to_vmem [thread:$0]  %s367, 128, %s369, %s356
        $region48: #{teann_forward.2} parent=31 // pred_fallthru
          _
        // Predicated region
        $region49: #{teann_forward.2} parent=31 // pred_check
          %p372 = pneg %p169
        $region50: #{teann_forward.2} parent=31 // pred_check_branch
          %374 = sbr.rel (%p372) target = $region52
        $region51: #{teann_forward.2} parent=31 // pred_region
          #allocation12 [shape = 'u32[6]{0}', space=smem, size = 0x18, scoped, tag = 'DMA stride descriptor']
          %s375 = sand.u32 %s24, 1
          %s376 = scalar_lea.sflag [#allocation9], %s375
          %s377 = sand.u32 %s159, 1
          %s378 = smul.addr %s377, 512
          %s379 = scalar_lea.vmem [#allocation10], %s378
          %s380 = smul.u32 64, %s24
          %382 = vsyncadd %s376, 0
          %s383 = smul.addr %s380, 4
          %s384 = scalar_lea.hbm %s5, %s383
          %s386 = sshll.u32 1, 14
          %s387 = sxor.u32 4294967295, %s386
          %s389 = sld [smem:[#allocation0]]
          %s390 = sadd.s32 2, %s389
          %s392 = sshll.u32 7, 26
          %s393 = sxor.u32 4294967295, %s392
          %s394 = sand.u32 0, %s393
          %s395 = sshll.u32 %s390, 26
          %s396 = sor.u32 %s394, %s395
          %s397 = sshll.u32 %s384, 4
          %s398 = int_to_ptr.hbm [resolvable:$true] %s397
          %s399 = sshll.u32 %s379, 4
          %s400 = int_to_ptr.vmem [resolvable:$true] %s399
          %406 = sst [smem:[#allocation12]] 16384
          %s407 = scalar_lea.smem [#allocation12], 1
          %408 = sst [smem:[%s407]] 4096
          %s409 = scalar_lea.smem [#allocation12], 2
          %410 = sst [smem:[%s409]] 64
          %s411 = scalar_lea.smem [#allocation12], 3
          %412 = sst [smem:[%s411]] 64
          %s413 = scalar_lea.smem [#allocation12], 4
          %414 = sst [smem:[%s413]] 64
          %s415 = scalar_lea.smem [#allocation12], 5
          %416 = sst [smem:[%s415]] 4
          %418 = dma.general %s398, 8192, %s400, %s376, [#allocation11], [#allocation12], %s396, 0
        $region52: #{teann_forward.2} parent=31 // pred_fallthru
          _
      $region32: #{teann_forward.2} parent=5 // pred_fallthru
        _
      %p419 = scmp.le.s32.totalorder 1, %s24
      %p420 = scmp.lt.s32.totalorder %s24, 5
      %p421 = pnand %p419, %p420
      %p422 = pneg %p421
      // Predicated region
      $region53: #{teann_forward.2} parent=5 // pred_check
        _
      $region54: #{teann_forward.2} parent=5 // pred_check_branch
        %424 = sbr.rel (%p421) target = $region56
      $region55: #{teann_forward.2} parent=5 // pred_region
        %s425 = ssub.s32 %s24, 1
        %s426 = sand.u32 %s58, 1
        %s427 = scalar_lea.sflag [#allocation4], %s426
        %s428 = sand.u32 %s58, 1
        %s429 = smul.addr %s428, 192
        %s430 = scalar_lea.vmem [#allocation3], %s429
        // Predicated region
        $region57: #{teann_forward.2} parent=55 // pred_check
          %p431 = pneg %p71
        $region58: #{teann_forward.2} parent=55 // pred_check_branch
          %433 = sbr.rel (%p431) target = $region60
        $region59: #{teann_forward.2} parent=55 // pred_region
          %435 = dma.done %s427, 3072
        $region60: #{teann_forward.2} parent=55 // pred_fallthru
          _
        %s436 = sand.u32 %s29, 1
        %s437 = scalar_lea.sflag [#allocation6], %s436
        %s438 = sand.u32 %s84, 1
        %s439 = smul.addr %s438, 8
        %s440 = scalar_lea.vmem [#allocation5], %s439
        // Predicated region
        $region61: #{teann_forward.2} parent=55 // pred_check
          %p441 = pneg %p97
        $region62: #{teann_forward.2} parent=55 // pred_check_branch
          %443 = sbr.rel (%p441) target = $region64
        $region63: #{teann_forward.2} parent=55 // pred_region
          %445 = dma.done %s437, 128
        $region64: #{teann_forward.2} parent=55 // pred_fallthru
          _
        %s446 = sand.u32 %s29, 1
        %s447 = scalar_lea.sflag [#allocation6], %s446
        %s448 = sand.u32 %s110, 1
        %s449 = smul.addr %s448, 8
        %s450 = scalar_lea.vmem [#allocation7], %s449
        // Predicated region
        $region65: #{teann_forward.2} parent=55 // pred_check
          %p451 = pneg %p123
        $region66: #{teann_forward.2} parent=55 // pred_check_branch
          %453 = sbr.rel (%p451) target = $region68
        $region67: #{teann_forward.2} parent=55 // pred_region
          %455 = dma.done %s447, 128
        $region68: #{teann_forward.2} parent=55 // pred_fallthru
          _
        %s456 = sand.u32 %s29, 1
        %s457 = scalar_lea.sflag [#allocation9], %s456
        %s458 = sand.u32 %s136, 1
        %s459 = smul.addr %s458, 8
        %s460 = scalar_lea.vmem [#allocation8], %s459
        // Predicated region
        $region69: #{teann_forward.2} parent=55 // pred_check
          %p461 = pneg %p149
        $region70: #{teann_forward.2} parent=55 // pred_check_branch
          %463 = sbr.rel (%p461) target = $region72
        $region71: #{teann_forward.2} parent=55 // pred_region
          %465 = dma.done %s457, 128
        $region72: #{teann_forward.2} parent=55 // pred_fallthru
          _
        %s466 = sand.u32 %s29, 1
        %s467 = scalar_lea.sflag [#allocation9], %s466
        %s468 = sand.u32 %s162, 1
        %s469 = smul.addr %s468, 512
        %s470 = scalar_lea.vmem [#allocation10], %s469
        // Predicated region
        $region73: #{teann_forward.2} parent=55 // pred_check
          %p471 = pneg %p175
        $region74: #{teann_forward.2} parent=55 // pred_check_branch
          %473 = sbr.rel (%p471) target = $region76
        $region75: #{teann_forward.2} parent=55 // pred_region
          %475 = dma.done %s467, 8192
        $region76: #{teann_forward.2} parent=55 // pred_fallthru
          _
        %p476 = pneg %p45
        %p477 = pneg %p42
        %s478 = sand.u32 %s58, 1
        %s479 = scalar_lea.sflag [#allocation4], %s478
        %s480 = sand.u32 %s58, 1
        %s481 = smul.addr %s480, 192
        %s482 = scalar_lea.vmem [#allocation3], %s481
        %p483 = pneg %p71
        %p484 = pneg %p68
        %s485 = sand.u32 %s29, 1
        %s486 = scalar_lea.sflag [#allocation6], %s485
        %s487 = sand.u32 %s84, 1
        %s488 = smul.addr %s487, 8
        %s489 = scalar_lea.vmem [#allocation5], %s488
        %p490 = pneg %p97
        %p491 = pneg %p94
        %s492 = sand.u32 %s29, 1
        %s493 = scalar_lea.sflag [#allocation6], %s492
        %s494 = sand.u32 %s110, 1
        %s495 = smul.addr %s494, 8
        %s496 = scalar_lea.vmem [#allocation7], %s495
        %p497 = pneg %p123
        %p498 = pneg %p120
        %s499 = sand.u32 %s29, 1
        %s500 = scalar_lea.sflag [#allocation9], %s499
        %s501 = sand.u32 %s136, 1
        %s502 = smul.addr %s501, 8
        %s503 = scalar_lea.vmem [#allocation8], %s502
        %p504 = pneg %p149
        %p505 = pneg %p146
        %s506 = sand.u32 %s29, 1
        %s507 = scalar_lea.sflag [#allocation9], %s506
        %s508 = sand.u32 %s162, 1
        %s509 = smul.addr %s508, 512
        %s510 = scalar_lea.vmem [#allocation10], %s509
        %p511 = pneg %p175
        %p512 = pneg %p172
        %p513 = pneg %p196
        %p514 = pneg %p193
        %p515 = pneg %p217
        %p516 = pneg %p214
        %p517 = pneg %p238
        %p518 = pneg %p235
        %p519 = pneg %p259
        %p520 = pneg %p256
        %s521 = smul.u32 4, %s29
        %s522 = smul.u32 4, %s29
        %s523 = smul.u32 4, %s29
        %s524 = smul.u32 4, %s29
        %s525 = smul.u32 64, %s29
        %p527 = scmp.eq.s32.totalorder %s29, 0
        // Predicated region
        $region77: #{teann_forward.2} parent=55 // pred_check
          %p528 = pneg %p527
        $region78: #{teann_forward.2} parent=55 // pred_check_branch
          %530 = sbr.rel (%p528) target = $region80
        $region79: #{teann_forward.2} parent=55 // pred_region
          %531 = vst [vmem:[#allocation2] sm:$0xff] 0.0
          %532 = vst [vmem:[#allocation2 + $0x8] sm:$0xff] 0.0
        $region80: #{teann_forward.2} parent=55 // pred_fallthru
          _
        %v533 = vld [vmem:[%s0] sm:$0xff]
        %v534 = vld [vmem:[%s0 + $0x8] sm:$0xff]
        %v535 = vpack.c.bf16 %v534, %v533
        %v536 = vld [vmem:[%s430] sm:$0xff]
        %v537 = vld [vmem:[%s430 + $0x8] sm:$0xff]
        %v538 = vld [vmem:[%s430 + $0x10] sm:$0xff]
        %v539 = vld [vmem:[%s430 + $0x18] sm:$0xff]
        %v540 = vld [vmem:[%s430 + $0x20] sm:$0xff]
        %v541 = vld [vmem:[%s430 + $0x28] sm:$0xff]
        %v542 = vld [vmem:[%s430 + $0x30] sm:$0xff]
        %v543 = vld [vmem:[%s430 + $0x38] sm:$0xff]
        %v544 = vld [vmem:[%s430 + $0x40] sm:$0xff]
        %v545 = vld [vmem:[%s430 + $0x48] sm:$0xff]
        %v546 = vld [vmem:[%s430 + $0x50] sm:$0xff]
        %v547 = vld [vmem:[%s430 + $0x58] sm:$0xff]
        %v548 = vld [vmem:[%s430 + $0x60] sm:$0xff]
        %v549 = vld [vmem:[%s430 + $0x68] sm:$0xff]
        %v550 = vld [vmem:[%s430 + $0x70] sm:$0xff]
        %v551 = vld [vmem:[%s430 + $0x78] sm:$0xff]
        %v552 = vld [vmem:[%s430 + $0x80] sm:$0xff]
        %v553 = vld [vmem:[%s430 + $0x88] sm:$0xff]
        %v554 = vld [vmem:[%s430 + $0x90] sm:$0xff]
        %v555 = vld [vmem:[%s430 + $0x98] sm:$0xff]
        %v556 = vld [vmem:[%s430 + $0xa0] sm:$0xff]
        %v557 = vld [vmem:[%s430 + $0xa8] sm:$0xff]
        %v558 = vld [vmem:[%s430 + $0xb0] sm:$0xff]
        %v559 = vld [vmem:[%s430 + $0xb8] sm:$0xff]
        %v584 = vunpack.c.l.b16 %v536
        %v585 = vunpack.c.h.b16 %v536
        %v586 = vunpack.c.l.b16 %v537
        %v587 = vunpack.c.h.b16 %v537
        %v588 = vunpack.c.l.b16 %v538
        %v589 = vunpack.c.h.b16 %v538
        %v590 = vunpack.c.l.b16 %v539
        %v591 = vunpack.c.h.b16 %v539
        %v592 = vunpack.c.l.b16 %v540
        %v593 = vunpack.c.h.b16 %v540
        %v594 = vunpack.c.l.b16 %v541
        %v595 = vunpack.c.h.b16 %v541
        %v596 = vunpack.c.l.b16 %v542
        %v597 = vunpack.c.h.b16 %v542
        %v598 = vunpack.c.l.b16 %v543
        %v599 = vunpack.c.h.b16 %v543
        %v600 = vunpack.c.l.b16 %v544
        %v601 = vunpack.c.h.b16 %v544
        %v602 = vunpack.c.l.b16 %v545
        %v603 = vunpack.c.h.b16 %v545
        %v604 = vunpack.c.l.b16 %v546
        %v605 = vunpack.c.h.b16 %v546
        %v606 = vunpack.c.l.b16 %v547
        %v607 = vunpack.c.h.b16 %v547
        %v608 = vunpack.c.l.b16 %v548
        %v609 = vunpack.c.h.b16 %v548
        %v610 = vunpack.c.l.b16 %v549
        %v611 = vunpack.c.h.b16 %v549
        %v612 = vunpack.c.l.b16 %v550
        %v613 = vunpack.c.h.b16 %v550
        %v614 = vunpack.c.l.b16 %v551
        %v615 = vunpack.c.h.b16 %v551
        %v616 = vunpack.c.l.b16 %v552
        %v617 = vunpack.c.h.b16 %v552
        %v618 = vunpack.c.l.b16 %v553
        %v619 = vunpack.c.h.b16 %v553
        %v620 = vunpack.c.l.b16 %v554
        %v621 = vunpack.c.h.b16 %v554
        %v622 = vunpack.c.l.b16 %v555
        %v623 = vunpack.c.h.b16 %v555
        %v624 = vunpack.c.l.b16 %v556
        %v625 = vunpack.c.h.b16 %v556
        %v626 = vunpack.c.l.b16 %v557
        %v627 = vunpack.c.h.b16 %v557
        %v628 = vunpack.c.l.b16 %v558
        %v629 = vunpack.c.h.b16 %v558
        %v630 = vunpack.c.l.b16 %v559
        %v631 = vunpack.c.h.b16 %v559
        %v632 = vpack.c.b16 %v588, %v584
        %v633 = vpack.c.b16 %v589, %v585
        %v634 = vpack.c.b16 %v590, %v586
        %v635 = vpack.c.b16 %v591, %v587
        %v636 = vpack.c.b16 %v596, %v592
        %v637 = vpack.c.b16 %v597, %v593
        %v638 = vpack.c.b16 %v598, %v594
        %v639 = vpack.c.b16 %v599, %v595
        %v640 = vpack.c.b16 %v604, %v600
        %v641 = vpack.c.b16 %v605, %v601
        %v642 = vpack.c.b16 %v606, %v602
        %v643 = vpack.c.b16 %v607, %v603
        %v644 = vpack.c.b16 %v612, %v608
        %v645 = vpack.c.b16 %v613, %v609
        %v646 = vpack.c.b16 %v614, %v610
        %v647 = vpack.c.b16 %v615, %v611
        %v648 = vpack.c.b16 %v620, %v616
        %v649 = vpack.c.b16 %v621, %v617
        %v650 = vpack.c.b16 %v622, %v618
        %v651 = vpack.c.b16 %v623, %v619
        %v652 = vpack.c.b16 %v628, %v624
        %v653 = vpack.c.b16 %v629, %v625
        %v654 = vpack.c.b16 %v630, %v626
        %v655 = vpack.c.b16 %v631, %v627
        %vm680 = vcmask 785408
        %v682 = vsel %vm680, %v535, 0
        %684 = vmatpush.bf16.msra.mxu0 0
        %685 = vmatpush.bf16.msra.mxu0 0
        %686 = vmatpush.bf16.msra.mxu0 %v652
        %687 = vmatpush.bf16.msra.mxu0 %v648
        %688 = vmatpush.bf16.msra.mxu0 %v644
        %689 = vmatpush.bf16.msra.mxu0 %v640
        %690 = vmatpush.bf16.msra.mxu0 %v636
        %691 = vmatpush.bf16.msra.mxu0 %v632
        %692 = vmatmul.bf16.gmra.mxu0 %v682
        %v693 = vpop.f32.mrf.mxu0
        %v694 = vadd.f32 0.0, %v693
        %v695 = vpop.f32.mrf.mxu0
        %v696 = vadd.f32 0.0, %v695
        %697 = vdwg.mxu0
        %698 = vmatpush.bf16.msra.mxu0 0
        %699 = vmatpush.bf16.msra.mxu0 0
        %700 = vmatpush.bf16.msra.mxu0 %v653
        %701 = vmatpush.bf16.msra.mxu0 %v649
        %702 = vmatpush.bf16.msra.mxu0 %v645
        %703 = vmatpush.bf16.msra.mxu0 %v641
        %704 = vmatpush.bf16.msra.mxu0 %v637
        %705 = vmatpush.bf16.msra.mxu0 %v633
        %706 = vmatmul.bf16.gmra.mxu0 %v682
        %v707 = vpop.f32.mrf.mxu0
        %v708 = vadd.f32 0.0, %v707
        %v709 = vpop.f32.mrf.mxu0
        %v710 = vadd.f32 0.0, %v709
        %711 = vdwg.mxu0
        %712 = vmatpush.bf16.msra.mxu0 0
        %713 = vmatpush.bf16.msra.mxu0 0
        %714 = vmatpush.bf16.msra.mxu0 %v654
        %715 = vmatpush.bf16.msra.mxu0 %v650
        %716 = vmatpush.bf16.msra.mxu0 %v646
        %717 = vmatpush.bf16.msra.mxu0 %v642
        %718 = vmatpush.bf16.msra.mxu0 %v638
        %719 = vmatpush.bf16.msra.mxu0 %v634
        %720 = vmatmul.bf16.gmra.mxu0 %v682
        %v721 = vpop.f32.mrf.mxu0
        %v722 = vadd.f32 0.0, %v721
        %v723 = vpop.f32.mrf.mxu0
        %v724 = vadd.f32 0.0, %v723
        %725 = vdwg.mxu0
        %726 = vmatpush.bf16.msra.mxu0 0
        %727 = vmatpush.bf16.msra.mxu0 0
        %728 = vmatpush.bf16.msra.mxu0 %v655
        %729 = vmatpush.bf16.msra.mxu0 %v651
        %730 = vmatpush.bf16.msra.mxu0 %v647
        %731 = vmatpush.bf16.msra.mxu0 %v643
        %732 = vmatpush.bf16.msra.mxu0 %v639
        %733 = vmatpush.bf16.msra.mxu0 %v635
        %734 = vmatmul.bf16.gmra.mxu0 %v682
        %v735 = vpop.f32.mrf.mxu0
        %v736 = vadd.f32 0.0, %v735
        %v737 = vpop.f32.mrf.mxu0
        %v738 = vadd.f32 0.0, %v737
        %739 = vdwg.mxu0
        %v740 = vld [vmem:[%s440] ss:$2 sm:$0xf]
        %v741 = vld [vmem:[%s450] ss:$2 sm:$0xf]
        %v742 = vld [vmem:[%s460] ss:$2 sm:$0xf]
        %v744 = vperm.slane %v740, 0
        %v745 = vperm.slane %v740, 1
        %v746 = vperm.slane %v740, 2
        %v747 = vperm.slane %v740, 3
        %v752 = vadd.f32 %v694, %v744
        %v753 = vadd.f32 %v708, %v745
        %v754 = vadd.f32 %v722, %v746
        %v755 = vadd.f32 %v736, %v747
        %v756 = vrot.slane %v752, 4
        %v757 = vadd.f32 %v752, %v756
        %v758 = vrot.slane %v757, 2
        %v759 = vadd.f32 %v757, %v758
        %v760 = vrot.slane %v759, 1
        %v761 = vadd.f32 %v759, %v760
        %v762 = vrot.slane %v753, 4
        %v763 = vadd.f32 %v753, %v762
        %v764 = vrot.slane %v763, 2
        %v765 = vadd.f32 %v763, %v764
        %v766 = vrot.slane %v765, 1
        %v767 = vadd.f32 %v765, %v766
        %v768 = vrot.slane %v754, 4
        %v769 = vadd.f32 %v754, %v768
        %v770 = vrot.slane %v769, 2
        %v771 = vadd.f32 %v769, %v770
        %v772 = vrot.slane %v771, 1
        %v773 = vadd.f32 %v771, %v772
        %v774 = vrot.slane %v755, 4
        %v775 = vadd.f32 %v755, %v774
        %v776 = vrot.slane %v775, 2
        %v777 = vadd.f32 %v775, %v776
        %v778 = vrot.slane %v777, 1
        %v779 = vadd.f32 %v777, %v778
        %v780 = vrcp.pop 8.0
        %v781 = vmul.f32 8.0, %v780
        %v782 = vsub.f32 1.0, %v781
        %v783 = vmul.f32 %v780, %v782
        %v784 = vadd.f32 %v780, %v783
        %vm785 = vweird.f32 %v780
        %v786 = vsel %vm785, %v780, %v784
        %v787 = vmul.f32 %v761, %v786
        %v788 = vmul.f32 %v767, %v786
        %v789 = vmul.f32 %v773, %v786
        %v790 = vmul.f32 %v779, %v786
        %v791 = vsub.f32 %v752, %v787
        %v792 = vsub.f32 %v753, %v788
        %v793 = vsub.f32 %v754, %v789
        %v794 = vsub.f32 %v755, %v790
        %v795 = vmul.f32 %v791, %v791
        %v796 = vmul.f32 %v792, %v792
        %v797 = vmul.f32 %v793, %v793
        %v798 = vmul.f32 %v794, %v794
        %v799 = vrot.slane %v795, 4
        %v800 = vadd.f32 %v795, %v799
        %v801 = vrot.slane %v800, 2
        %v802 = vadd.f32 %v800, %v801
        %v803 = vrot.slane %v802, 1
        %v804 = vadd.f32 %v802, %v803
        %v805 = vrot.slane %v796, 4
        %v806 = vadd.f32 %v796, %v805
        %v807 = vrot.slane %v806, 2
        %v808 = vadd.f32 %v806, %v807
        %v809 = vrot.slane %v808, 1
        %v810 = vadd.f32 %v808, %v809
        %v811 = vrot.slane %v797, 4
        %v812 = vadd.f32 %v797, %v811
        %v813 = vrot.slane %v812, 2
        %v814 = vadd.f32 %v812, %v813
        %v815 = vrot.slane %v814, 1
        %v816 = vadd.f32 %v814, %v815
        %v817 = vrot.slane %v798, 4
        %v818 = vadd.f32 %v798, %v817
        %v819 = vrot.slane %v818, 2
        %v820 = vadd.f32 %v818, %v819
        %v821 = vrot.slane %v820, 1
        %v822 = vadd.f32 %v820, %v821
        %v823 = vmul.f32 %v804, %v786
        %v824 = vmul.f32 %v810, %v786
        %v825 = vmul.f32 %v816, %v786
        %v826 = vmul.f32 %v822, %v786
        %v828 = vperm.slane %v741, 0
        %v829 = vperm.slane %v741, 1
        %v830 = vperm.slane %v741, 2
        %v831 = vperm.slane %v741, 3
        %v836 = vmul.f32 %v828, %v791
        %v837 = vmul.f32 %v829, %v792
        %v838 = vmul.f32 %v830, %v793
        %v839 = vmul.f32 %v831, %v794
        %v840 = vadd.f32 %v823, 1e-05
        %v841 = vadd.f32 %v824, 1e-05
        %v842 = vadd.f32 %v825, 1e-05
        %v843 = vadd.f32 %v826, 1e-05
        %v844 = vrsqrt.pop %v840
        %v845 = vmul.f32 %v844, %v840
        %v846 = vmul.f32 %v845, %v844
        %v847 = vmul.f32 0.5, %v846
        %v848 = vsub.f32 1.5, %v847
        %v849 = vmul.f32 %v844, %v848
        %vm850 = vweird.f32 %v840
        %vm851 = vweird.f32 %v844
        %vm852 = vmor %vm850, %vm851
        %v853 = vsel %vm852, %v844, %v849
        %v854 = vrsqrt.pop %v841
        %v855 = vmul.f32 %v854, %v841
        %v856 = vmul.f32 %v855, %v854
        %v857 = vmul.f32 0.5, %v856
        %v858 = vsub.f32 1.5, %v857
        %v859 = vmul.f32 %v854, %v858
        %vm860 = vweird.f32 %v841
        %vm861 = vweird.f32 %v854
        %vm862 = vmor %vm860, %vm861
        %v863 = vsel %vm862, %v854, %v859
        %v864 = vrsqrt.pop %v842
        %v865 = vmul.f32 %v864, %v842
        %v866 = vmul.f32 %v865, %v864
        %v867 = vmul.f32 0.5, %v866
        %v868 = vsub.f32 1.5, %v867
        %v869 = vmul.f32 %v864, %v868
        %vm870 = vweird.f32 %v842
        %vm871 = vweird.f32 %v864
        %vm872 = vmor %vm870, %vm871
        %v873 = vsel %vm872, %v864, %v869
        %v874 = vrsqrt.pop %v843
        %v875 = vmul.f32 %v874, %v843
        %v876 = vmul.f32 %v875, %v874
        %v877 = vmul.f32 0.5, %v876
        %v878 = vsub.f32 1.5, %v877
        %v879 = vmul.f32 %v874, %v878
        %vm880 = vweird.f32 %v843
        %vm881 = vweird.f32 %v874
        %vm882 = vmor %vm880, %vm881
        %v883 = vsel %vm882, %v874, %v879
        %v884 = vmul.f32 %v836, %v853
        %v885 = vmul.f32 %v837, %v863
        %v886 = vmul.f32 %v838, %v873
        %v887 = vmul.f32 %v839, %v883
        %v889 = vperm.slane %v742, 0
        %v890 = vperm.slane %v742, 1
        %v891 = vperm.slane %v742, 2
        %v892 = vperm.slane %v742, 3
        %v897 = vadd.f32 %v884, %v889
        %v898 = vadd.f32 %v885, %v890
        %v899 = vadd.f32 %v886, %v891
        %v900 = vadd.f32 %v887, %v892
        %v901 = vtanh.pop %v897
        %v902 = vtanh.pop %v898
        %v903 = vtanh.pop %v899
        %v904 = vtanh.pop %v900
        %s905 = scalar_lea.vmem %s440, 1 [#allocation5]
        %v906 = vld [vmem:[%s905] ss:$2 sm:$0xf]
        %s907 = scalar_lea.vmem %s450, 1 [#allocation7]
        %v908 = vld [vmem:[%s907] ss:$2 sm:$0xf]
        %s909 = scalar_lea.vmem %s460, 1 [#allocation8]
        %v910 = vld [vmem:[%s909] ss:$2 sm:$0xf]
        %v912 = vperm.slane %v906, 0
        %v913 = vperm.slane %v906, 1
        %v914 = vperm.slane %v906, 2
        %v915 = vperm.slane %v906, 3
        %v920 = vadd.f32 %v696, %v912
        %v921 = vadd.f32 %v710, %v913
        %v922 = vadd.f32 %v724, %v914
        %v923 = vadd.f32 %v738, %v915
        %v924 = vrot.slane %v920, 4
        %v925 = vadd.f32 %v920, %v924
        %v926 = vrot.slane %v925, 2
        %v927 = vadd.f32 %v925, %v926
        %v928 = vrot.slane %v927, 1
        %v929 = vadd.f32 %v927, %v928
        %v930 = vrot.slane %v921, 4
        %v931 = vadd.f32 %v921, %v930
        %v932 = vrot.slane %v931, 2
        %v933 = vadd.f32 %v931, %v932
        %v934 = vrot.slane %v933, 1
        %v935 = vadd.f32 %v933, %v934
        %v936 = vrot.slane %v922, 4
        %v937 = vadd.f32 %v922, %v936
        %v938 = vrot.slane %v937, 2
        %v939 = vadd.f32 %v937, %v938
        %v940 = vrot.slane %v939, 1
        %v941 = vadd.f32 %v939, %v940
        %v942 = vrot.slane %v923, 4
        %v943 = vadd.f32 %v923, %v942
        %v944 = vrot.slane %v943, 2
        %v945 = vadd.f32 %v943, %v944
        %v946 = vrot.slane %v945, 1
        %v947 = vadd.f32 %v945, %v946
        %v948 = vmul.f32 %v929, %v786
        %v949 = vmul.f32 %v935, %v786
        %v950 = vmul.f32 %v941, %v786
        %v951 = vmul.f32 %v947, %v786
        %v952 = vsub.f32 %v920, %v948
        %v953 = vsub.f32 %v921, %v949
        %v954 = vsub.f32 %v922, %v950
        %v955 = vsub.f32 %v923, %v951
        %v956 = vmul.f32 %v952, %v952
        %v957 = vmul.f32 %v953, %v953
        %v958 = vmul.f32 %v954, %v954
        %v959 = vmul.f32 %v955, %v955
        %v960 = vrot.slane %v956, 4
        %v961 = vadd.f32 %v956, %v960
        %v962 = vrot.slane %v961, 2
        %v963 = vadd.f32 %v961, %v962
        %v964 = vrot.slane %v963, 1
        %v965 = vadd.f32 %v963, %v964
        %v966 = vrot.slane %v957, 4
        %v967 = vadd.f32 %v957, %v966
        %v968 = vrot.slane %v967, 2
        %v969 = vadd.f32 %v967, %v968
        %v970 = vrot.slane %v969, 1
        %v971 = vadd.f32 %v969, %v970
        %v972 = vrot.slane %v958, 4
        %v973 = vadd.f32 %v958, %v972
        %v974 = vrot.slane %v973, 2
        %v975 = vadd.f32 %v973, %v974
        %v976 = vrot.slane %v975, 1
        %v977 = vadd.f32 %v975, %v976
        %v978 = vrot.slane %v959, 4
        %v979 = vadd.f32 %v959, %v978
        %v980 = vrot.slane %v979, 2
        %v981 = vadd.f32 %v979, %v980
        %v982 = vrot.slane %v981, 1
        %v983 = vadd.f32 %v981, %v982
        %v984 = vmul.f32 %v965, %v786
        %v985 = vmul.f32 %v971, %v786
        %v986 = vmul.f32 %v977, %v786
        %v987 = vmul.f32 %v983, %v786
        %v989 = vperm.slane %v908, 0
        %v990 = vperm.slane %v908, 1
        %v991 = vperm.slane %v908, 2
        %v992 = vperm.slane %v908, 3
        %v997 = vmul.f32 %v989, %v952
        %v998 = vmul.f32 %v990, %v953
        %v999 = vmul.f32 %v991, %v954
        %v1000 = vmul.f32 %v992, %v955
        %v1001 = vadd.f32 %v984, 1e-05
        %v1002 = vadd.f32 %v985, 1e-05
        %v1003 = vadd.f32 %v986, 1e-05
        %v1004 = vadd.f32 %v987, 1e-05
        %v1005 = vrsqrt.pop %v1001
        %v1006 = vmul.f32 %v1005, %v1001
        %v1007 = vmul.f32 %v1006, %v1005
        %v1008 = vmul.f32 0.5, %v1007
        %v1009 = vsub.f32 1.5, %v1008
        %v1010 = vmul.f32 %v1005, %v1009
        %vm1011 = vweird.f32 %v1001
        %vm1012 = vweird.f32 %v1005
        %vm1013 = vmor %vm1011, %vm1012
        %v1014 = vsel %vm1013, %v1005, %v1010
        %v1015 = vrsqrt.pop %v1002
        %v1016 = vmul.f32 %v1015, %v1002
        %v1017 = vmul.f32 %v1016, %v1015
        %v1018 = vmul.f32 0.5, %v1017
        %v1019 = vsub.f32 1.5, %v1018
        %v1020 = vmul.f32 %v1015, %v1019
        %vm1021 = vweird.f32 %v1002
        %vm1022 = vweird.f32 %v1015
        %vm1023 = vmor %vm1021, %vm1022
        %v1024 = vsel %vm1023, %v1015, %v1020
        %v1025 = vrsqrt.pop %v1003
        %v1026 = vmul.f32 %v1025, %v1003
        %v1027 = vmul.f32 %v1026, %v1025
        %v1028 = vmul.f32 0.5, %v1027
        %v1029 = vsub.f32 1.5, %v1028
        %v1030 = vmul.f32 %v1025, %v1029
        %vm1031 = vweird.f32 %v1003
        %vm1032 = vweird.f32 %v1025
        %vm1033 = vmor %vm1031, %vm1032
        %v1034 = vsel %vm1033, %v1025, %v1030
        %v1035 = vrsqrt.pop %v1004
        %v1036 = vmul.f32 %v1035, %v1004
        %v1037 = vmul.f32 %v1036, %v1035
        %v1038 = vmul.f32 0.5, %v1037
        %v1039 = vsub.f32 1.5, %v1038
        %v1040 = vmul.f32 %v1035, %v1039
        %vm1041 = vweird.f32 %v1004
        %vm1042 = vweird.f32 %v1035
        %vm1043 = vmor %vm1041, %vm1042
        %v1044 = vsel %vm1043, %v1035, %v1040
        %v1045 = vmul.f32 %v997, %v1014
        %v1046 = vmul.f32 %v998, %v1024
        %v1047 = vmul.f32 %v999, %v1034
        %v1048 = vmul.f32 %v1000, %v1044
        %v1050 = vperm.slane %v910, 0
        %v1051 = vperm.slane %v910, 1
        %v1052 = vperm.slane %v910, 2
        %v1053 = vperm.slane %v910, 3
        %v1058 = vadd.f32 %v1045, %v1050
        %v1059 = vadd.f32 %v1046, %v1051
        %v1060 = vadd.f32 %v1047, %v1052
        %v1061 = vadd.f32 %v1048, %v1053
        %v1062 = vtanh.pop %v1058
        %v1063 = vtanh.pop %v1059
        %v1064 = vtanh.pop %v1060
        %v1065 = vtanh.pop %v1061
        %v1066 = vld [vmem:[#allocation2] sm:$0xff]
        %v1067 = vpack.c.bf16 %v901, %v901
        %v1068 = vpack.c.bf16 %v902, %v902
        %v1069 = vpack.c.bf16 %v903, %v903
        %v1070 = vpack.c.bf16 %v904, %v904
        %v1071 = vld [vmem:[%s470] sm:$0xf]
        %v1072 = vld [vmem:[%s470 + $0x4] sm:$0xf]
        %v1073 = vld [vmem:[%s470 + $0x8] sm:$0xf]
        %v1074 = vld [vmem:[%s470 + $0xc] sm:$0xf]
        %v1075 = vld [vmem:[%s470 + $0x10] sm:$0xf]
        %v1076 = vld [vmem:[%s470 + $0x14] sm:$0xf]
        %v1077 = vld [vmem:[%s470 + $0x18] sm:$0xf]
        %v1078 = vld [vmem:[%s470 + $0x1c] sm:$0xf]
        %v1079 = vld [vmem:[%s470 + $0x20] sm:$0xf]
        %v1080 = vld [vmem:[%s470 + $0x24] sm:$0xf]
        %v1081 = vld [vmem:[%s470 + $0x28] sm:$0xf]
        %v1082 = vld [vmem:[%s470 + $0x2c] sm:$0xf]
        %v1083 = vld [vmem:[%s470 + $0x30] sm:$0xf]
        %v1084 = vld [vmem:[%s470 + $0x34] sm:$0xf]
        %v1085 = vld [vmem:[%s470 + $0x38] sm:$0xf]
        %v1086 = vld [vmem:[%s470 + $0x3c] sm:$0xf]
        %v1087 = vld [vmem:[%s470 + $0x40] sm:$0xf]
        %v1088 = vld [vmem:[%s470 + $0x44] sm:$0xf]
        %v1089 = vld [vmem:[%s470 + $0x48] sm:$0xf]
        %v1090 = vld [vmem:[%s470 + $0x4c] sm:$0xf]
        %v1091 = vld [vmem:[%s470 + $0x50] sm:$0xf]
        %v1092 = vld [vmem:[%s470 + $0x54] sm:$0xf]
        %v1093 = vld [vmem:[%s470 + $0x58] sm:$0xf]
        %v1094 = vld [vmem:[%s470 + $0x5c] sm:$0xf]
        %v1095 = vld [vmem:[%s470 + $0x60] sm:$0xf]
        %v1096 = vld [vmem:[%s470 + $0x64] sm:$0xf]
        %v1097 = vld [vmem:[%s470 + $0x68] sm:$0xf]
        %v1098 = vld [vmem:[%s470 + $0x6c] sm:$0xf]
        %v1099 = vld [vmem:[%s470 + $0x70] sm:$0xf]
        %v1100 = vld [vmem:[%s470 + $0x74] sm:$0xf]
        %v1101 = vld [vmem:[%s470 + $0x78] sm:$0xf]
        %v1102 = vld [vmem:[%s470 + $0x7c] sm:$0xf]
        %v1103 = vld [vmem:[%s470 + $0x80] sm:$0xf]
        %v1104 = vld [vmem:[%s470 + $0x84] sm:$0xf]
        %v1105 = vld [vmem:[%s470 + $0x88] sm:$0xf]
        %v1106 = vld [vmem:[%s470 + $0x8c] sm:$0xf]
        %v1107 = vld [vmem:[%s470 + $0x90] sm:$0xf]
        %v1108 = vld [vmem:[%s470 + $0x94] sm:$0xf]
        %v1109 = vld [vmem:[%s470 + $0x98] sm:$0xf]
        %v1110 = vld [vmem:[%s470 + $0x9c] sm:$0xf]
        %v1111 = vld [vmem:[%s470 + $0xa0] sm:$0xf]
        %v1112 = vld [vmem:[%s470 + $0xa4] sm:$0xf]
        %v1113 = vld [vmem:[%s470 + $0xa8] sm:$0xf]
        %v1114 = vld [vmem:[%s470 + $0xac] sm:$0xf]
        %v1115 = vld [vmem:[%s470 + $0xb0] sm:$0xf]
        %v1116 = vld [vmem:[%s470 + $0xb4] sm:$0xf]
        %v1117 = vld [vmem:[%s470 + $0xb8] sm:$0xf]
        %v1118 = vld [vmem:[%s470 + $0xbc] sm:$0xf]
        %v1119 = vld [vmem:[%s470 + $0xc0] sm:$0xf]
        %v1120 = vld [vmem:[%s470 + $0xc4] sm:$0xf]
        %v1121 = vld [vmem:[%s470 + $0xc8] sm:$0xf]
        %v1122 = vld [vmem:[%s470 + $0xcc] sm:$0xf]
        %v1123 = vld [vmem:[%s470 + $0xd0] sm:$0xf]
        %v1124 = vld [vmem:[%s470 + $0xd4] sm:$0xf]
        %v1125 = vld [vmem:[%s470 + $0xd8] sm:$0xf]
        %v1126 = vld [vmem:[%s470 + $0xdc] sm:$0xf]
        %v1127 = vld [vmem:[%s470 + $0xe0] sm:$0xf]
        %v1128 = vld [vmem:[%s470 + $0xe4] sm:$0xf]
        %v1129 = vld [vmem:[%s470 + $0xe8] sm:$0xf]
        %v1130 = vld [vmem:[%s470 + $0xec] sm:$0xf]
        %v1131 = vld [vmem:[%s470 + $0xf0] sm:$0xf]
        %v1132 = vld [vmem:[%s470 + $0xf4] sm:$0xf]
        %v1133 = vld [vmem:[%s470 + $0xf8] sm:$0xf]
        %v1134 = vld [vmem:[%s470 + $0xfc] sm:$0xf]
        %v1199 = vunpack.c.l.b16 %v1071
        %v1200 = vunpack.c.l.b16 %v1072
        %v1201 = vunpack.c.l.b16 %v1073
        %v1202 = vunpack.c.l.b16 %v1074
        %v1203 = vunpack.c.l.b16 %v1075
        %v1204 = vunpack.c.l.b16 %v1076
        %v1205 = vunpack.c.l.b16 %v1077
        %v1206 = vunpack.c.l.b16 %v1078
        %v1207 = vunpack.c.l.b16 %v1079
        %v1208 = vunpack.c.l.b16 %v1080
        %v1209 = vunpack.c.l.b16 %v1081
        %v1210 = vunpack.c.l.b16 %v1082
        %v1211 = vunpack.c.l.b16 %v1083
        %v1212 = vunpack.c.l.b16 %v1084
        %v1213 = vunpack.c.l.b16 %v1085
        %v1214 = vunpack.c.l.b16 %v1086
        %v1215 = vunpack.c.l.b16 %v1087
        %v1216 = vunpack.c.l.b16 %v1088
        %v1217 = vunpack.c.l.b16 %v1089
        %v1218 = vunpack.c.l.b16 %v1090
        %v1219 = vunpack.c.l.b16 %v1091
        %v1220 = vunpack.c.l.b16 %v1092
        %v1221 = vunpack.c.l.b16 %v1093
        %v1222 = vunpack.c.l.b16 %v1094
        %v1223 = vunpack.c.l.b16 %v1095
        %v1224 = vunpack.c.l.b16 %v1096
        %v1225 = vunpack.c.l.b16 %v1097
        %v1226 = vunpack.c.l.b16 %v1098
        %v1227 = vunpack.c.l.b16 %v1099
        %v1228 = vunpack.c.l.b16 %v1100
        %v1229 = vunpack.c.l.b16 %v1101
        %v1230 = vunpack.c.l.b16 %v1102
        %v1231 = vunpack.c.l.b16 %v1103
        %v1232 = vunpack.c.l.b16 %v1104
        %v1233 = vunpack.c.l.b16 %v1105
        %v1234 = vunpack.c.l.b16 %v1106
        %v1235 = vunpack.c.l.b16 %v1107
        %v1236 = vunpack.c.l.b16 %v1108
        %v1237 = vunpack.c.l.b16 %v1109
        %v1238 = vunpack.c.l.b16 %v1110
        %v1239 = vunpack.c.l.b16 %v1111
        %v1240 = vunpack.c.l.b16 %v1112
        %v1241 = vunpack.c.l.b16 %v1113
        %v1242 = vunpack.c.l.b16 %v1114
        %v1243 = vunpack.c.l.b16 %v1115
        %v1244 = vunpack.c.l.b16 %v1116
        %v1245 = vunpack.c.l.b16 %v1117
        %v1246 = vunpack.c.l.b16 %v1118
        %v1247 = vunpack.c.l.b16 %v1119
        %v1248 = vunpack.c.l.b16 %v1120
        %v1249 = vunpack.c.l.b16 %v1121
        %v1250 = vunpack.c.l.b16 %v1122
        %v1251 = vunpack.c.l.b16 %v1123
        %v1252 = vunpack.c.l.b16 %v1124
        %v1253 = vunpack.c.l.b16 %v1125
        %v1254 = vunpack.c.l.b16 %v1126
        %v1255 = vunpack.c.l.b16 %v1127
        %v1256 = vunpack.c.l.b16 %v1128
        %v1257 = vunpack.c.l.b16 %v1129
        %v1258 = vunpack.c.l.b16 %v1130
        %v1259 = vunpack.c.l.b16 %v1131
        %v1260 = vunpack.c.l.b16 %v1132
        %v1261 = vunpack.c.l.b16 %v1133
        %v1262 = vunpack.c.l.b16 %v1134
        %v1263 = vpack.c.b16 %v1200, %v1199
        %v1264 = vpack.c.b16 %v1202, %v1201
        %v1265 = vpack.c.b16 %v1204, %v1203
        %v1266 = vpack.c.b16 %v1206, %v1205
        %v1267 = vpack.c.b16 %v1208, %v1207
        %v1268 = vpack.c.b16 %v1210, %v1209
        %v1269 = vpack.c.b16 %v1212, %v1211
        %v1270 = vpack.c.b16 %v1214, %v1213
        %v1271 = vpack.c.b16 %v1216, %v1215
        %v1272 = vpack.c.b16 %v1218, %v1217
        %v1273 = vpack.c.b16 %v1220, %v1219
        %v1274 = vpack.c.b16 %v1222, %v1221
        %v1275 = vpack.c.b16 %v1224, %v1223
        %v1276 = vpack.c.b16 %v1226, %v1225
        %v1277 = vpack.c.b16 %v1228, %v1227
        %v1278 = vpack.c.b16 %v1230, %v1229
        %v1279 = vpack.c.b16 %v1232, %v1231
        %v1280 = vpack.c.b16 %v1234, %v1233
        %v1281 = vpack.c.b16 %v1236, %v1235
        %v1282 = vpack.c.b16 %v1238, %v1237
        %v1283 = vpack.c.b16 %v1240, %v1239
        %v1284 = vpack.c.b16 %v1242, %v1241
        %v1285 = vpack.c.b16 %v1244, %v1243
        %v1286 = vpack.c.b16 %v1246, %v1245
        %v1287 = vpack.c.b16 %v1248, %v1247
        %v1288 = vpack.c.b16 %v1250, %v1249
        %v1289 = vpack.c.b16 %v1252, %v1251
        %v1290 = vpack.c.b16 %v1254, %v1253
        %v1291 = vpack.c.b16 %v1256, %v1255
        %v1292 = vpack.c.b16 %v1258, %v1257
        %v1293 = vpack.c.b16 %v1260, %v1259
        %v1294 = vpack.c.b16 %v1262, %v1261
        %1327 = vmatpush.bf16.msra.mxu0 %v1270
        %1328 = vmatpush.bf16.msra.mxu0 %v1269
        %1329 = vmatpush.bf16.msra.mxu0 %v1268
        %1330 = vmatpush.bf16.msra.mxu0 %v1267
        %1331 = vmatpush.bf16.msra.mxu0 %v1266
        %1332 = vmatpush.bf16.msra.mxu0 %v1265
        %1333 = vmatpush.bf16.msra.mxu0 %v1264
        %1334 = vmatpush.bf16.msra.mxu0 %v1263
        %1335 = vmatmul.bf16.gmra.mxu0 %v1067
        %v1336 = vpop.f32.mrf.mxu0
        %v1337 = vadd.f32 0.0, %v1336
        %v1338 = vpop.f32.mrf.mxu0
        %1339 = vdwg.mxu0
        %1340 = vmatpush.bf16.msra.mxu0 %v1278
        %1341 = vmatpush.bf16.msra.mxu0 %v1277
        %1342 = vmatpush.bf16.msra.mxu0 %v1276
        %1343 = vmatpush.bf16.msra.mxu0 %v1275
        %1344 = vmatpush.bf16.msra.mxu0 %v1274
        %1345 = vmatpush.bf16.msra.mxu0 %v1273
        %1346 = vmatpush.bf16.msra.mxu0 %v1272
        %1347 = vmatpush.bf16.msra.mxu0 %v1271
        %1348 = vmatmul.bf16.gmra.mxu0 %v1068
        %v1349 = vpop.f32.mrf.mxu0
        %v1350 = vadd.f32 %v1337, %v1349
        %v1351 = vpop.f32.mrf.mxu0
        %1352 = vdwg.mxu0
        %1353 = vmatpush.bf16.msra.mxu0 %v1286
        %1354 = vmatpush.bf16.msra.mxu0 %v1285
        %1355 = vmatpush.bf16.msra.mxu0 %v1284
        %1356 = vmatpush.bf16.msra.mxu0 %v1283
        %1357 = vmatpush.bf16.msra.mxu0 %v1282
        %1358 = vmatpush.bf16.msra.mxu0 %v1281
        %1359 = vmatpush.bf16.msra.mxu0 %v1280
        %1360 = vmatpush.bf16.msra.mxu0 %v1279
        %1361 = vmatmul.bf16.gmra.mxu0 %v1069
        %v1362 = vpop.f32.mrf.mxu0
        %v1363 = vadd.f32 %v1350, %v1362
        %v1364 = vpop.f32.mrf.mxu0
        %1365 = vdwg.mxu0
        %1366 = vmatpush.bf16.msra.mxu0 %v1294
        %1367 = vmatpush.bf16.msra.mxu0 %v1293
        %1368 = vmatpush.bf16.msra.mxu0 %v1292
        %1369 = vmatpush.bf16.msra.mxu0 %v1291
        %1370 = vmatpush.bf16.msra.mxu0 %v1290
        %1371 = vmatpush.bf16.msra.mxu0 %v1289
        %1372 = vmatpush.bf16.msra.mxu0 %v1288
        %1373 = vmatpush.bf16.msra.mxu0 %v1287
        %1374 = vmatmul.bf16.gmra.mxu0 %v1070
        %v1375 = vpop.f32.mrf.mxu0
        %v1376 = vadd.f32 %v1363, %v1375
        %v1377 = vpop.f32.mrf.mxu0
        %1378 = vdwg.mxu0
        %v1379 = vadd.f32 %v1066, %v1376
        %1380 = vst [vmem:[#allocation2] sm:$0xff] %v1379
        %v1381 = vld [vmem:[#allocation2 + $0x8] sm:$0xff]
        %v1382 = vpack.c.bf16 %v1062, %v1062
        %v1383 = vpack.c.bf16 %v1063, %v1063
        %v1384 = vpack.c.bf16 %v1064, %v1064
        %v1385 = vpack.c.bf16 %v1065, %v1065
        %s1386 = scalar_lea.vmem %s470, 256 [#allocation10]
        %v1387 = vld [vmem:[%s1386] sm:$0xf]
        %v1388 = vld [vmem:[%s1386 + $0x4] sm:$0xf]
        %v1389 = vld [vmem:[%s1386 + $0x8] sm:$0xf]
        %v1390 = vld [vmem:[%s1386 + $0xc] sm:$0xf]
        %v1391 = vld [vmem:[%s1386 + $0x10] sm:$0xf]
        %v1392 = vld [vmem:[%s1386 + $0x14] sm:$0xf]
        %v1393 = vld [vmem:[%s1386 + $0x18] sm:$0xf]
        %v1394 = vld [vmem:[%s1386 + $0x1c] sm:$0xf]
        %v1395 = vld [vmem:[%s1386 + $0x20] sm:$0xf]
        %v1396 = vld [vmem:[%s1386 + $0x24] sm:$0xf]
        %v1397 = vld [vmem:[%s1386 + $0x28] sm:$0xf]
        %v1398 = vld [vmem:[%s1386 + $0x2c] sm:$0xf]
        %v1399 = vld [vmem:[%s1386 + $0x30] sm:$0xf]
        %v1400 = vld [vmem:[%s1386 + $0x34] sm:$0xf]
        %v1401 = vld [vmem:[%s1386 + $0x38] sm:$0xf]
        %v1402 = vld [vmem:[%s1386 + $0x3c] sm:$0xf]
        %v1403 = vld [vmem:[%s1386 + $0x40] sm:$0xf]
        %v1404 = vld [vmem:[%s1386 + $0x44] sm:$0xf]
        %v1405 = vld [vmem:[%s1386 + $0x48] sm:$0xf]
        %v1406 = vld [vmem:[%s1386 + $0x4c] sm:$0xf]
        %v1407 = vld [vmem:[%s1386 + $0x50] sm:$0xf]
        %v1408 = vld [vmem:[%s1386 + $0x54] sm:$0xf]
        %v1409 = vld [vmem:[%s1386 + $0x58] sm:$0xf]
        %v1410 = vld [vmem:[%s1386 + $0x5c] sm:$0xf]
        %v1411 = vld [vmem:[%s1386 + $0x60] sm:$0xf]
        %v1412 = vld [vmem:[%s1386 + $0x64] sm:$0xf]
        %v1413 = vld [vmem:[%s1386 + $0x68] sm:$0xf]
        %v1414 = vld [vmem:[%s1386 + $0x6c] sm:$0xf]
        %v1415 = vld [vmem:[%s1386 + $0x70] sm:$0xf]
        %v1416 = vld [vmem:[%s1386 + $0x74] sm:$0xf]
        %v1417 = vld [vmem:[%s1386 + $0x78] sm:$0xf]
        %v1418 = vld [vmem:[%s1386 + $0x7c] sm:$0xf]
        %v1419 = vld [vmem:[%s1386 + $0x80] sm:$0xf]
        %v1420 = vld [vmem:[%s1386 + $0x84] sm:$0xf]
        %v1421 = vld [vmem:[%s1386 + $0x88] sm:$0xf]
        %v1422 = vld [vmem:[%s1386 + $0x8c] sm:$0xf]
        %v1423 = vld [vmem:[%s1386 + $0x90] sm:$0xf]
        %v1424 = vld [vmem:[%s1386 + $0x94] sm:$0xf]
        %v1425 = vld [vmem:[%s1386 + $0x98] sm:$0xf]
        %v1426 = vld [vmem:[%s1386 + $0x9c] sm:$0xf]
        %v1427 = vld [vmem:[%s1386 + $0xa0] sm:$0xf]
        %v1428 = vld [vmem:[%s1386 + $0xa4] sm:$0xf]
        %v1429 = vld [vmem:[%s1386 + $0xa8] sm:$0xf]
        %v1430 = vld [vmem:[%s1386 + $0xac] sm:$0xf]
        %v1431 = vld [vmem:[%s1386 + $0xb0] sm:$0xf]
        %v1432 = vld [vmem:[%s1386 + $0xb4] sm:$0xf]
        %v1433 = vld [vmem:[%s1386 + $0xb8] sm:$0xf]
        %v1434 = vld [vmem:[%s1386 + $0xbc] sm:$0xf]
        %v1435 = vld [vmem:[%s1386 + $0xc0] sm:$0xf]
        %v1436 = vld [vmem:[%s1386 + $0xc4] sm:$0xf]
        %v1437 = vld [vmem:[%s1386 + $0xc8] sm:$0xf]
        %v1438 = vld [vmem:[%s1386 + $0xcc] sm:$0xf]
        %v1439 = vld [vmem:[%s1386 + $0xd0] sm:$0xf]
        %v1440 = vld [vmem:[%s1386 + $0xd4] sm:$0xf]
        %v1441 = vld [vmem:[%s1386 + $0xd8] sm:$0xf]
        %v1442 = vld [vmem:[%s1386 + $0xdc] sm:$0xf]
        %v1443 = vld [vmem:[%s1386 + $0xe0] sm:$0xf]
        %v1444 = vld [vmem:[%s1386 + $0xe4] sm:$0xf]
        %v1445 = vld [vmem:[%s1386 + $0xe8] sm:$0xf]
        %v1446 = vld [vmem:[%s1386 + $0xec] sm:$0xf]
        %v1447 = vld [vmem:[%s1386 + $0xf0] sm:$0xf]
        %v1448 = vld [vmem:[%s1386 + $0xf4] sm:$0xf]
        %v1449 = vld [vmem:[%s1386 + $0xf8] sm:$0xf]
        %v1450 = vld [vmem:[%s1386 + $0xfc] sm:$0xf]
        %v1515 = vunpack.c.l.b16 %v1387
        %v1516 = vunpack.c.l.b16 %v1388
        %v1517 = vunpack.c.l.b16 %v1389
        %v1518 = vunpack.c.l.b16 %v1390
        %v1519 = vunpack.c.l.b16 %v1391
        %v1520 = vunpack.c.l.b16 %v1392
        %v1521 = vunpack.c.l.b16 %v1393
        %v1522 = vunpack.c.l.b16 %v1394
        %v1523 = vunpack.c.l.b16 %v1395
        %v1524 = vunpack.c.l.b16 %v1396
        %v1525 = vunpack.c.l.b16 %v1397
        %v1526 = vunpack.c.l.b16 %v1398
        %v1527 = vunpack.c.l.b16 %v1399
        %v1528 = vunpack.c.l.b16 %v1400
        %v1529 = vunpack.c.l.b16 %v1401
        %v1530 = vunpack.c.l.b16 %v1402
        %v1531 = vunpack.c.l.b16 %v1403
        %v1532 = vunpack.c.l.b16 %v1404
        %v1533 = vunpack.c.l.b16 %v1405
        %v1534 = vunpack.c.l.b16 %v1406
        %v1535 = vunpack.c.l.b16 %v1407
        %v1536 = vunpack.c.l.b16 %v1408
        %v1537 = vunpack.c.l.b16 %v1409
        %v1538 = vunpack.c.l.b16 %v1410
        %v1539 = vunpack.c.l.b16 %v1411
        %v1540 = vunpack.c.l.b16 %v1412
        %v1541 = vunpack.c.l.b16 %v1413
        %v1542 = vunpack.c.l.b16 %v1414
        %v1543 = vunpack.c.l.b16 %v1415
        %v1544 = vunpack.c.l.b16 %v1416
        %v1545 = vunpack.c.l.b16 %v1417
        %v1546 = vunpack.c.l.b16 %v1418
        %v1547 = vunpack.c.l.b16 %v1419
        %v1548 = vunpack.c.l.b16 %v1420
        %v1549 = vunpack.c.l.b16 %v1421
        %v1550 = vunpack.c.l.b16 %v1422
        %v1551 = vunpack.c.l.b16 %v1423
        %v1552 = vunpack.c.l.b16 %v1424
        %v1553 = vunpack.c.l.b16 %v1425
        %v1554 = vunpack.c.l.b16 %v1426
        %v1555 = vunpack.c.l.b16 %v1427
        %v1556 = vunpack.c.l.b16 %v1428
        %v1557 = vunpack.c.l.b16 %v1429
        %v1558 = vunpack.c.l.b16 %v1430
        %v1559 = vunpack.c.l.b16 %v1431
        %v1560 = vunpack.c.l.b16 %v1432
        %v1561 = vunpack.c.l.b16 %v1433
        %v1562 = vunpack.c.l.b16 %v1434
        %v1563 = vunpack.c.l.b16 %v1435
        %v1564 = vunpack.c.l.b16 %v1436
        %v1565 = vunpack.c.l.b16 %v1437
        %v1566 = vunpack.c.l.b16 %v1438
        %v1567 = vunpack.c.l.b16 %v1439
        %v1568 = vunpack.c.l.b16 %v1440
        %v1569 = vunpack.c.l.b16 %v1441
        %v1570 = vunpack.c.l.b16 %v1442
        %v1571 = vunpack.c.l.b16 %v1443
        %v1572 = vunpack.c.l.b16 %v1444
        %v1573 = vunpack.c.l.b16 %v1445
        %v1574 = vunpack.c.l.b16 %v1446
        %v1575 = vunpack.c.l.b16 %v1447
        %v1576 = vunpack.c.l.b16 %v1448
        %v1577 = vunpack.c.l.b16 %v1449
        %v1578 = vunpack.c.l.b16 %v1450
        %v1579 = vpack.c.b16 %v1516, %v1515
        %v1580 = vpack.c.b16 %v1518, %v1517
        %v1581 = vpack.c.b16 %v1520, %v1519
        %v1582 = vpack.c.b16 %v1522, %v1521
        %v1583 = vpack.c.b16 %v1524, %v1523
        %v1584 = vpack.c.b16 %v1526, %v1525
        %v1585 = vpack.c.b16 %v1528, %v1527
        %v1586 = vpack.c.b16 %v1530, %v1529
        %v1587 = vpack.c.b16 %v1532, %v1531
        %v1588 = vpack.c.b16 %v1534, %v1533
        %v1589 = vpack.c.b16 %v1536, %v1535
        %v1590 = vpack.c.b16 %v1538, %v1537
        %v1591 = vpack.c.b16 %v1540, %v1539
        %v1592 = vpack.c.b16 %v1542, %v1541
        %v1593 = vpack.c.b16 %v1544, %v1543
        %v1594 = vpack.c.b16 %v1546, %v1545
        %v1595 = vpack.c.b16 %v1548, %v1547
        %v1596 = vpack.c.b16 %v1550, %v1549
        %v1597 = vpack.c.b16 %v1552, %v1551
        %v1598 = vpack.c.b16 %v1554, %v1553
        %v1599 = vpack.c.b16 %v1556, %v1555
        %v1600 = vpack.c.b16 %v1558, %v1557
        %v1601 = vpack.c.b16 %v1560, %v1559
        %v1602 = vpack.c.b16 %v1562, %v1561
        %v1603 = vpack.c.b16 %v1564, %v1563
        %v1604 = vpack.c.b16 %v1566, %v1565
        %v1605 = vpack.c.b16 %v1568, %v1567
        %v1606 = vpack.c.b16 %v1570, %v1569
        %v1607 = vpack.c.b16 %v1572, %v1571
        %v1608 = vpack.c.b16 %v1574, %v1573
        %v1609 = vpack.c.b16 %v1576, %v1575
        %v1610 = vpack.c.b16 %v1578, %v1577
        %1643 = vmatpush.bf16.msra.mxu0 %v1586
        %1644 = vmatpush.bf16.msra.mxu0 %v1585
        %1645 = vmatpush.bf16.msra.mxu0 %v1584
        %1646 = vmatpush.bf16.msra.mxu0 %v1583
        %1647 = vmatpush.bf16.msra.mxu0 %v1582
        %1648 = vmatpush.bf16.msra.mxu0 %v1581
        %1649 = vmatpush.bf16.msra.mxu0 %v1580
        %1650 = vmatpush.bf16.msra.mxu0 %v1579
        %1651 = vmatmul.bf16.gmra.mxu0 %v1382
        %v1652 = vpop.f32.mrf.mxu0
        %v1653 = vadd.f32 0.0, %v1652
        %v1654 = vpop.f32.mrf.mxu0
        %1655 = vdwg.mxu0
        %1656 = vmatpush.bf16.msra.mxu0 %v1594
        %1657 = vmatpush.bf16.msra.mxu0 %v1593
        %1658 = vmatpush.bf16.msra.mxu0 %v1592
        %1659 = vmatpush.bf16.msra.mxu0 %v1591
        %1660 = vmatpush.bf16.msra.mxu0 %v1590
        %1661 = vmatpush.bf16.msra.mxu0 %v1589
        %1662 = vmatpush.bf16.msra.mxu0 %v1588
        %1663 = vmatpush.bf16.msra.mxu0 %v1587
        %1664 = vmatmul.bf16.gmra.mxu0 %v1383
        %v1665 = vpop.f32.mrf.mxu0
        %v1666 = vadd.f32 %v1653, %v1665
        %v1667 = vpop.f32.mrf.mxu0
        %1668 = vdwg.mxu0
        %1669 = vmatpush.bf16.msra.mxu0 %v1602
        %1670 = vmatpush.bf16.msra.mxu0 %v1601
        %1671 = vmatpush.bf16.msra.mxu0 %v1600
        %1672 = vmatpush.bf16.msra.mxu0 %v1599
        %1673 = vmatpush.bf16.msra.mxu0 %v1598
        %1674 = vmatpush.bf16.msra.mxu0 %v1597
        %1675 = vmatpush.bf16.msra.mxu0 %v1596
        %1676 = vmatpush.bf16.msra.mxu0 %v1595
        %1677 = vmatmul.bf16.gmra.mxu0 %v1384
        %v1678 = vpop.f32.mrf.mxu0
        %v1679 = vadd.f32 %v1666, %v1678
        %v1680 = vpop.f32.mrf.mxu0
        %1681 = vdwg.mxu0
        %1682 = vmatpush.bf16.msra.mxu0 %v1610
        %1683 = vmatpush.bf16.msra.mxu0 %v1609
        %1684 = vmatpush.bf16.msra.mxu0 %v1608
        %1685 = vmatpush.bf16.msra.mxu0 %v1607
        %1686 = vmatpush.bf16.msra.mxu0 %v1606
        %1687 = vmatpush.bf16.msra.mxu0 %v1605
        %1688 = vmatpush.bf16.msra.mxu0 %v1604
        %1689 = vmatpush.bf16.msra.mxu0 %v1603
        %1690 = vmatmul.bf16.gmra.mxu0 %v1385
        %v1691 = vpop.f32.mrf.mxu0
        %v1692 = vadd.f32 %v1679, %v1691
        %v1693 = vpop.f32.mrf.mxu0
        %1694 = vdwg.mxu0
        %v1695 = vadd.f32 %v1381, %v1692
        %1696 = vst [vmem:[#allocation2 + $0x8] sm:$0xff] %v1695
        %p1697 = scmp.eq.s32.totalorder %s29, 3
        // Predicated region
        $region81: #{teann_forward.2} parent=55 // pred_check
          %p1698 = pneg %p1697
        $region82: #{teann_forward.2} parent=55 // pred_check_branch
          %1700 = sbr.rel (%p1698) target = $region84
        $region83: #{teann_forward.2} parent=55 // pred_region
          %v1701 = vld [vmem:[#allocation2] sm:$0xff]
          %v1702 = vld [vmem:[#allocation2 + $0x8] sm:$0xff]
          %v1703 = vld [vmem:[%s6] sm:$0x1]
          %v1704 = vld [vmem:[%s7] sm:$0x1]
          %v1705 = vld [vmem:[%s8] sm:$0x1]
          %v1706 = vperm.slane %v1703, 0
          %v1707 = vadd.f32 %v1701, %v1706
          %v1708 = vrot.slane %v1707, 4
          %v1709 = vadd.f32 %v1707, %v1708
          %v1710 = vrot.slane %v1709, 2
          %v1711 = vadd.f32 %v1709, %v1710
          %v1712 = vrot.slane %v1711, 1
          %v1713 = vadd.f32 %v1711, %v1712
          %v1714 = vmul.f32 %v1713, %v786
          %v1715 = vsub.f32 %v1707, %v1714
          %v1716 = vmul.f32 %v1715, %v1715
          %v1717 = vrot.slane %v1716, 4
          %v1718 = vadd.f32 %v1716, %v1717
          %v1719 = vrot.slane %v1718, 2
          %v1720 = vadd.f32 %v1718, %v1719
          %v1721 = vrot.slane %v1720, 1
          %v1722 = vadd.f32 %v1720, %v1721
          %v1723 = vmul.f32 %v1722, %v786
          %v1724 = vperm.slane %v1704, 0
          %v1725 = vmul.f32 %v1724, %v1715
          %v1726 = vadd.f32 %v1723, 1e-05
          %v1727 = vrsqrt.pop %v1726
          %v1728 = vmul.f32 %v1727, %v1726
          %v1729 = vmul.f32 %v1728, %v1727
          %v1730 = vmul.f32 0.5, %v1729
          %v1731 = vsub.f32 1.5, %v1730
          %v1732 = vmul.f32 %v1727, %v1731
          %vm1733 = vweird.f32 %v1726
          %vm1734 = vweird.f32 %v1727
          %vm1735 = vmor %vm1733, %vm1734
          %v1736 = vsel %vm1735, %v1727, %v1732
          %v1737 = vmul.f32 %v1725, %v1736
          %v1738 = vperm.slane %v1705, 0
          %v1739 = vadd.f32 %v1737, %v1738
          %v1740 = vtanh.pop %v1739
          %1741 = vst [vmem:[%s9] sm:$0xff] %v1740
          %v1742 = vld [vmem:[%s6 + $0x1] sm:$0x1]
          %v1743 = vld [vmem:[%s7 + $0x1] sm:$0x1]
          %v1744 = vld [vmem:[%s8 + $0x1] sm:$0x1]
          %v1745 = vperm.slane %v1742, 0
          %v1746 = vadd.f32 %v1702, %v1745
          %v1747 = vrot.slane %v1746, 4
          %v1748 = vadd.f32 %v1746, %v1747
          %v1749 = vrot.slane %v1748, 2
          %v1750 = vadd.f32 %v1748, %v1749
          %v1751 = vrot.slane %v1750, 1
          %v1752 = vadd.f32 %v1750, %v1751
          %v1753 = vmul.f32 %v1752, %v786
          %v1754 = vsub.f32 %v1746, %v1753
          %v1755 = vmul.f32 %v1754, %v1754
          %v1756 = vrot.slane %v1755, 4
          %v1757 = vadd.f32 %v1755, %v1756
          %v1758 = vrot.slane %v1757, 2
          %v1759 = vadd.f32 %v1757, %v1758
          %v1760 = vrot.slane %v1759, 1
          %v1761 = vadd.f32 %v1759, %v1760
          %v1762 = vmul.f32 %v1761, %v786
          %v1763 = vperm.slane %v1743, 0
          %v1764 = vmul.f32 %v1763, %v1754
          %v1765 = vadd.f32 %v1762, 1e-05
          %v1766 = vrsqrt.pop %v1765
          %v1767 = vmul.f32 %v1766, %v1765
          %v1768 = vmul.f32 %v1767, %v1766
          %v1769 = vmul.f32 0.5, %v1768
          %v1770 = vsub.f32 1.5, %v1769
          %v1771 = vmul.f32 %v1766, %v1770
          %vm1772 = vweird.f32 %v1765
          %vm1773 = vweird.f32 %v1766
          %vm1774 = vmor %vm1772, %vm1773
          %v1775 = vsel %vm1774, %v1766, %v1771
          %v1776 = vmul.f32 %v1764, %v1775
          %v1777 = vperm.slane %v1744, 0
          %v1778 = vadd.f32 %v1776, %v1777
          %v1779 = vtanh.pop %v1778
          %1780 = vst [vmem:[%s9 + $0x8] sm:$0xff] %v1779
        $region84: #{teann_forward.2} parent=55 // pred_fallthru
          _
        // Predicated region
        $region85: #{teann_forward.2} parent=55 // pred_check
          %p1781 = pneg %p256
        $region86: #{teann_forward.2} parent=55 // pred_check_branch
          %1783 = sbr.rel (%p1781) target = $region88
        $region87: #{teann_forward.2} parent=55 // pred_region
          _
        $region88: #{teann_forward.2} parent=55 // pred_fallthru
          _
        // Predicated region
        $region89: #{teann_forward.2} parent=55 // pred_check
          %p1784 = pneg %p256
        $region90: #{teann_forward.2} parent=55 // pred_check_branch
          %1786 = sbr.rel (%p1784) target = $region92
        $region91: #{teann_forward.2} parent=55 // pred_region
          _
        $region92: #{teann_forward.2} parent=55 // pred_fallthru
          _
      $region56: #{teann_forward.2} parent=5 // pred_fallthru
        _
      %p1787 = scmp.le.s32.totalorder 2, %s24
      // Predicated region
      $region93: #{teann_forward.2} parent=5 // pred_check
        %p1788 = pneg %p1787
      $region94: #{teann_forward.2} parent=5 // pred_check_branch
        %1790 = sbr.rel (%p1788) target = $region96
      $region95: #{teann_forward.2} parent=5 // pred_region
        %s1791 = ssub.s32 %s24, 2
      $region96: #{teann_forward.2} parent=5 // pred_fallthru
        _
    $region6: #{teann_forward.2} parent=1 // loop_footer
      %s28 = sadd.s32 1, %s24
    $region7: #{teann_forward.2} parent=1 // loop_footer_branch
      %23 = sbr.rel target = $region3
    $region8: #{teann_forward.2} parent=1 // loop_exit
      _
    %1792 = vsyncpa [#allocation4], 1
    %s1793 = scalar_lea.sflag [#allocation4], 1
    %1794 = vsyncpa %s1793, 1
    %1795 = vsyncpa [#allocation6], 1
    %s1796 = scalar_lea.sflag [#allocation6], 1
    %1797 = vsyncpa %s1796, 1
    %1798 = vsyncpa [#allocation9], 1
    %s1799 = scalar_lea.sflag [#allocation9], 1
    %1800 = vsyncpa %s1799, 1

// kernel: teann_forward.3
$region0: #{teann_forward.3}
  #allocation0 [shape = 'u32[]', space=smem, size = 0x4, offset = 0x4, fixed_abs, tag = 'smem constant byte address 0x4 - core index']
  #allocation1 [shape = 'u32[72,128]{1,0:T(1,128)}', space=vmem, size = 0x9000, scoped, tag = 'internal scratch']
  %s0 = inlined_call_operand.smem [shape: u32[33], index: -1, kind: input, shape index: {}]
  %s1 = sld [smem:[%s0]]
  %s2 = scalar_lea.smem %s0, 1
  %s3 = sld [smem:[%s2]]
  %s4 = scalar_lea.smem %s0, 2
  %s5 = sld [smem:[%s4]]
  %s6 = scalar_lea.smem %s0, 3
  %s7 = sld [smem:[%s6]]
  %s8 = scalar_lea.smem %s0, 4
  %s9 = sld [smem:[%s8]]
  %s10 = scalar_lea.smem %s0, 5
  %s11 = sld [smem:[%s10]]
  %s12 = scalar_lea.smem %s0, 6
  %s13 = sld [smem:[%s12]]
  %s14 = scalar_lea.smem %s0, 7
  %s15 = sld [smem:[%s14]]
  %s16 = scalar_lea.smem %s0, 8
  %s17 = sld [smem:[%s16]]
  %s18 = scalar_lea.smem %s0, 9
  %s19 = sld [smem:[%s18]]
  %s20 = scalar_lea.smem %s0, 10
  %s21 = sld [smem:[%s20]]
  %s22 = scalar_lea.smem %s0, 11
  %s23 = sld [smem:[%s22]]
  %s24 = scalar_lea.smem %s0, 12
  %s25 = sld [smem:[%s24]]
  %s26 = scalar_lea.smem %s0, 13
  %s27 = sld [smem:[%s26]]
  %s28 = scalar_lea.smem %s0, 14
  %s29 = sld [smem:[%s28]]
  %s30 = scalar_lea.smem %s0, 15
  %s31 = sld [smem:[%s30]]
  %s32 = scalar_lea.smem %s0, 16
  %s33 = sld [smem:[%s32]]
  %s34 = scalar_lea.smem %s0, 17
  %s35 = sld [smem:[%s34]]
  %s36 = scalar_lea.smem %s0, 18
  %s37 = sld [smem:[%s36]]
  %s38 = scalar_lea.smem %s0, 19
  %s39 = sld [smem:[%s38]]
  %s40 = scalar_lea.smem %s0, 20
  %s41 = sld [smem:[%s40]]
  %s42 = scalar_lea.smem %s0, 21
  %s43 = sld [smem:[%s42]]
  %s44 = scalar_lea.smem %s0, 22
  %s45 = sld [smem:[%s44]]
  %s46 = scalar_lea.smem %s0, 23
  %s47 = sld [smem:[%s46]]
  %s48 = scalar_lea.smem %s0, 24
  %s49 = sld [smem:[%s48]]
  %s50 = scalar_lea.smem %s0, 25
  %s51 = sld [smem:[%s50]]
  %s52 = scalar_lea.smem %s0, 26
  %s53 = sld [smem:[%s52]]
  %s54 = scalar_lea.smem %s0, 27
  %s55 = sld [smem:[%s54]]
  %s56 = scalar_lea.smem %s0, 28
  %s57 = sld [smem:[%s56]]
  %s58 = scalar_lea.smem %s0, 29
  %s59 = sld [smem:[%s58]]
  %s60 = scalar_lea.smem %s0, 30
  %s61 = sld [smem:[%s60]]
  %s62 = scalar_lea.smem %s0, 31
  %s63 = sld [smem:[%s62]]
  %s64 = scalar_lea.smem %s0, 32
  %s65 = sld [smem:[%s64]]
  %66 = xla_tuple %s51, %s53, %s55, %s57, %s59, %s61, %s63, %s65
  %s67 = sld [smem:[#allocation0]]
  $region226: #{teann_forward.3} parent=0
    _
  %s69 = ssub.s32 1, %s67
  %s70 = scalar_select 0, %s69, %s67
  $region1: #{teann_forward.3} parent=0
    #allocation2 [shape = 'u8[24576]{0}', space=vmem, size = 0x6000, scoped, tag = 'input window, operand 0, single buffered']
    #allocation3 [shape = 's32[1]{0}', space=sflag, size = 0x4, scoped, tag = 'scoped memory for teann_forward.3']
    #allocation4 [shape = 's32[1]{0}', space=sflag, size = 0x4, scoped, tag = 'scoped memory for teann_forward.3']
    #allocation5 [shape = 'u8[155648]{0}', space=vmem, size = 0x26000, scoped, tag = 'input window, operand 3, single buffered']
    #allocation6 [shape = 's32[1]{0}', space=sflag, size = 0x4, scoped, tag = 'scoped memory for teann_forward.3']
    #allocation7 [shape = 'u8[65536]{0}', space=vmem, size = 0x10000, scoped, tag = 'input window, operand 4, single buffered']
    #allocation8 [shape = 'u8[65536]{0}', space=vmem, size = 0x10000, scoped, tag = 'input window, operand 9, single buffered']
    #allocation9 [shape = 's32[1]{0}', space=sflag, size = 0x4, scoped, tag = 'scoped memory for teann_forward.3']
    #allocation10 [shape = 'u8[512]{0}', space=vmem, size = 0x400, scoped, tag = 'input window, operand 10, single buffered']
    #allocation11 [shape = 'u8[8192]{0}', space=vmem, size = 0x2000, scoped, tag = 'input window, operand 11, single buffered']
    #allocation12 [shape = 's32[1]{0}', space=sflag, size = 0x4, scoped, tag = 'scoped memory for teann_forward.3']
    #allocation13 [shape = 'u8[8192]{0}', space=vmem, size = 0x2000, scoped, tag = 'input window, operand 15, single buffered']
    #allocation14 [shape = 'u8[512]{0}', space=vmem, size = 0x400, scoped, tag = 'input window, operand 16, single buffered']
    #allocation15 [shape = 's32[1]{0}', space=sflag, size = 0x4, scoped, tag = 'scoped memory for teann_forward.3']
    #allocation16 [shape = 'u8[8192]{0}', space=vmem, size = 0x2000, scoped, tag = 'input window, operand 17, single buffered']
    #allocation17 [shape = 'u8[512]{0}', space=vmem, size = 0x400, scoped, tag = 'input window, operand 18, single buffered']
    #allocation18 [shape = 's32[1]{0}', space=sflag, size = 0x4, scoped, tag = 'scoped memory for teann_forward.3']
    #allocation19 [shape = 'u8[32768]{0}', space=vmem, size = 0x8000, scoped, tag = 'input window, operand 20, single buffered']
    #allocation20 [shape = 'u8[32768]{0}', space=vmem, size = 0x8000, scoped, tag = 'input window, operand 21, single buffered']
    #allocation21 [shape = 's32[1]{0}', space=sflag, size = 0x4, scoped, tag = 'scoped memory for teann_forward.3']
    #allocation22 [shape = 'u8[512]{0}', space=vmem, size = 0x400, scoped, tag = 'input window, operand 22, single buffered']
    #allocation23 [shape = 'u8[32768]{0}', space=vmem, size = 0x8000, scoped, tag = 'input window, operand 23, single buffered']
    #allocation24 [shape = 's32[1]{0}', space=sflag, size = 0x4, scoped, tag = 'scoped memory for teann_forward.3']
    #allocation25 [shape = 'u8[512]{0}', space=vmem, size = 0x400, scoped, tag = 'input window, operand 24, single buffered']
    #allocation26 [shape = 'u8[8192]{0}', space=vmem, size = 0x2000, scoped, tag = 'output window, operand 6, single buffered']
    #allocation27 [shape = 'u8[8192]{0}', space=vmem, size = 0x2000, scoped, tag = 'output window, operand 7, single buffered']
    #allocation28 [shape = 's32[1]{0}', space=sflag, size = 0x4, scoped, tag = 'scoped memory for teann_forward.3']
    %71 = vsyncpa [#allocation3], 0
    %72 = vsyncpa [#allocation6], 0
    %73 = vsyncpa [#allocation9], 0
    %74 = vsyncpa [#allocation12], 0
    %75 = vsyncpa [#allocation15], 0
    %76 = vsyncpa [#allocation18], 0
    %77 = vsyncpa [#allocation21], 0
    %78 = vsyncpa [#allocation24], 0
    %79 = vsyncpa [#allocation4], 0
    %80 = vsyncpa [#allocation28], 0
    // Predicated region
    $region2: #{teann_forward.3} parent=1 // pred_check
      _
    $region3: #{teann_forward.3} parent=1 // pred_check_branch
      %82 = sbr.rel (0) target = $region5
    $region4: #{teann_forward.3} parent=1 // pred_region
      %84 = vsyncadd [#allocation3], 0
      %s85 = sshll.u32 %s1, 4
      %s86 = int_to_ptr.hbm [resolvable:$true] %s85
      %s87 = sshll.u32 [#allocation2], 4
      %s88 = int_to_ptr.vmem [resolvable:$true] %s87
      %93 = dma.hbm_to_vmem [thread:$0]  %s86, 768, %s88, [#allocation3], 384, 384, 24
    $region5: #{teann_forward.3} parent=1 // pred_fallthru
      _
    // Predicated region
    $region6: #{teann_forward.3} parent=1 // pred_check
      _
    $region7: #{teann_forward.3} parent=1 // pred_check_branch
      %95 = sbr.rel (0) target = $region9
    $region8: #{teann_forward.3} parent=1 // pred_region
      _
    $region9: #{teann_forward.3} parent=1 // pred_fallthru
      _
    // Predicated region
    $region10: #{teann_forward.3} parent=1 // pred_check
      _
    $region11: #{teann_forward.3} parent=1 // pred_check_branch
      %97 = sbr.rel (0) target = $region13
    $region12: #{teann_forward.3} parent=1 // pred_region
      _
    $region13: #{teann_forward.3} parent=1 // pred_fallthru
      _
    // Predicated region
    $region14: #{teann_forward.3} parent=1 // pred_check
      _
    $region15: #{teann_forward.3} parent=1 // pred_check_branch
      %99 = sbr.rel (0) target = $region17
    $region16: #{teann_forward.3} parent=1 // pred_region
      %101 = vsyncadd [#allocation6], 0
      %s102 = sshll.u32 %s7, 4
      %s103 = int_to_ptr.hbm [resolvable:$true] %s102
      %s104 = sshll.u32 [#allocation5], 4
      %s105 = int_to_ptr.vmem [resolvable:$true] %s104
      %110 = dma.hbm_to_vmem [thread:$0]  %s103, 4864, %s105, [#allocation6], 128, 128, 8
    $region17: #{teann_forward.3} parent=1 // pred_fallthru
      _
    // Predicated region
    $region18: #{teann_forward.3} parent=1 // pred_check
      _
    $region19: #{teann_forward.3} parent=1 // pred_check_branch
      %112 = sbr.rel (0) target = $region21
    $region20: #{teann_forward.3} parent=1 // pred_region
      %114 = vsyncadd [#allocation6], 0
      %s115 = sshll.u32 %s9, 4
      %s116 = int_to_ptr.hbm [resolvable:$true] %s115
      %s117 = sshll.u32 [#allocation7], 4
      %s118 = int_to_ptr.vmem [resolvable:$true] %s117
      %123 = dma.hbm_to_vmem [thread:$0]  %s116, 2048, %s118, [#allocation6], 128, 128, 8
    $region21: #{teann_forward.3} parent=1 // pred_fallthru
      _
    // Predicated region
    $region22: #{teann_forward.3} parent=1 // pred_check
      _
    $region23: #{teann_forward.3} parent=1 // pred_check_branch
      %125 = sbr.rel (0) target = $region25
    $region24: #{teann_forward.3} parent=1 // pred_region
      _
    $region25: #{teann_forward.3} parent=1 // pred_fallthru
      _
    // Predicated region
    $region26: #{teann_forward.3} parent=1 // pred_check
      _
    $region27: #{teann_forward.3} parent=1 // pred_check_branch
      %127 = sbr.rel (0) target = $region29
    $region28: #{teann_forward.3} parent=1 // pred_region
      _
    $region29: #{teann_forward.3} parent=1 // pred_fallthru
      _
    // Predicated region
    $region30: #{teann_forward.3} parent=1 // pred_check
      _
    $region31: #{teann_forward.3} parent=1 // pred_check_branch
      %129 = sbr.rel (0) target = $region33
    $region32: #{teann_forward.3} parent=1 // pred_region
      _
    $region33: #{teann_forward.3} parent=1 // pred_fallthru
      _
    // Predicated region
    $region34: #{teann_forward.3} parent=1 // pred_check
      _
    $region35: #{teann_forward.3} parent=1 // pred_check_branch
      %131 = sbr.rel (0) target = $region37
    $region36: #{teann_forward.3} parent=1 // pred_region
      _
    $region37: #{teann_forward.3} parent=1 // pred_fallthru
      _
    // Predicated region
    $region38: #{teann_forward.3} parent=1 // pred_check
      _
    $region39: #{teann_forward.3} parent=1 // pred_check_branch
      %133 = sbr.rel (0) target = $region41
    $region40: #{teann_forward.3} parent=1 // pred_region
      %135 = vsyncadd [#allocation9], 0
      %s136 = sshll.u32 %s19, 4
      %s137 = int_to_ptr.hbm [resolvable:$true] %s136
      %s138 = sshll.u32 [#allocation8], 4
      %s139 = int_to_ptr.vmem [resolvable:$true] %s138
      %144 = dma.hbm_to_vmem [thread:$0]  %s137, 2048, %s139, [#allocation9], 128, 128, 8
    $region41: #{teann_forward.3} parent=1 // pred_fallthru
      _
    // Predicated region
    $region42: #{teann_forward.3} parent=1 // pred_check
      _
    $region43: #{teann_forward.3} parent=1 // pred_check_branch
      %146 = sbr.rel (0) target = $region45
    $region44: #{teann_forward.3} parent=1 // pred_region
      %148 = vsyncadd [#allocation9], 0
      %s150 = sshll.u32 %s21, 4
      %s151 = int_to_ptr.hbm [resolvable:$true] %s150
      %s152 = sshll.u32 [#allocation10], 4
      %s153 = int_to_ptr.vmem [resolvable:$true] %s152
      %155 = dma.hbm_to_vmem [thread:$0]  %s151, 16, %s153, [#allocation9]
    $region45: #{teann_forward.3} parent=1 // pred_fallthru
      _
    // Predicated region
    $region46: #{teann_forward.3} parent=1 // pred_check
      _
    $region47: #{teann_forward.3} parent=1 // pred_check_branch
      %157 = sbr.rel (0) target = $region49
    $region48: #{teann_forward.3} parent=1 // pred_region
      %159 = vsyncadd [#allocation12], 0
      %s160 = sshll.u32 %s23, 4
      %s161 = int_to_ptr.hbm [resolvable:$true] %s160
      %s162 = sshll.u32 [#allocation11], 4
      %s163 = int_to_ptr.vmem [resolvable:$true] %s162
      %168 = dma.hbm_to_vmem [thread:$0]  %s161, 256, %s163, [#allocation12], 128, 128, 8
    $region49: #{teann_forward.3} parent=1 // pred_fallthru
      _
    // Predicated region
    $region50: #{teann_forward.3} parent=1 // pred_check
      _
    $region51: #{teann_forward.3} parent=1 // pred_check_branch
      %170 = sbr.rel (0) target = $region53
    $region52: #{teann_forward.3} parent=1 // pred_region
      _
    $region53: #{teann_forward.3} parent=1 // pred_fallthru
      _
    // Predicated region
    $region54: #{teann_forward.3} parent=1 // pred_check
      _
    $region55: #{teann_forward.3} parent=1 // pred_check_branch
      %172 = sbr.rel (0) target = $region57
    $region56: #{teann_forward.3} parent=1 // pred_region
      _
    $region57: #{teann_forward.3} parent=1 // pred_fallthru
      _
    // Predicated region
    $region58: #{teann_forward.3} parent=1 // pred_check
      _
    $region59: #{teann_forward.3} parent=1 // pred_check_branch
      %174 = sbr.rel (0) target = $region61
    $region60: #{teann_forward.3} parent=1 // pred_region
      _
    $region61: #{teann_forward.3} parent=1 // pred_fallthru
      _
    // Predicated region
    $region62: #{teann_forward.3} parent=1 // pred_check
      _
    $region63: #{teann_forward.3} parent=1 // pred_check_branch
      %176 = sbr.rel (0) target = $region65
    $region64: #{teann_forward.3} parent=1 // pred_region
      %178 = vsyncadd [#allocation12], 0
      %s179 = sshll.u32 %s31, 4
      %s180 = int_to_ptr.hbm [resolvable:$true] %s179
      %s181 = sshll.u32 [#allocation13], 4
      %s182 = int_to_ptr.vmem [resolvable:$true] %s181
      %187 = dma.hbm_to_vmem [thread:$0]  %s180, 256, %s182, [#allocation12], 128, 128, 8
    $region65: #{teann_forward.3} parent=1 // pred_fallthru
      _
    // Predicated region
    $region66: #{teann_forward.3} parent=1 // pred_check
      _
    $region67: #{teann_forward.3} parent=1 // pred_check_branch
      %189 = sbr.rel (0) target = $region69
    $region68: #{teann_forward.3} parent=1 // pred_region
      %191 = vsyncadd [#allocation15], 0
      %s193 = sshll.u32 %s33, 4
      %s194 = int_to_ptr.hbm [resolvable:$true] %s193
      %s195 = sshll.u32 [#allocation14], 4
      %s196 = int_to_ptr.vmem [resolvable:$true] %s195
      %198 = dma.hbm_to_vmem [thread:$0]  %s194, 16, %s196, [#allocation15]
    $region69: #{teann_forward.3} parent=1 // pred_fallthru
      _
    // Predicated region
    $region70: #{teann_forward.3} parent=1 // pred_check
      _
    $region71: #{teann_forward.3} parent=1 // pred_check_branch
      %200 = sbr.rel (0) target = $region73
    $region72: #{teann_forward.3} parent=1 // pred_region
      %202 = vsyncadd [#allocation15], 0
      %s203 = sshll.u32 %s35, 4
      %s204 = int_to_ptr.hbm [resolvable:$true] %s203
      %s205 = sshll.u32 [#allocation16], 4
      %s206 = int_to_ptr.vmem [resolvable:$true] %s205
      %211 = dma.hbm_to_vmem [thread:$0]  %s204, 256, %s206, [#allocation15], 128, 128, 8
    $region73: #{teann_forward.3} parent=1 // pred_fallthru
      _
    // Predicated region
    $region74: #{teann_forward.3} parent=1 // pred_check
      _
    $region75: #{teann_forward.3} parent=1 // pred_check_branch
      %213 = sbr.rel (0) target = $region77
    $region76: #{teann_forward.3} parent=1 // pred_region
      %215 = vsyncadd [#allocation18], 0
      %s217 = sshll.u32 %s37, 4
      %s218 = int_to_ptr.hbm [resolvable:$true] %s217
      %s219 = sshll.u32 [#allocation17], 4
      %s220 = int_to_ptr.vmem [resolvable:$true] %s219
      %222 = dma.hbm_to_vmem [thread:$0]  %s218, 16, %s220, [#allocation18]
    $region77: #{teann_forward.3} parent=1 // pred_fallthru
      _
    // Predicated region
    $region78: #{teann_forward.3} parent=1 // pred_check
      _
    $region79: #{teann_forward.3} parent=1 // pred_check_branch
      %224 = sbr.rel (0) target = $region81
    $region80: #{teann_forward.3} parent=1 // pred_region
      _
    $region81: #{teann_forward.3} parent=1 // pred_fallthru
      _
    // Predicated region
    $region82: #{teann_forward.3} parent=1 // pred_check
      _
    $region83: #{teann_forward.3} parent=1 // pred_check_branch
      %226 = sbr.rel (0) target = $region85
    $region84: #{teann_forward.3} parent=1 // pred_region
      %228 = vsyncadd [#allocation18], 0
      %s229 = sshll.u32 %s41, 4
      %s230 = int_to_ptr.hbm [resolvable:$true] %s229
      %s231 = sshll.u32 [#allocation19], 4
      %s232 = int_to_ptr.vmem [resolvable:$true] %s231
      %237 = dma.hbm_to_vmem [thread:$0]  %s230, 1024, %s232, [#allocation18], 64, 64, 4
    $region85: #{teann_forward.3} parent=1 // pred_fallthru
      _
    // Predicated region
    $region86: #{teann_forward.3} parent=1 // pred_check
      _
    $region87: #{teann_forward.3} parent=1 // pred_check_branch
      %239 = sbr.rel (0) target = $region89
    $region88: #{teann_forward.3} parent=1 // pred_region
      %241 = vsyncadd [#allocation21], 0
      %s242 = sshll.u32 %s43, 4
      %s243 = int_to_ptr.hbm [resolvable:$true] %s242
      %s244 = sshll.u32 [#allocation20], 4
      %s245 = int_to_ptr.vmem [resolvable:$true] %s244
      %250 = dma.hbm_to_vmem [thread:$0]  %s243, 1024, %s245, [#allocation21], 64, 64, 4
    $region89: #{teann_forward.3} parent=1 // pred_fallthru
      _
    // Predicated region
    $region90: #{teann_forward.3} parent=1 // pred_check
      _
    $region91: #{teann_forward.3} parent=1 // pred_check_branch
      %252 = sbr.rel (0) target = $region93
    $region92: #{teann_forward.3} parent=1 // pred_region
      %254 = vsyncadd [#allocation21], 0
      %s256 = sshll.u32 %s45, 4
      %s257 = int_to_ptr.hbm [resolvable:$true] %s256
      %s258 = sshll.u32 [#allocation22], 4
      %s259 = int_to_ptr.vmem [resolvable:$true] %s258
      %261 = dma.hbm_to_vmem [thread:$0]  %s257, 16, %s259, [#allocation21]
    $region93: #{teann_forward.3} parent=1 // pred_fallthru
      _
    // Predicated region
    $region94: #{teann_forward.3} parent=1 // pred_check
      _
    $region95: #{teann_forward.3} parent=1 // pred_check_branch
      %263 = sbr.rel (0) target = $region97
    $region96: #{teann_forward.3} parent=1 // pred_region
      %265 = vsyncadd [#allocation24], 0
      %s266 = sshll.u32 %s47, 4
      %s267 = int_to_ptr.hbm [resolvable:$true] %s266
      %s268 = sshll.u32 [#allocation23], 4
      %s269 = int_to_ptr.vmem [resolvable:$true] %s268
      %274 = dma.hbm_to_vmem [thread:$0]  %s267, 1024, %s269, [#allocation24], 64, 64, 4
    $region97: #{teann_forward.3} parent=1 // pred_fallthru
      _
    // Predicated region
    $region98: #{teann_forward.3} parent=1 // pred_check
      _
    $region99: #{teann_forward.3} parent=1 // pred_check_branch
      %276 = sbr.rel (0) target = $region101
    $region100: #{teann_forward.3} parent=1 // pred_region
      %278 = vsyncadd [#allocation24], 0
      %s280 = sshll.u32 %s49, 4
      %s281 = int_to_ptr.hbm [resolvable:$true] %s280
      %s282 = sshll.u32 [#allocation25], 4
      %s283 = int_to_ptr.vmem [resolvable:$true] %s282
      %285 = dma.hbm_to_vmem [thread:$0]  %s281, 16, %s283, [#allocation24]
    $region101: #{teann_forward.3} parent=1 // pred_fallthru
      _
    // Predicated region
    $region102: #{teann_forward.3} parent=1 // pred_check
      _
    $region103: #{teann_forward.3} parent=1 // pred_check_branch
      %287 = sbr.rel (0) target = $region105
    $region104: #{teann_forward.3} parent=1 // pred_region
      %289 = dma.done [#allocation3], 768
    $region105: #{teann_forward.3} parent=1 // pred_fallthru
      _
    // Predicated region
    $region106: #{teann_forward.3} parent=1 // pred_check
      _
    $region107: #{teann_forward.3} parent=1 // pred_check_branch
      %291 = sbr.rel (0) target = $region109
    $region108: #{teann_forward.3} parent=1 // pred_region
      %293 = dma.done [#allocation6], 4864
    $region109: #{teann_forward.3} parent=1 // pred_fallthru
      _
    // Predicated region
    $region110: #{teann_forward.3} parent=1 // pred_check
      _
    $region111: #{teann_forward.3} parent=1 // pred_check_branch
      %295 = sbr.rel (0) target = $region113
    $region112: #{teann_forward.3} parent=1 // pred_region
      %297 = dma.done [#allocation6], 2048
    $region113: #{teann_forward.3} parent=1 // pred_fallthru
      _
    // Predicated region
    $region114: #{teann_forward.3} parent=1 // pred_check
      _
    $region115: #{teann_forward.3} parent=1 // pred_check_branch
      %299 = sbr.rel (0) target = $region117
    $region116: #{teann_forward.3} parent=1 // pred_region
      %301 = dma.done [#allocation9], 2048
    $region117: #{teann_forward.3} parent=1 // pred_fallthru
      _
    // Predicated region
    $region118: #{teann_forward.3} parent=1 // pred_check
      _
    $region119: #{teann_forward.3} parent=1 // pred_check_branch
      %303 = sbr.rel (0) target = $region121
    $region120: #{teann_forward.3} parent=1 // pred_region
      %305 = dma.done [#allocation9], 16
    $region121: #{teann_forward.3} parent=1 // pred_fallthru
      _
    // Predicated region
    $region122: #{teann_forward.3} parent=1 // pred_check
      _
    $region123: #{teann_forward.3} parent=1 // pred_check_branch
      %307 = sbr.rel (0) target = $region125
    $region124: #{teann_forward.3} parent=1 // pred_region
      %309 = dma.done [#allocation12], 256
    $region125: #{teann_forward.3} parent=1 // pred_fallthru
      _
    // Predicated region
    $region126: #{teann_forward.3} parent=1 // pred_check
      _
    $region127: #{teann_forward.3} parent=1 // pred_check_branch
      %311 = sbr.rel (0) target = $region129
    $region128: #{teann_forward.3} parent=1 // pred_region
      %313 = dma.done [#allocation12], 256
    $region129: #{teann_forward.3} parent=1 // pred_fallthru
      _
    // Predicated region
    $region130: #{teann_forward.3} parent=1 // pred_check
      _
    $region131: #{teann_forward.3} parent=1 // pred_check_branch
      %315 = sbr.rel (0) target = $region133
    $region132: #{teann_forward.3} parent=1 // pred_region
      %317 = dma.done [#allocation15], 16
    $region133: #{teann_forward.3} parent=1 // pred_fallthru
      _
    // Predicated region
    $region134: #{teann_forward.3} parent=1 // pred_check
      _
    $region135: #{teann_forward.3} parent=1 // pred_check_branch
      %319 = sbr.rel (0) target = $region137
    $region136: #{teann_forward.3} parent=1 // pred_region
      %321 = dma.done [#allocation15], 256
    $region137: #{teann_forward.3} parent=1 // pred_fallthru
      _
    // Predicated region
    $region138: #{teann_forward.3} parent=1 // pred_check
      _
    $region139: #{teann_forward.3} parent=1 // pred_check_branch
      %323 = sbr.rel (0) target = $region141
    $region140: #{teann_forward.3} parent=1 // pred_region
      %325 = dma.done [#allocation18], 16
    $region141: #{teann_forward.3} parent=1 // pred_fallthru
      _
    // Predicated region
    $region142: #{teann_forward.3} parent=1 // pred_check
      _
    $region143: #{teann_forward.3} parent=1 // pred_check_branch
      %327 = sbr.rel (0) target = $region145
    $region144: #{teann_forward.3} parent=1 // pred_region
      %329 = dma.done [#allocation18], 1024
    $region145: #{teann_forward.3} parent=1 // pred_fallthru
      _
    // Predicated region
    $region146: #{teann_forward.3} parent=1 // pred_check
      _
    $region147: #{teann_forward.3} parent=1 // pred_check_branch
      %331 = sbr.rel (0) target = $region149
    $region148: #{teann_forward.3} parent=1 // pred_region
      %333 = dma.done [#allocation21], 1024
    $region149: #{teann_forward.3} parent=1 // pred_fallthru
      _
    // Predicated region
    $region150: #{teann_forward.3} parent=1 // pred_check
      _
    $region151: #{teann_forward.3} parent=1 // pred_check_branch
      %335 = sbr.rel (0) target = $region153
    $region152: #{teann_forward.3} parent=1 // pred_region
      %337 = dma.done [#allocation21], 16
    $region153: #{teann_forward.3} parent=1 // pred_fallthru
      _
    // Predicated region
    $region154: #{teann_forward.3} parent=1 // pred_check
      _
    $region155: #{teann_forward.3} parent=1 // pred_check_branch
      %339 = sbr.rel (0) target = $region157
    $region156: #{teann_forward.3} parent=1 // pred_region
      %341 = dma.done [#allocation24], 1024
    $region157: #{teann_forward.3} parent=1 // pred_fallthru
      _
    // Predicated region
    $region158: #{teann_forward.3} parent=1 // pred_check
      _
    $region159: #{teann_forward.3} parent=1 // pred_check_branch
      %343 = sbr.rel (0) target = $region161
    $region160: #{teann_forward.3} parent=1 // pred_region
      %345 = dma.done [#allocation24], 16
    $region161: #{teann_forward.3} parent=1 // pred_fallthru
      _
    %v346 = vld [vmem:[#allocation2] sm:$0xff]
    %v347 = vld [vmem:[#allocation2 + $0x8] sm:$0xff]
    %v348 = vld [vmem:[#allocation2 + $0x10] sm:$0xff]
    %v349 = vld [vmem:[#allocation2 + $0x18] sm:$0x3]
    %v350 = vld [vmem:[#allocation2 + $0x20] sm:$0x3]
    %v351 = vld [vmem:[#allocation2 + $0x28] sm:$0x3]
    %v352 = vmul.f32 %v346, %v346
    %v353 = vmul.f32 %v347, %v347
    %v354 = vmul.f32 %v348, %v348
    %v355 = vmul.f32 %v349, %v349
    %v356 = vmul.f32 %v350, %v350
    %v357 = vmul.f32 %v351, %v351
    %v358 = vadd.f32 %v352, %v353
    %vm359 = vcmask 359424
    %v360 = vsel %vm359, %v354, 0.0
    %v361 = vadd.f32 %v358, %v360
    %362 = vadd.xlane.f32.xlu0 %v361
    %v363 = vpop.xlane.xlu0 %362
    %vm364 = vcmask 1041408
    %v365 = vsel %vm364, %v355, 0.0
    %v366 = vsel %vm364, %v356, 0.0
    %v367 = vadd.f32 %v365, %v366
    %vm368 = vcmask 353280
    %v369 = vsel %vm368, %v357, 0.0
    %v370 = vadd.f32 %v367, %v369
    %371 = vadd.xlane.f32.xlu0 %v370
    %v372 = vpop.xlane.xlu0 %371
    %v373 = vrsqrt.pop %v363
    %v374 = vmul.f32 %v373, %v363
    %v375 = vmul.f32 %v374, %v373
    %v376 = vmul.f32 0.5, %v375
    %v377 = vsub.f32 1.5, %v376
    %v378 = vmul.f32 %v373, %v377
    %v379 = vmul.f32 %v363, %v378
    %vm380 = vcmp.eq.f32.partialorder %v363, inf
    %v381 = vsel %vm380, %v363, %v379
    %vm382 = vcmp.eq.f32.partialorder %v363, 0.0
    %v383 = vand.u32 %v363, 2147483648
    %v384 = vsel %vm382, %v383, %v381
    %v385 = vrsqrt.pop %v372
    %v386 = vmul.f32 %v385, %v372
    %v387 = vmul.f32 %v386, %v385
    %v388 = vmul.f32 0.5, %v387
    %v389 = vsub.f32 1.5, %v388
    %v390 = vmul.f32 %v385, %v389
    %v391 = vmul.f32 %v372, %v390
    %vm392 = vcmp.eq.f32.partialorder %v372, inf
    %v393 = vsel %vm392, %v372, %v391
    %vm394 = vcmp.eq.f32.partialorder %v372, 0.0
    %v395 = vand.u32 %v372, 2147483648
    %v396 = vsel %vm394, %v395, %v393
    %v397 = vmax.f32 %v384, 1e-08
    %v398 = vmax.f32 %v396, 1e-08
    %v399 = vrcp.pop %v397
    %v400 = vmul.f32 %v397, %v399
    %v401 = vsub.f32 1.0, %v400
    %v402 = vmul.f32 %v399, %v401
    %v403 = vadd.f32 %v399, %v402
    %vm404 = vweird.f32 %v397
    %vm405 = vweird.f32 %v399
    %vm406 = vmor %vm404, %vm405
    %v407 = vsel %vm406, %v399, %v403
    %v408 = vand.u32 2147483647, %v397
    %vm409 = vcmp.eq.f32.partialorder %v408, 8.507059e+37
    %v410 = vand.u32 %v397, 2147483648
    %v411 = vor.u32 1.1754944e-38, %v410
    %v412 = vsel %vm409, %v411, %v407
    %v413 = vmul.f32 %v346, %v412
    %v414 = vmul.f32 %v347, %v412
    %v415 = vmul.f32 %v348, %v412
    %v416 = vrcp.pop %v398
    %v417 = vmul.f32 %v398, %v416
    %v418 = vsub.f32 1.0, %v417
    %v419 = vmul.f32 %v416, %v418
    %v420 = vadd.f32 %v416, %v419
    %vm421 = vweird.f32 %v398
    %vm422 = vweird.f32 %v416
    %vm423 = vmor %vm421, %vm422
    %v424 = vsel %vm423, %v416, %v420
    %v425 = vand.u32 2147483647, %v398
    %vm426 = vcmp.eq.f32.partialorder %v425, 8.507059e+37
    %v427 = vand.u32 %v398, 2147483648
    %v428 = vor.u32 1.1754944e-38, %v427
    %v429 = vsel %vm426, %v428, %v424
    %v430 = vmul.f32 %v349, %v429
    %v431 = vmul.f32 %v350, %v429
    %v432 = vmul.f32 %v351, %v429
    %v434 = vsel %vm359, %v415, 0
    %v437 = vsel %vm359, %v432, 0
    %439 = vmatpush.xpose.msra.mxu0 0.0
    %440 = vmatpush.xpose.msra.mxu0 0.0
    %441 = vmatpush.xpose.msra.mxu0 0.0
    %442 = vmatpush.xpose.msra.mxu0 0.0
    %443 = vmatpush.xpose.msra.mxu0 0.0
    %444 = vmatpush.xpose.msra.mxu0 0.0
    %445 = vmatpush.xpose.msra.mxu0 0.0
    %446 = vmatpush.xpose.msra.mxu0 0.0
    %447 = vmatpush.xpose.msra.mxu0 0.0
    %448 = vmatpush.xpose.msra.mxu0 0.0
    %449 = vmatpush.xpose.msra.mxu0 0.0
    %450 = vmatpush.xpose.msra.mxu0 0.0
    %451 = vmatpush.xpose.msra.mxu0 0.0
    %452 = vmatpush.xpose.msra.mxu0 0.0
    %453 = vmatpush.xpose.msra.mxu0 %v430
    %454 = vmatpush.xpose.msra.mxu0 %v413
    %455 = vmatmul.f32.gmra.mxu0 %v413
    %v456 = vpop.f32.mrf.mxu0
    %v457 = vadd.f32 0.0, %v456
    %458 = vmatmul.f32.gmra.mxu0 %v430
    %v459 = vpop.f32.mrf.mxu0
    %v460 = vadd.f32 0.0, %v459
    %461 = vdwg.mxu0
    %462 = vmatpush.xpose.msra.mxu0 0.0
    %463 = vmatpush.xpose.msra.mxu0 0.0
    %464 = vmatpush.xpose.msra.mxu0 0.0
    %465 = vmatpush.xpose.msra.mxu0 0.0
    %466 = vmatpush.xpose.msra.mxu0 0.0
    %467 = vmatpush.xpose.msra.mxu0 0.0
    %468 = vmatpush.xpose.msra.mxu0 0.0
    %469 = vmatpush.xpose.msra.mxu0 0.0
    %470 = vmatpush.xpose.msra.mxu0 0.0
    %471 = vmatpush.xpose.msra.mxu0 0.0
    %472 = vmatpush.xpose.msra.mxu0 0.0
    %473 = vmatpush.xpose.msra.mxu0 0.0
    %474 = vmatpush.xpose.msra.mxu0 0.0
    %475 = vmatpush.xpose.msra.mxu0 0.0
    %476 = vmatpush.xpose.msra.mxu0 %v431
    %477 = vmatpush.xpose.msra.mxu0 %v414
    %478 = vmatmul.f32.gmra.mxu0 %v414
    %v479 = vpop.f32.mrf.mxu0
    %v480 = vadd.f32 %v457, %v479
    %481 = vmatmul.f32.gmra.mxu0 %v431
    %v482 = vpop.f32.mrf.mxu0
    %v483 = vadd.f32 %v460, %v482
    %484 = vdwg.mxu0
    %485 = vmatpush.xpose.msra.mxu0 0.0
    %486 = vmatpush.xpose.msra.mxu0 0.0
    %487 = vmatpush.xpose.msra.mxu0 0.0
    %488 = vmatpush.xpose.msra.mxu0 0.0
    %489 = vmatpush.xpose.msra.mxu0 0.0
    %490 = vmatpush.xpose.msra.mxu0 0.0
    %491 = vmatpush.xpose.msra.mxu0 0.0
    %492 = vmatpush.xpose.msra.mxu0 0.0
    %493 = vmatpush.xpose.msra.mxu0 0.0
    %494 = vmatpush.xpose.msra.mxu0 0.0
    %495 = vmatpush.xpose.msra.mxu0 0.0
    %496 = vmatpush.xpose.msra.mxu0 0.0
    %497 = vmatpush.xpose.msra.mxu0 0.0
    %498 = vmatpush.xpose.msra.mxu0 0.0
    %499 = vmatpush.xpose.msra.mxu0 %v437
    %500 = vmatpush.xpose.msra.mxu0 %v434
    %501 = vmatmul.f32.gmra.mxu0 %v434
    %v502 = vpop.f32.mrf.mxu0
    %v503 = vadd.f32 %v480, %v502
    %504 = vmatmul.f32.gmra.mxu0 %v437
    %v505 = vpop.f32.mrf.mxu0
    %v506 = vadd.f32 %v483, %v505
    %507 = vdwg.mxu0
    %vm508 = vcmp.lt.f32.partialorder %v503, 0.4
    %vm509 = vcmp.lt.f32.partialorder %v506, 0.4
    %v510 = vsel %vm508, 0.0, %v503
    %v511 = vsel %vm509, 0.0, %v506
    %v512 = vld [vmem:[%s3] sm:$0xff]
    %v513 = vld [vmem:[%s3 + $0x8] sm:$0x3]
    %v514 = vmul.f32 %v510, %v512
    %v515 = vmul.f32 %v511, %v513
    %v516 = vlaneseq
    %v517 = vshrl.u32 %v516, 7
    %v518 = vadd.s32 %v517, 8
    %v519 = vlaneseq
    %v520 = vand.u32 %v519, 127
    %vm521 = vcmp.eq.s32.totalorder %v517, %v520
    %vm522 = vcmp.eq.s32.totalorder %v518, %v520
    %v523 = vsel %vm521, 1, 0
    %v524 = vsel %vm522, 1, 0
    %v525 = vcvt.s32.f32 %v523
    %v526 = vcvt.s32.f32 %v524
    %v527 = vadd.f32 %v514, %v525
    %v528 = vadd.f32 %v515, %v526
    %vm529 = vcmask 80896
    %v530 = vsel %vm529, %v527, 0.0
    %531 = vadd.xlane.f32.xlu0 %v530
    %v532 = vpop.xlane.xlu0 %531
    %vm533 = vcmask 74752
    %v534 = vsel %vm533, %v528, 0.0
    %535 = vadd.xlane.f32.xlu0 %v534
    %v536 = vpop.xlane.xlu0 %535
    %v537 = vmax.f32 %v532, 1e-12
    %v538 = vmax.f32 %v536, 1e-12
    %v539 = vrsqrt.pop %v537
    %v540 = vmul.f32 %v539, %v537
    %v541 = vmul.f32 %v540, %v539
    %v542 = vmul.f32 0.5, %v541
    %v543 = vsub.f32 1.5, %v542
    %v544 = vmul.f32 %v539, %v543
    %vm545 = vweird.f32 %v537
    %vm546 = vweird.f32 %v539
    %vm547 = vmor %vm545, %vm546
    %v548 = vsel %vm547, %v539, %v544
    %v549 = vrsqrt.pop %v538
    %v550 = vmul.f32 %v549, %v538
    %v551 = vmul.f32 %v550, %v549
    %v552 = vmul.f32 0.5, %v551
    %v553 = vsub.f32 1.5, %v552
    %v554 = vmul.f32 %v549, %v553
    %vm555 = vweird.f32 %v538
    %vm556 = vweird.f32 %v549
    %vm557 = vmor %vm555, %vm556
    %v558 = vsel %vm557, %v549, %v554
    %v559 = vmul.f32 %v525, %v548
    %v560 = vmul.f32 %v526, %v558
    %v561 = vsel %vm529, %v559, 0.0
    %v562 = vsel %vm533, %v560, 0.0
    %v563 = vadd.f32 %v561, %v562
    %v564 = vrot.slane %v563, 4
    %v565 = vadd.f32 %v563, %v564
    %v566 = vrot.slane %v565, 2
    %v567 = vadd.f32 %v565, %v566
    %v568 = vrot.slane %v567, 1
    %v569 = vadd.f32 %v567, %v568
    %v570 = vmul.f32 %v527, %v548
    %v571 = vmul.f32 %v528, %v558
    %v572 = vmul.f32 %v570, %v569
    %v573 = vmul.f32 %v571, %v569
    %v574 = vld [vmem:[%s5] sm:$0xff]
    %v575 = vld [vmem:[%s5 + $0x8] sm:$0x3]
    %v576 = vmul.f32 %v510, %v574
    %v577 = vmul.f32 %v511, %v575
    %v578 = vadd.f32 %v576, %v525
    %v579 = vadd.f32 %v577, %v526
    %v580 = vsel %vm529, %v578, 0.0
    %581 = vadd.xlane.f32.xlu0 %v580
    %v582 = vpop.xlane.xlu0 %581
    %v583 = vsel %vm533, %v579, 0.0
    %584 = vadd.xlane.f32.xlu0 %v583
    %v585 = vpop.xlane.xlu0 %584
    %v586 = vmax.f32 %v582, 1e-12
    %v587 = vmax.f32 %v585, 1e-12
    %v588 = vrsqrt.pop %v586
    %v589 = vmul.f32 %v588, %v586
    %v590 = vmul.f32 %v589, %v588
    %v591 = vmul.f32 0.5, %v590
    %v592 = vsub.f32 1.5, %v591
    %v593 = vmul.f32 %v588, %v592
    %vm594 = vweird.f32 %v586
    %vm595 = vweird.f32 %v588
    %vm596 = vmor %vm594, %vm595
    %v597 = vsel %vm596, %v588, %v593
    %v598 = vrsqrt.pop %v587
    %v599 = vmul.f32 %v598, %v587
    %v600 = vmul.f32 %v599, %v598
    %v601 = vmul.f32 0.5, %v600
    %v602 = vsub.f32 1.5, %v601
    %v603 = vmul.f32 %v598, %v602
    %vm604 = vweird.f32 %v587
    %vm605 = vweird.f32 %v598
    %vm606 = vmor %vm604, %vm605
    %v607 = vsel %vm606, %v598, %v603
    %v608 = vmul.f32 %v525, %v597
    %v609 = vmul.f32 %v526, %v607
    %v610 = vsel %vm529, %v608, 0.0
    %v611 = vsel %vm533, %v609, 0.0
    %v612 = vadd.f32 %v610, %v611
    %v613 = vrot.slane %v612, 4
    %v614 = vadd.f32 %v612, %v613
    %v615 = vrot.slane %v614, 2
    %v616 = vadd.f32 %v614, %v615
    %v617 = vrot.slane %v616, 1
    %v618 = vadd.f32 %v616, %v617
    %v619 = vmul.f32 %v578, %v597
    %v620 = vmul.f32 %v579, %v607
    %v621 = vmul.f32 %v619, %v618
    %v622 = vmul.f32 %v620, %v618
    %v623 = vld [vmem:[#allocation5] sm:$0xff]
    %v624 = vld [vmem:[#allocation5 + $0x8] sm:$0xff]
    %v625 = vld [vmem:[#allocation5 + $0x10] sm:$0xff]
    %v626 = vld [vmem:[#allocation5 + $0x18] sm:$0xff]
    %v627 = vld [vmem:[#allocation5 + $0x20] sm:$0xff]
    %v628 = vld [vmem:[#allocation5 + $0x28] sm:$0xff]
    %v629 = vld [vmem:[#allocation5 + $0x30] sm:$0xff]
    %v630 = vld [vmem:[#allocation5 + $0x38] sm:$0xff]
    %v631 = vld [vmem:[#allocation5 + $0x40] sm:$0xff]
    %v632 = vld [vmem:[#allocation5 + $0x48] sm:$0xff]
    %v633 = vld [vmem:[#allocation5 + $0x50] sm:$0xff]
    %v634 = vld [vmem:[#allocation5 + $0x58] sm:$0xff]
    %v635 = vld [vmem:[#allocation5 + $0x60] sm:$0xff]
    %v636 = vld [vmem:[#allocation5 + $0x68] sm:$0xff]
    %v637 = vld [vmem:[#allocation5 + $0x70] sm:$0xff]
    %v638 = vld [vmem:[#allocation5 + $0x78] sm:$0xff]
    %v639 = vld [vmem:[#allocation5 + $0x80] sm:$0xff]
    %v640 = vld [vmem:[#allocation5 + $0x88] sm:$0xff]
    %v641 = vld [vmem:[#allocation5 + $0x90] sm:$0xff]
    %v642 = vld [vmem:[#allocation5 + $0x98] sm:$0xff]
    %v643 = vld [vmem:[#allocation5 + $0xa0] sm:$0xff]
    %v644 = vld [vmem:[#allocation5 + $0xa8] sm:$0xff]
    %v645 = vld [vmem:[#allocation5 + $0xb0] sm:$0xff]
    %v646 = vld [vmem:[#allocation5 + $0xb8] sm:$0xff]
    %v647 = vld [vmem:[#allocation5 + $0xc0] sm:$0xff]
    %v648 = vld [vmem:[#allocation5 + $0xc8] sm:$0xff]
    %v649 = vld [vmem:[#allocation5 + $0xd0] sm:$0xff]
    %v650 = vld [vmem:[#allocation5 + $0xd8] sm:$0xff]
    %v651 = vld [vmem:[#allocation5 + $0xe0] sm:$0xff]
    %v652 = vld [vmem:[#allocation5 + $0xe8] sm:$0xff]
    %v653 = vld [vmem:[#allocation5 + $0xf0] sm:$0xff]
    %v654 = vld [vmem:[#allocation5 + $0xf8] sm:$0xff]
    %v655 = vld [vmem:[#allocation5 + $0x100] sm:$0xff]
    %v656 = vld [vmem:[#allocation5 + $0x108] sm:$0xff]
    %v657 = vld [vmem:[#allocation5 + $0x110] sm:$0xff]
    %v658 = vld [vmem:[#allocation5 + $0x118] sm:$0xff]
    %v659 = vld [vmem:[#allocation5 + $0x120] sm:$0xff]
    %v660 = vld [vmem:[#allocation5 + $0x128] sm:$0xf]
    %v662 = vsel %vm359, %v348, 0
    %v665 = vsel %vm359, %v351, 0
    %vm667 = vcmask 1043456
    %v669 = vsel %vm667, %v660, 0
    %671 = vmatpush.msra.mxu0 %v638
    %672 = vmatpush.msra.mxu0 %v637
    %673 = vmatpush.msra.mxu0 %v636
    %674 = vmatpush.msra.mxu0 %v635
    %675 = vmatpush.msra.mxu0 %v634
    %676 = vmatpush.msra.mxu0 %v633
    %677 = vmatpush.msra.mxu0 %v632
    %678 = vmatpush.msra.mxu0 %v631
    %679 = vmatpush.msra.mxu0 %v630
    %680 = vmatpush.msra.mxu0 %v629
    %681 = vmatpush.msra.mxu0 %v628
    %682 = vmatpush.msra.mxu0 %v627
    %683 = vmatpush.msra.mxu0 %v626
    %684 = vmatpush.msra.mxu0 %v625
    %685 = vmatpush.msra.mxu0 %v624
    %686 = vmatpush.msra.mxu0 %v623
    %687 = vmatmul.f32.gmra.mxu0 %v346
    %v688 = vpop.f32.mrf.mxu0
    %v689 = vadd.f32 0.0, %v688
    %690 = vmatmul.f32.gmra.mxu0 %v349
    %v691 = vpop.f32.mrf.mxu0
    %v692 = vadd.f32 0.0, %v691
    %693 = vdwg.mxu0
    %694 = vmatpush.msra.mxu0 %v654
    %695 = vmatpush.msra.mxu0 %v653
    %696 = vmatpush.msra.mxu0 %v652
    %697 = vmatpush.msra.mxu0 %v651
    %698 = vmatpush.msra.mxu0 %v650
    %699 = vmatpush.msra.mxu0 %v649
    %700 = vmatpush.msra.mxu0 %v648
    %701 = vmatpush.msra.mxu0 %v647
    %702 = vmatpush.msra.mxu0 %v646
    %703 = vmatpush.msra.mxu0 %v645
    %704 = vmatpush.msra.mxu0 %v644
    %705 = vmatpush.msra.mxu0 %v643
    %706 = vmatpush.msra.mxu0 %v642
    %707 = vmatpush.msra.mxu0 %v641
    %708 = vmatpush.msra.mxu0 %v640
    %709 = vmatpush.msra.mxu0 %v639
    %710 = vmatmul.f32.gmra.mxu0 %v347
    %v711 = vpop.f32.mrf.mxu0
    %v712 = vadd.f32 %v689, %v711
    %713 = vmatmul.f32.gmra.mxu0 %v350
    %v714 = vpop.f32.mrf.mxu0
    %v715 = vadd.f32 %v692, %v714
    %716 = vdwg.mxu0
    %717 = vmatpush.msra.mxu0 0.0
    %718 = vmatpush.msra.mxu0 0.0
    %719 = vmatpush.msra.mxu0 0.0
    %720 = vmatpush.msra.mxu0 0.0
    %721 = vmatpush.msra.mxu0 0.0
    %722 = vmatpush.msra.mxu0 0.0
    %723 = vmatpush.msra.mxu0 0.0
    %724 = vmatpush.msra.mxu0 0.0
    %725 = vmatpush.msra.mxu0 0.0
    %726 = vmatpush.msra.mxu0 0.0
    %727 = vmatpush.msra.mxu0 %v669
    %728 = vmatpush.msra.mxu0 %v659
    %729 = vmatpush.msra.mxu0 %v658
    %730 = vmatpush.msra.mxu0 %v657
    %731 = vmatpush.msra.mxu0 %v656
    %732 = vmatpush.msra.mxu0 %v655
    %733 = vmatmul.f32.gmra.mxu0 %v662
    %v734 = vpop.f32.mrf.mxu0
    %v735 = vadd.f32 %v712, %v734
    %736 = vmatmul.f32.gmra.mxu0 %v665
    %v737 = vpop.f32.mrf.mxu0
    %v738 = vadd.f32 %v715, %v737
    %739 = vdwg.mxu0
    %v741 = vsel %vm529, %v572, 0
    %v744 = vsel %vm529, %v573, 0
    %v747 = vsel %vm364, %v738, 0
    %749 = vmatpush.msra.mxu0 0.0
    %750 = vmatpush.msra.mxu0 0.0
    %751 = vmatpush.msra.mxu0 0.0
    %752 = vmatpush.msra.mxu0 0.0
    %753 = vmatpush.msra.mxu0 0.0
    %754 = vmatpush.msra.mxu0 0.0
    %755 = vmatpush.msra.mxu0 0.0
    %756 = vmatpush.msra.mxu0 0.0
    %757 = vmatpush.msra.mxu0 0.0
    %758 = vmatpush.msra.mxu0 0.0
    %759 = vmatpush.msra.mxu0 0.0
    %760 = vmatpush.msra.mxu0 0.0
    %761 = vmatpush.msra.mxu0 0.0
    %762 = vmatpush.msra.mxu0 0.0
    %763 = vmatpush.msra.mxu0 %v747
    %764 = vmatpush.msra.mxu0 %v735
    %765 = vmatmul.f32.gmra.mxu0 %v741
    %v766 = vpop.f32.mrf.mxu0
    %v767 = vadd.f32 0.0, %v766
    %768 = vmatmul.f32.gmra.mxu0 %v744
    %v769 = vpop.f32.mrf.mxu0
    %v770 = vadd.f32 0.0, %v769
    %771 = vdwg.mxu0
    %v772 = vld [vmem:[#allocation7] sm:$0xff]
    %v773 = vld [vmem:[#allocation7 + $0x8] sm:$0xff]
    %v774 = vld [vmem:[#allocation7 + $0x10] sm:$0xff]
    %v775 = vld [vmem:[#allocation7 + $0x18] sm:$0xff]
    %v776 = vld [vmem:[#allocation7 + $0x20] sm:$0xff]
    %v777 = vld [vmem:[#allocation7 + $0x28] sm:$0xff]
    %v778 = vld [vmem:[#allocation7 + $0x30] sm:$0xff]
    %v779 = vld [vmem:[#allocation7 + $0x38] sm:$0xff]
    %v780 = vld [vmem:[#allocation7 + $0x40] sm:$0xff]
    %v781 = vld [vmem:[#allocation7 + $0x48] sm:$0xff]
    %v782 = vld [vmem:[#allocation7 + $0x50] sm:$0xff]
    %v783 = vld [vmem:[#allocation7 + $0x58] sm:$0xff]
    %v784 = vld [vmem:[#allocation7 + $0x60] sm:$0xff]
    %v785 = vld [vmem:[#allocation7 + $0x68] sm:$0xff]
    %v786 = vld [vmem:[#allocation7 + $0x70] sm:$0xff]
    %v787 = vld [vmem:[#allocation7 + $0x78] sm:$0xff]
    %788 = vmatpush.msra.mxu0 %v787
    %789 = vmatpush.msra.mxu0 %v786
    %790 = vmatpush.msra.mxu0 %v785
    %791 = vmatpush.msra.mxu0 %v784
    %792 = vmatpush.msra.mxu0 %v783
    %793 = vmatpush.msra.mxu0 %v782
    %794 = vmatpush.msra.mxu0 %v781
    %795 = vmatpush.msra.mxu0 %v780
    %796 = vmatpush.msra.mxu0 %v779
    %797 = vmatpush.msra.mxu0 %v778
    %798 = vmatpush.msra.mxu0 %v777
    %799 = vmatpush.msra.mxu0 %v776
    %800 = vmatpush.msra.mxu0 %v775
    %801 = vmatpush.msra.mxu0 %v774
    %802 = vmatpush.msra.mxu0 %v773
    %803 = vmatpush.msra.mxu0 %v772
    %804 = vmatmul.f32.gmra.mxu0 %v767
    %v805 = vpop.f32.mrf.mxu0
    %v806 = vadd.f32 0.0, %v805
    %807 = vmatmul.f32.gmra.mxu0 %v770
    %v808 = vpop.f32.mrf.mxu0
    %v809 = vadd.f32 0.0, %v808
    %810 = vdwg.mxu0
    %v812 = vsel %vm529, %v621, 0
    %v815 = vsel %vm529, %v622, 0
    %v818 = vsel %vm364, %v809, 0
    %820 = vmatpush.msra.mxu0 0.0
    %821 = vmatpush.msra.mxu0 0.0
    %822 = vmatpush.msra.mxu0 0.0
    %823 = vmatpush.msra.mxu0 0.0
    %824 = vmatpush.msra.mxu0 0.0
    %825 = vmatpush.msra.mxu0 0.0
    %826 = vmatpush.msra.mxu0 0.0
    %827 = vmatpush.msra.mxu0 0.0
    %828 = vmatpush.msra.mxu0 0.0
    %829 = vmatpush.msra.mxu0 0.0
    %830 = vmatpush.msra.mxu0 0.0
    %831 = vmatpush.msra.mxu0 0.0
    %832 = vmatpush.msra.mxu0 0.0
    %833 = vmatpush.msra.mxu0 0.0
    %834 = vmatpush.msra.mxu0 %v818
    %835 = vmatpush.msra.mxu0 %v806
    %836 = vmatmul.f32.gmra.mxu0 %v812
    %v837 = vpop.f32.mrf.mxu0
    %v838 = vadd.f32 0.0, %v837
    %839 = vmatmul.f32.gmra.mxu0 %v815
    %v840 = vpop.f32.mrf.mxu0
    %v841 = vadd.f32 0.0, %v840
    %842 = vdwg.mxu0
    %v843 = vld [vmem:[%s11] sm:$0xff]
    %v844 = vld [vmem:[%s11 + $0x8] sm:$0xff]
    %v845 = vld [vmem:[%s11 + $0x10] sm:$0xff]
    %v846 = vld [vmem:[%s11 + $0x18] sm:$0xff]
    %v847 = vld [vmem:[%s11 + $0x20] sm:$0xff]
    %v848 = vld [vmem:[%s11 + $0x28] sm:$0xff]
    %v849 = vld [vmem:[%s11 + $0x30] sm:$0xff]
    %v850 = vld [vmem:[%s11 + $0x38] sm:$0xff]
    %v851 = vld [vmem:[%s11 + $0x40] sm:$0xff]
    %v852 = vld [vmem:[%s11 + $0x48] sm:$0xff]
    %v853 = vld [vmem:[%s11 + $0x50] sm:$0xff]
    %v854 = vld [vmem:[%s11 + $0x58] sm:$0xff]
    %v855 = vld [vmem:[%s11 + $0x60] sm:$0xff]
    %v856 = vld [vmem:[%s11 + $0x68] sm:$0xff]
    %v857 = vld [vmem:[%s11 + $0x70] sm:$0xff]
    %v858 = vld [vmem:[%s11 + $0x78] sm:$0xff]
    %v859 = vld [vmem:[%s11 + $0x80] sm:$0xff]
    %v860 = vld [vmem:[%s11 + $0x88] sm:$0xff]
    %v861 = vld [vmem:[%s11 + $0x90] sm:$0xff]
    %v862 = vld [vmem:[%s11 + $0x98] sm:$0xff]
    %v863 = vld [vmem:[%s11 + $0xa0] sm:$0xff]
    %v864 = vld [vmem:[%s11 + $0xa8] sm:$0xff]
    %v865 = vld [vmem:[%s11 + $0xb0] sm:$0xff]
    %v866 = vld [vmem:[%s11 + $0xb8] sm:$0xff]
    %v867 = vld [vmem:[%s11 + $0xc0] sm:$0xff]
    %v868 = vld [vmem:[%s11 + $0xc8] sm:$0xff]
    %v869 = vld [vmem:[%s11 + $0xd0] sm:$0xff]
    %v870 = vld [vmem:[%s11 + $0xd8] sm:$0xff]
    %v871 = vld [vmem:[%s11 + $0xe0] sm:$0xff]
    %v872 = vld [vmem:[%s11 + $0xe8] sm:$0xff]
    %v873 = vld [vmem:[%s11 + $0xf0] sm:$0xff]
    %v874 = vld [vmem:[%s11 + $0xf8] sm:$0xff]
    %v875 = vld [vmem:[%s11 + $0x100] sm:$0xff]
    %v876 = vld [vmem:[%s11 + $0x108] sm:$0xff]
    %v877 = vld [vmem:[%s11 + $0x110] sm:$0xff]
    %v878 = vld [vmem:[%s11 + $0x118] sm:$0xff]
    %v879 = vld [vmem:[%s11 + $0x120] sm:$0xff]
    %v880 = vld [vmem:[%s11 + $0x128] sm:$0xff]
    %v881 = vld [vmem:[%s11 + $0x130] sm:$0xff]
    %v882 = vld [vmem:[%s11 + $0x138] sm:$0xff]
    %v883 = vld [vmem:[%s11 + $0x140] sm:$0xff]
    %v884 = vld [vmem:[%s11 + $0x148] sm:$0xff]
    %v885 = vld [vmem:[%s11 + $0x150] sm:$0xff]
    %v886 = vld [vmem:[%s11 + $0x158] sm:$0xff]
    %v887 = vld [vmem:[%s11 + $0x160] sm:$0xff]
    %v888 = vld [vmem:[%s11 + $0x168] sm:$0xff]
    %v889 = vld [vmem:[%s11 + $0x170] sm:$0xff]
    %v890 = vld [vmem:[%s11 + $0x178] sm:$0xff]
    %v891 = vld [vmem:[%s11 + $0x180] sm:$0xff]
    %v892 = vld [vmem:[%s11 + $0x188] sm:$0xff]
    %v893 = vld [vmem:[%s11 + $0x190] sm:$0xff]
    %v894 = vld [vmem:[%s11 + $0x198] sm:$0xff]
    %v895 = vld [vmem:[%s11 + $0x1a0] sm:$0xff]
    %v896 = vld [vmem:[%s11 + $0x1a8] sm:$0xff]
    %v897 = vld [vmem:[%s11 + $0x1b0] sm:$0xff]
    %v898 = vld [vmem:[%s11 + $0x1b8] sm:$0xff]
    %v899 = vld [vmem:[%s11 + $0x1c0] sm:$0xff]
    %v900 = vld [vmem:[%s11 + $0x1c8] sm:$0xff]
    %v901 = vld [vmem:[%s11 + $0x1d0] sm:$0xff]
    %v902 = vld [vmem:[%s11 + $0x1d8] sm:$0xff]
    %v903 = vld [vmem:[%s11 + $0x1e0] sm:$0xff]
    %v904 = vld [vmem:[%s11 + $0x1e8] sm:$0xff]
    %v905 = vld [vmem:[%s11 + $0x1f0] sm:$0xff]
    %v906 = vld [vmem:[%s11 + $0x1f8] sm:$0xff]
    %v907 = vld [vmem:[%s13] sm:$0xf]
    %v909 = vperm.slane %v907, 0
    %v910 = vperm.slane %v907, 1
    %v911 = vperm.slane %v907, 2
    %v912 = vperm.slane %v907, 3
    %917 = vmatpush.msra.mxu0 %v903
    %918 = vmatpush.msra.mxu0 %v899
    %919 = vmatpush.msra.mxu0 %v895
    %920 = vmatpush.msra.mxu0 %v891
    %921 = vmatpush.msra.mxu0 %v887
    %922 = vmatpush.msra.mxu0 %v883
    %923 = vmatpush.msra.mxu0 %v879
    %924 = vmatpush.msra.mxu0 %v875
    %925 = vmatpush.msra.mxu0 %v871
    %926 = vmatpush.msra.mxu0 %v867
    %927 = vmatpush.msra.mxu0 %v863
    %928 = vmatpush.msra.mxu0 %v859
    %929 = vmatpush.msra.mxu0 %v855
    %930 = vmatpush.msra.mxu0 %v851
    %931 = vmatpush.msra.mxu0 %v847
    %932 = vmatpush.msra.mxu0 %v843
    %933 = vmatmul.f32.gmra.mxu0 %v767
    %v934 = vpop.f32.mrf.mxu0
    %v935 = vadd.f32 %v909, %v934
    %936 = vmatmul.f32.gmra.mxu0 %v770
    %v937 = vpop.f32.mrf.mxu0
    %v938 = vadd.f32 %v909, %v937
    %939 = vdwg.mxu0
    %940 = vmatpush.msra.mxu0 %v904
    %941 = vmatpush.msra.mxu0 %v900
    %942 = vmatpush.msra.mxu0 %v896
    %943 = vmatpush.msra.mxu0 %v892
    %944 = vmatpush.msra.mxu0 %v888
    %945 = vmatpush.msra.mxu0 %v884
    %946 = vmatpush.msra.mxu0 %v880
    %947 = vmatpush.msra.mxu0 %v876
    %948 = vmatpush.msra.mxu0 %v872
    %949 = vmatpush.msra.mxu0 %v868
    %950 = vmatpush.msra.mxu0 %v864
    %951 = vmatpush.msra.mxu0 %v860
    %952 = vmatpush.msra.mxu0 %v856
    %953 = vmatpush.msra.mxu0 %v852
    %954 = vmatpush.msra.mxu0 %v848
    %955 = vmatpush.msra.mxu0 %v844
    %956 = vmatmul.f32.gmra.mxu0 %v767
    %v957 = vpop.f32.mrf.mxu0
    %v958 = vadd.f32 %v910, %v957
    %959 = vmatmul.f32.gmra.mxu0 %v770
    %v960 = vpop.f32.mrf.mxu0
    %v961 = vadd.f32 %v910, %v960
    %962 = vdwg.mxu0
    %963 = vmatpush.msra.mxu0 %v905
    %964 = vmatpush.msra.mxu0 %v901
    %965 = vmatpush.msra.mxu0 %v897
    %966 = vmatpush.msra.mxu0 %v893
    %967 = vmatpush.msra.mxu0 %v889
    %968 = vmatpush.msra.mxu0 %v885
    %969 = vmatpush.msra.mxu0 %v881
    %970 = vmatpush.msra.mxu0 %v877
    %971 = vmatpush.msra.mxu0 %v873
    %972 = vmatpush.msra.mxu0 %v869
    %973 = vmatpush.msra.mxu0 %v865
    %974 = vmatpush.msra.mxu0 %v861
    %975 = vmatpush.msra.mxu0 %v857
    %976 = vmatpush.msra.mxu0 %v853
    %977 = vmatpush.msra.mxu0 %v849
    %978 = vmatpush.msra.mxu0 %v845
    %979 = vmatmul.f32.gmra.mxu0 %v767
    %v980 = vpop.f32.mrf.mxu0
    %v981 = vadd.f32 %v911, %v980
    %982 = vmatmul.f32.gmra.mxu0 %v770
    %v983 = vpop.f32.mrf.mxu0
    %v984 = vadd.f32 %v911, %v983
    %985 = vdwg.mxu0
    %986 = vmatpush.msra.mxu0 %v906
    %987 = vmatpush.msra.mxu0 %v902
    %988 = vmatpush.msra.mxu0 %v898
    %989 = vmatpush.msra.mxu0 %v894
    %990 = vmatpush.msra.mxu0 %v890
    %991 = vmatpush.msra.mxu0 %v886
    %992 = vmatpush.msra.mxu0 %v882
    %993 = vmatpush.msra.mxu0 %v878
    %994 = vmatpush.msra.mxu0 %v874
    %995 = vmatpush.msra.mxu0 %v870
    %996 = vmatpush.msra.mxu0 %v866
    %997 = vmatpush.msra.mxu0 %v862
    %998 = vmatpush.msra.mxu0 %v858
    %999 = vmatpush.msra.mxu0 %v854
    %1000 = vmatpush.msra.mxu0 %v850
    %1001 = vmatpush.msra.mxu0 %v846
    %1002 = vmatmul.f32.gmra.mxu0 %v767
    %v1003 = vpop.f32.mrf.mxu0
    %v1004 = vadd.f32 %v912, %v1003
    %1005 = vmatmul.f32.gmra.mxu0 %v770
    %v1006 = vpop.f32.mrf.mxu0
    %v1007 = vadd.f32 %v912, %v1006
    %1008 = vdwg.mxu0
    %v1009 = vmax.f32 %v935, 0.0
    %v1010 = vmax.f32 %v958, 0.0
    %v1011 = vmax.f32 %v981, 0.0
    %v1012 = vmax.f32 %v1004, 0.0
    %v1013 = vmax.f32 %v938, 0.0
    %v1014 = vmax.f32 %v961, 0.0
    %v1015 = vmax.f32 %v984, 0.0
    %v1016 = vmax.f32 %v1007, 0.0
    %v1017 = vld [vmem:[%s15] sm:$0xff]
    %v1018 = vld [vmem:[%s15 + $0x8] sm:$0xff]
    %v1019 = vld [vmem:[%s15 + $0x10] sm:$0xff]
    %v1020 = vld [vmem:[%s15 + $0x18] sm:$0xff]
    %v1021 = vld [vmem:[%s15 + $0x20] sm:$0xff]
    %v1022 = vld [vmem:[%s15 + $0x28] sm:$0xff]
    %v1023 = vld [vmem:[%s15 + $0x30] sm:$0xff]
    %v1024 = vld [vmem:[%s15 + $0x38] sm:$0xff]
    %v1025 = vld [vmem:[%s15 + $0x40] sm:$0xff]
    %v1026 = vld [vmem:[%s15 + $0x48] sm:$0xff]
    %v1027 = vld [vmem:[%s15 + $0x50] sm:$0xff]
    %v1028 = vld [vmem:[%s15 + $0x58] sm:$0xff]
    %v1029 = vld [vmem:[%s15 + $0x60] sm:$0xff]
    %v1030 = vld [vmem:[%s15 + $0x68] sm:$0xff]
    %v1031 = vld [vmem:[%s15 + $0x70] sm:$0xff]
    %v1032 = vld [vmem:[%s15 + $0x78] sm:$0xff]
    %v1033 = vld [vmem:[%s15 + $0x80] sm:$0xff]
    %v1034 = vld [vmem:[%s15 + $0x88] sm:$0xff]
    %v1035 = vld [vmem:[%s15 + $0x90] sm:$0xff]
    %v1036 = vld [vmem:[%s15 + $0x98] sm:$0xff]
    %v1037 = vld [vmem:[%s15 + $0xa0] sm:$0xff]
    %v1038 = vld [vmem:[%s15 + $0xa8] sm:$0xff]
    %v1039 = vld [vmem:[%s15 + $0xb0] sm:$0xff]
    %v1040 = vld [vmem:[%s15 + $0xb8] sm:$0xff]
    %v1041 = vld [vmem:[%s15 + $0xc0] sm:$0xff]
    %v1042 = vld [vmem:[%s15 + $0xc8] sm:$0xff]
    %v1043 = vld [vmem:[%s15 + $0xd0] sm:$0xff]
    %v1044 = vld [vmem:[%s15 + $0xd8] sm:$0xff]
    %v1045 = vld [vmem:[%s15 + $0xe0] sm:$0xff]
    %v1046 = vld [vmem:[%s15 + $0xe8] sm:$0xff]
    %v1047 = vld [vmem:[%s15 + $0xf0] sm:$0xff]
    %v1048 = vld [vmem:[%s15 + $0xf8] sm:$0xff]
    %v1049 = vld [vmem:[%s15 + $0x100] sm:$0xff]
    %v1050 = vld [vmem:[%s15 + $0x108] sm:$0xff]
    %v1051 = vld [vmem:[%s15 + $0x110] sm:$0xff]
    %v1052 = vld [vmem:[%s15 + $0x118] sm:$0xff]
    %v1053 = vld [vmem:[%s15 + $0x120] sm:$0xff]
    %v1054 = vld [vmem:[%s15 + $0x128] sm:$0xff]
    %v1055 = vld [vmem:[%s15 + $0x130] sm:$0xff]
    %v1056 = vld [vmem:[%s15 + $0x138] sm:$0xff]
    %v1057 = vld [vmem:[%s15 + $0x140] sm:$0xff]
    %v1058 = vld [vmem:[%s15 + $0x148] sm:$0xff]
    %v1059 = vld [vmem:[%s15 + $0x150] sm:$0xff]
    %v1060 = vld [vmem:[%s15 + $0x158] sm:$0xff]
    %v1061 = vld [vmem:[%s15 + $0x160] sm:$0xff]
    %v1062 = vld [vmem:[%s15 + $0x168] sm:$0xff]
    %v1063 = vld [vmem:[%s15 + $0x170] sm:$0xff]
    %v1064 = vld [vmem:[%s15 + $0x178] sm:$0xff]
    %v1065 = vld [vmem:[%s15 + $0x180] sm:$0xff]
    %v1066 = vld [vmem:[%s15 + $0x188] sm:$0xff]
    %v1067 = vld [vmem:[%s15 + $0x190] sm:$0xff]
    %v1068 = vld [vmem:[%s15 + $0x198] sm:$0xff]
    %v1069 = vld [vmem:[%s15 + $0x1a0] sm:$0xff]
    %v1070 = vld [vmem:[%s15 + $0x1a8] sm:$0xff]
    %v1071 = vld [vmem:[%s15 + $0x1b0] sm:$0xff]
    %v1072 = vld [vmem:[%s15 + $0x1b8] sm:$0xff]
    %v1073 = vld [vmem:[%s15 + $0x1c0] sm:$0xff]
    %v1074 = vld [vmem:[%s15 + $0x1c8] sm:$0xff]
    %v1075 = vld [vmem:[%s15 + $0x1d0] sm:$0xff]
    %v1076 = vld [vmem:[%s15 + $0x1d8] sm:$0xff]
    %v1077 = vld [vmem:[%s15 + $0x1e0] sm:$0xff]
    %v1078 = vld [vmem:[%s15 + $0x1e8] sm:$0xff]
    %v1079 = vld [vmem:[%s15 + $0x1f0] sm:$0xff]
    %v1080 = vld [vmem:[%s15 + $0x1f8] sm:$0xff]
    %v1081 = vld [vmem:[%s17] sm:$0x1]
    %v1083 = vperm.slane %v1081, 0
    %1085 = vmatpush.msra.mxu0 %v1032
    %1086 = vmatpush.msra.mxu0 %v1031
    %1087 = vmatpush.msra.mxu0 %v1030
    %1088 = vmatpush.msra.mxu0 %v1029
    %1089 = vmatpush.msra.mxu0 %v1028
    %1090 = vmatpush.msra.mxu0 %v1027
    %1091 = vmatpush.msra.mxu0 %v1026
    %1092 = vmatpush.msra.mxu0 %v1025
    %1093 = vmatpush.msra.mxu0 %v1024
    %1094 = vmatpush.msra.mxu0 %v1023
    %1095 = vmatpush.msra.mxu0 %v1022
    %1096 = vmatpush.msra.mxu0 %v1021
    %1097 = vmatpush.msra.mxu0 %v1020
    %1098 = vmatpush.msra.mxu0 %v1019
    %1099 = vmatpush.msra.mxu0 %v1018
    %1100 = vmatpush.msra.mxu0 %v1017
    %1101 = vmatmul.f32.gmra.mxu0 %v1009
    %v1102 = vpop.f32.mrf.mxu0
    %v1103 = vadd.f32 %v1083, %v1102
    %1104 = vmatmul.f32.gmra.mxu0 %v1013
    %v1105 = vpop.f32.mrf.mxu0
    %v1106 = vadd.f32 %v1083, %v1105
    %1107 = vdwg.mxu0
    %1108 = vmatpush.msra.mxu0 %v1048
    %1109 = vmatpush.msra.mxu0 %v1047
    %1110 = vmatpush.msra.mxu0 %v1046
    %1111 = vmatpush.msra.mxu0 %v1045
    %1112 = vmatpush.msra.mxu0 %v1044
    %1113 = vmatpush.msra.mxu0 %v1043
    %1114 = vmatpush.msra.mxu0 %v1042
    %1115 = vmatpush.msra.mxu0 %v1041
    %1116 = vmatpush.msra.mxu0 %v1040
    %1117 = vmatpush.msra.mxu0 %v1039
    %1118 = vmatpush.msra.mxu0 %v1038
    %1119 = vmatpush.msra.mxu0 %v1037
    %1120 = vmatpush.msra.mxu0 %v1036
    %1121 = vmatpush.msra.mxu0 %v1035
    %1122 = vmatpush.msra.mxu0 %v1034
    %1123 = vmatpush.msra.mxu0 %v1033
    %1124 = vmatmul.f32.gmra.mxu0 %v1010
    %v1125 = vpop.f32.mrf.mxu0
    %v1126 = vadd.f32 %v1103, %v1125
    %1127 = vmatmul.f32.gmra.mxu0 %v1014
    %v1128 = vpop.f32.mrf.mxu0
    %v1129 = vadd.f32 %v1106, %v1128
    %1130 = vdwg.mxu0
    %1131 = vmatpush.msra.mxu0 %v1064
    %1132 = vmatpush.msra.mxu0 %v1063
    %1133 = vmatpush.msra.mxu0 %v1062
    %1134 = vmatpush.msra.mxu0 %v1061
    %1135 = vmatpush.msra.mxu0 %v1060
    %1136 = vmatpush.msra.mxu0 %v1059
    %1137 = vmatpush.msra.mxu0 %v1058
    %1138 = vmatpush.msra.mxu0 %v1057
    %1139 = vmatpush.msra.mxu0 %v1056
    %1140 = vmatpush.msra.mxu0 %v1055
    %1141 = vmatpush.msra.mxu0 %v1054
    %1142 = vmatpush.msra.mxu0 %v1053
    %1143 = vmatpush.msra.mxu0 %v1052
    %1144 = vmatpush.msra.mxu0 %v1051
    %1145 = vmatpush.msra.mxu0 %v1050
    %1146 = vmatpush.msra.mxu0 %v1049
    %1147 = vmatmul.f32.gmra.mxu0 %v1011
    %v1148 = vpop.f32.mrf.mxu0
    %v1149 = vadd.f32 %v1126, %v1148
    %1150 = vmatmul.f32.gmra.mxu0 %v1015
    %v1151 = vpop.f32.mrf.mxu0
    %v1152 = vadd.f32 %v1129, %v1151
    %1153 = vdwg.mxu0
    %1154 = vmatpush.msra.mxu0 %v1080
    %1155 = vmatpush.msra.mxu0 %v1079
    %1156 = vmatpush.msra.mxu0 %v1078
    %1157 = vmatpush.msra.mxu0 %v1077
    %1158 = vmatpush.msra.mxu0 %v1076
    %1159 = vmatpush.msra.mxu0 %v1075
    %1160 = vmatpush.msra.mxu0 %v1074
    %1161 = vmatpush.msra.mxu0 %v1073
    %1162 = vmatpush.msra.mxu0 %v1072
    %1163 = vmatpush.msra.mxu0 %v1071
    %1164 = vmatpush.msra.mxu0 %v1070
    %1165 = vmatpush.msra.mxu0 %v1069
    %1166 = vmatpush.msra.mxu0 %v1068
    %1167 = vmatpush.msra.mxu0 %v1067
    %1168 = vmatpush.msra.mxu0 %v1066
    %1169 = vmatpush.msra.mxu0 %v1065
    %1170 = vmatmul.f32.gmra.mxu0 %v1012
    %v1171 = vpop.f32.mrf.mxu0
    %v1172 = vadd.f32 %v1149, %v1171
    %1173 = vmatmul.f32.gmra.mxu0 %v1016
    %v1174 = vpop.f32.mrf.mxu0
    %v1175 = vadd.f32 %v1152, %v1174
    %1176 = vdwg.mxu0
    %1177 = vst.msk [vmem:[%s55] sm:$0xff] %vm529, %v1172
    %1178 = vst.msk [vmem:[%s55 + $0x8] sm:$0x3] %vm533, %v1175
    %v1179 = vld [vmem:[%s11] sm:$0xff]
    %v1180 = vld [vmem:[%s11 + $0x8] sm:$0xff]
    %v1181 = vld [vmem:[%s11 + $0x10] sm:$0xff]
    %v1182 = vld [vmem:[%s11 + $0x18] sm:$0xff]
    %v1183 = vld [vmem:[%s11 + $0x20] sm:$0xff]
    %v1184 = vld [vmem:[%s11 + $0x28] sm:$0xff]
    %v1185 = vld [vmem:[%s11 + $0x30] sm:$0xff]
    %v1186 = vld [vmem:[%s11 + $0x38] sm:$0xff]
    %v1187 = vld [vmem:[%s11 + $0x40] sm:$0xff]
    %v1188 = vld [vmem:[%s11 + $0x48] sm:$0xff]
    %v1189 = vld [vmem:[%s11 + $0x50] sm:$0xff]
    %v1190 = vld [vmem:[%s11 + $0x58] sm:$0xff]
    %v1191 = vld [vmem:[%s11 + $0x60] sm:$0xff]
    %v1192 = vld [vmem:[%s11 + $0x68] sm:$0xff]
    %v1193 = vld [vmem:[%s11 + $0x70] sm:$0xff]
    %v1194 = vld [vmem:[%s11 + $0x78] sm:$0xff]
    %v1195 = vld [vmem:[%s11 + $0x80] sm:$0xff]
    %v1196 = vld [vmem:[%s11 + $0x88] sm:$0xff]
    %v1197 = vld [vmem:[%s11 + $0x90] sm:$0xff]
    %v1198 = vld [vmem:[%s11 + $0x98] sm:$0xff]
    %v1199 = vld [vmem:[%s11 + $0xa0] sm:$0xff]
    %v1200 = vld [vmem:[%s11 + $0xa8] sm:$0xff]
    %v1201 = vld [vmem:[%s11 + $0xb0] sm:$0xff]
    %v1202 = vld [vmem:[%s11 + $0xb8] sm:$0xff]
    %v1203 = vld [vmem:[%s11 + $0xc0] sm:$0xff]
    %v1204 = vld [vmem:[%s11 + $0xc8] sm:$0xff]
    %v1205 = vld [vmem:[%s11 + $0xd0] sm:$0xff]
    %v1206 = vld [vmem:[%s11 + $0xd8] sm:$0xff]
    %v1207 = vld [vmem:[%s11 + $0xe0] sm:$0xff]
    %v1208 = vld [vmem:[%s11 + $0xe8] sm:$0xff]
    %v1209 = vld [vmem:[%s11 + $0xf0] sm:$0xff]
    %v1210 = vld [vmem:[%s11 + $0xf8] sm:$0xff]
    %v1211 = vld [vmem:[%s11 + $0x100] sm:$0xff]
    %v1212 = vld [vmem:[%s11 + $0x108] sm:$0xff]
    %v1213 = vld [vmem:[%s11 + $0x110] sm:$0xff]
    %v1214 = vld [vmem:[%s11 + $0x118] sm:$0xff]
    %v1215 = vld [vmem:[%s11 + $0x120] sm:$0xff]
    %v1216 = vld [vmem:[%s11 + $0x128] sm:$0xff]
    %v1217 = vld [vmem:[%s11 + $0x130] sm:$0xff]
    %v1218 = vld [vmem:[%s11 + $0x138] sm:$0xff]
    %v1219 = vld [vmem:[%s11 + $0x140] sm:$0xff]
    %v1220 = vld [vmem:[%s11 + $0x148] sm:$0xff]
    %v1221 = vld [vmem:[%s11 + $0x150] sm:$0xff]
    %v1222 = vld [vmem:[%s11 + $0x158] sm:$0xff]
    %v1223 = vld [vmem:[%s11 + $0x160] sm:$0xff]
    %v1224 = vld [vmem:[%s11 + $0x168] sm:$0xff]
    %v1225 = vld [vmem:[%s11 + $0x170] sm:$0xff]
    %v1226 = vld [vmem:[%s11 + $0x178] sm:$0xff]
    %v1227 = vld [vmem:[%s11 + $0x180] sm:$0xff]
    %v1228 = vld [vmem:[%s11 + $0x188] sm:$0xff]
    %v1229 = vld [vmem:[%s11 + $0x190] sm:$0xff]
    %v1230 = vld [vmem:[%s11 + $0x198] sm:$0xff]
    %v1231 = vld [vmem:[%s11 + $0x1a0] sm:$0xff]
    %v1232 = vld [vmem:[%s11 + $0x1a8] sm:$0xff]
    %v1233 = vld [vmem:[%s11 + $0x1b0] sm:$0xff]
    %v1234 = vld [vmem:[%s11 + $0x1b8] sm:$0xff]
    %v1235 = vld [vmem:[%s11 + $0x1c0] sm:$0xff]
    %v1236 = vld [vmem:[%s11 + $0x1c8] sm:$0xff]
    %v1237 = vld [vmem:[%s11 + $0x1d0] sm:$0xff]
    %v1238 = vld [vmem:[%s11 + $0x1d8] sm:$0xff]
    %v1239 = vld [vmem:[%s11 + $0x1e0] sm:$0xff]
    %v1240 = vld [vmem:[%s11 + $0x1e8] sm:$0xff]
    %v1241 = vld [vmem:[%s11 + $0x1f0] sm:$0xff]
    %v1242 = vld [vmem:[%s11 + $0x1f8] sm:$0xff]
    %v1243 = vld [vmem:[%s13] sm:$0xf]
    %v1245 = vperm.slane %v1243, 0
    %v1246 = vperm.slane %v1243, 1
    %v1247 = vperm.slane %v1243, 2
    %v1248 = vperm.slane %v1243, 3
    %1253 = vmatpush.msra.mxu0 %v1239
    %1254 = vmatpush.msra.mxu0 %v1235
    %1255 = vmatpush.msra.mxu0 %v1231
    %1256 = vmatpush.msra.mxu0 %v1227
    %1257 = vmatpush.msra.mxu0 %v1223
    %1258 = vmatpush.msra.mxu0 %v1219
    %1259 = vmatpush.msra.mxu0 %v1215
    %1260 = vmatpush.msra.mxu0 %v1211
    %1261 = vmatpush.msra.mxu0 %v1207
    %1262 = vmatpush.msra.mxu0 %v1203
    %1263 = vmatpush.msra.mxu0 %v1199
    %1264 = vmatpush.msra.mxu0 %v1195
    %1265 = vmatpush.msra.mxu0 %v1191
    %1266 = vmatpush.msra.mxu0 %v1187
    %1267 = vmatpush.msra.mxu0 %v1183
    %1268 = vmatpush.msra.mxu0 %v1179
    %1269 = vmatmul.f32.gmra.mxu0 %v838
    %v1270 = vpop.f32.mrf.mxu0
    %v1271 = vadd.f32 %v1245, %v1270
    %1272 = vmatmul.f32.gmra.mxu0 %v841
    %v1273 = vpop.f32.mrf.mxu0
    %v1274 = vadd.f32 %v1245, %v1273
    %1275 = vdwg.mxu0
    %1276 = vmatpush.msra.mxu0 %v1240
    %1277 = vmatpush.msra.mxu0 %v1236
    %1278 = vmatpush.msra.mxu0 %v1232
    %1279 = vmatpush.msra.mxu0 %v1228
    %1280 = vmatpush.msra.mxu0 %v1224
    %1281 = vmatpush.msra.mxu0 %v1220
    %1282 = vmatpush.msra.mxu0 %v1216
    %1283 = vmatpush.msra.mxu0 %v1212
    %1284 = vmatpush.msra.mxu0 %v1208
    %1285 = vmatpush.msra.mxu0 %v1204
    %1286 = vmatpush.msra.mxu0 %v1200
    %1287 = vmatpush.msra.mxu0 %v1196
    %1288 = vmatpush.msra.mxu0 %v1192
    %1289 = vmatpush.msra.mxu0 %v1188
    %1290 = vmatpush.msra.mxu0 %v1184
    %1291 = vmatpush.msra.mxu0 %v1180
    %1292 = vmatmul.f32.gmra.mxu0 %v838
    %v1293 = vpop.f32.mrf.mxu0
    %v1294 = vadd.f32 %v1246, %v1293
    %1295 = vmatmul.f32.gmra.mxu0 %v841
    %v1296 = vpop.f32.mrf.mxu0
    %v1297 = vadd.f32 %v1246, %v1296
    %1298 = vdwg.mxu0
    %1299 = vmatpush.msra.mxu0 %v1241
    %1300 = vmatpush.msra.mxu0 %v1237
    %1301 = vmatpush.msra.mxu0 %v1233
    %1302 = vmatpush.msra.mxu0 %v1229
    %1303 = vmatpush.msra.mxu0 %v1225
    %1304 = vmatpush.msra.mxu0 %v1221
    %1305 = vmatpush.msra.mxu0 %v1217
    %1306 = vmatpush.msra.mxu0 %v1213
    %1307 = vmatpush.msra.mxu0 %v1209
    %1308 = vmatpush.msra.mxu0 %v1205
    %1309 = vmatpush.msra.mxu0 %v1201
    %1310 = vmatpush.msra.mxu0 %v1197
    %1311 = vmatpush.msra.mxu0 %v1193
    %1312 = vmatpush.msra.mxu0 %v1189
    %1313 = vmatpush.msra.mxu0 %v1185
    %1314 = vmatpush.msra.mxu0 %v1181
    %1315 = vmatmul.f32.gmra.mxu0 %v838
    %v1316 = vpop.f32.mrf.mxu0
    %v1317 = vadd.f32 %v1247, %v1316
    %1318 = vmatmul.f32.gmra.mxu0 %v841
    %v1319 = vpop.f32.mrf.mxu0
    %v1320 = vadd.f32 %v1247, %v1319
    %1321 = vdwg.mxu0
    %1322 = vmatpush.msra.mxu0 %v1242
    %1323 = vmatpush.msra.mxu0 %v1238
    %1324 = vmatpush.msra.mxu0 %v1234
    %1325 = vmatpush.msra.mxu0 %v1230
    %1326 = vmatpush.msra.mxu0 %v1226
    %1327 = vmatpush.msra.mxu0 %v1222
    %1328 = vmatpush.msra.mxu0 %v1218
    %1329 = vmatpush.msra.mxu0 %v1214
    %1330 = vmatpush.msra.mxu0 %v1210
    %1331 = vmatpush.msra.mxu0 %v1206
    %1332 = vmatpush.msra.mxu0 %v1202
    %1333 = vmatpush.msra.mxu0 %v1198
    %1334 = vmatpush.msra.mxu0 %v1194
    %1335 = vmatpush.msra.mxu0 %v1190
    %1336 = vmatpush.msra.mxu0 %v1186
    %1337 = vmatpush.msra.mxu0 %v1182
    %1338 = vmatmul.f32.gmra.mxu0 %v838
    %v1339 = vpop.f32.mrf.mxu0
    %v1340 = vadd.f32 %v1248, %v1339
    %1341 = vmatmul.f32.gmra.mxu0 %v841
    %v1342 = vpop.f32.mrf.mxu0
    %v1343 = vadd.f32 %v1248, %v1342
    %1344 = vdwg.mxu0
    %v1345 = vmax.f32 %v1271, 0.0
    %v1346 = vmax.f32 %v1294, 0.0
    %v1347 = vmax.f32 %v1317, 0.0
    %v1348 = vmax.f32 %v1340, 0.0
    %v1349 = vmax.f32 %v1274, 0.0
    %v1350 = vmax.f32 %v1297, 0.0
    %v1351 = vmax.f32 %v1320, 0.0
    %v1352 = vmax.f32 %v1343, 0.0
    %v1353 = vld [vmem:[%s15] sm:$0xff]
    %v1354 = vld [vmem:[%s15 + $0x8] sm:$0xff]
    %v1355 = vld [vmem:[%s15 + $0x10] sm:$0xff]
    %v1356 = vld [vmem:[%s15 + $0x18] sm:$0xff]
    %v1357 = vld [vmem:[%s15 + $0x20] sm:$0xff]
    %v1358 = vld [vmem:[%s15 + $0x28] sm:$0xff]
    %v1359 = vld [vmem:[%s15 + $0x30] sm:$0xff]
    %v1360 = vld [vmem:[%s15 + $0x38] sm:$0xff]
    %v1361 = vld [vmem:[%s15 + $0x40] sm:$0xff]
    %v1362 = vld [vmem:[%s15 + $0x48] sm:$0xff]
    %v1363 = vld [vmem:[%s15 + $0x50] sm:$0xff]
    %v1364 = vld [vmem:[%s15 + $0x58] sm:$0xff]
    %v1365 = vld [vmem:[%s15 + $0x60] sm:$0xff]
    %v1366 = vld [vmem:[%s15 + $0x68] sm:$0xff]
    %v1367 = vld [vmem:[%s15 + $0x70] sm:$0xff]
    %v1368 = vld [vmem:[%s15 + $0x78] sm:$0xff]
    %v1369 = vld [vmem:[%s15 + $0x80] sm:$0xff]
    %v1370 = vld [vmem:[%s15 + $0x88] sm:$0xff]
    %v1371 = vld [vmem:[%s15 + $0x90] sm:$0xff]
    %v1372 = vld [vmem:[%s15 + $0x98] sm:$0xff]
    %v1373 = vld [vmem:[%s15 + $0xa0] sm:$0xff]
    %v1374 = vld [vmem:[%s15 + $0xa8] sm:$0xff]
    %v1375 = vld [vmem:[%s15 + $0xb0] sm:$0xff]
    %v1376 = vld [vmem:[%s15 + $0xb8] sm:$0xff]
    %v1377 = vld [vmem:[%s15 + $0xc0] sm:$0xff]
    %v1378 = vld [vmem:[%s15 + $0xc8] sm:$0xff]
    %v1379 = vld [vmem:[%s15 + $0xd0] sm:$0xff]
    %v1380 = vld [vmem:[%s15 + $0xd8] sm:$0xff]
    %v1381 = vld [vmem:[%s15 + $0xe0] sm:$0xff]
    %v1382 = vld [vmem:[%s15 + $0xe8] sm:$0xff]
    %v1383 = vld [vmem:[%s15 + $0xf0] sm:$0xff]
    %v1384 = vld [vmem:[%s15 + $0xf8] sm:$0xff]
    %v1385 = vld [vmem:[%s15 + $0x100] sm:$0xff]
    %v1386 = vld [vmem:[%s15 + $0x108] sm:$0xff]
    %v1387 = vld [vmem:[%s15 + $0x110] sm:$0xff]
    %v1388 = vld [vmem:[%s15 + $0x118] sm:$0xff]
    %v1389 = vld [vmem:[%s15 + $0x120] sm:$0xff]
    %v1390 = vld [vmem:[%s15 + $0x128] sm:$0xff]
    %v1391 = vld [vmem:[%s15 + $0x130] sm:$0xff]
    %v1392 = vld [vmem:[%s15 + $0x138] sm:$0xff]
    %v1393 = vld [vmem:[%s15 + $0x140] sm:$0xff]
    %v1394 = vld [vmem:[%s15 + $0x148] sm:$0xff]
    %v1395 = vld [vmem:[%s15 + $0x150] sm:$0xff]
    %v1396 = vld [vmem:[%s15 + $0x158] sm:$0xff]
    %v1397 = vld [vmem:[%s15 + $0x160] sm:$0xff]
    %v1398 = vld [vmem:[%s15 + $0x168] sm:$0xff]
    %v1399 = vld [vmem:[%s15 + $0x170] sm:$0xff]
    %v1400 = vld [vmem:[%s15 + $0x178] sm:$0xff]
    %v1401 = vld [vmem:[%s15 + $0x180] sm:$0xff]
    %v1402 = vld [vmem:[%s15 + $0x188] sm:$0xff]
    %v1403 = vld [vmem:[%s15 + $0x190] sm:$0xff]
    %v1404 = vld [vmem:[%s15 + $0x198] sm:$0xff]
    %v1405 = vld [vmem:[%s15 + $0x1a0] sm:$0xff]
    %v1406 = vld [vmem:[%s15 + $0x1a8] sm:$0xff]
    %v1407 = vld [vmem:[%s15 + $0x1b0] sm:$0xff]
    %v1408 = vld [vmem:[%s15 + $0x1b8] sm:$0xff]
    %v1409 = vld [vmem:[%s15 + $0x1c0] sm:$0xff]
    %v1410 = vld [vmem:[%s15 + $0x1c8] sm:$0xff]
    %v1411 = vld [vmem:[%s15 + $0x1d0] sm:$0xff]
    %v1412 = vld [vmem:[%s15 + $0x1d8] sm:$0xff]
    %v1413 = vld [vmem:[%s15 + $0x1e0] sm:$0xff]
    %v1414 = vld [vmem:[%s15 + $0x1e8] sm:$0xff]
    %v1415 = vld [vmem:[%s15 + $0x1f0] sm:$0xff]
    %v1416 = vld [vmem:[%s15 + $0x1f8] sm:$0xff]
    %v1417 = vld [vmem:[%s17] sm:$0x1]
    %v1419 = vperm.slane %v1417, 0
    %1421 = vmatpush.msra.mxu0 %v1368
    %1422 = vmatpush.msra.mxu0 %v1367
    %1423 = vmatpush.msra.mxu0 %v1366
    %1424 = vmatpush.msra.mxu0 %v1365
    %1425 = vmatpush.msra.mxu0 %v1364
    %1426 = vmatpush.msra.mxu0 %v1363
    %1427 = vmatpush.msra.mxu0 %v1362
    %1428 = vmatpush.msra.mxu0 %v1361
    %1429 = vmatpush.msra.mxu0 %v1360
    %1430 = vmatpush.msra.mxu0 %v1359
    %1431 = vmatpush.msra.mxu0 %v1358
    %1432 = vmatpush.msra.mxu0 %v1357
    %1433 = vmatpush.msra.mxu0 %v1356
    %1434 = vmatpush.msra.mxu0 %v1355
    %1435 = vmatpush.msra.mxu0 %v1354
    %1436 = vmatpush.msra.mxu0 %v1353
    %1437 = vmatmul.f32.gmra.mxu0 %v1345
    %v1438 = vpop.f32.mrf.mxu0
    %v1439 = vadd.f32 %v1419, %v1438
    %1440 = vmatmul.f32.gmra.mxu0 %v1349
    %v1441 = vpop.f32.mrf.mxu0
    %v1442 = vadd.f32 %v1419, %v1441
    %1443 = vdwg.mxu0
    %1444 = vmatpush.msra.mxu0 %v1384
    %1445 = vmatpush.msra.mxu0 %v1383
    %1446 = vmatpush.msra.mxu0 %v1382
    %1447 = vmatpush.msra.mxu0 %v1381
    %1448 = vmatpush.msra.mxu0 %v1380
    %1449 = vmatpush.msra.mxu0 %v1379
    %1450 = vmatpush.msra.mxu0 %v1378
    %1451 = vmatpush.msra.mxu0 %v1377
    %1452 = vmatpush.msra.mxu0 %v1376
    %1453 = vmatpush.msra.mxu0 %v1375
    %1454 = vmatpush.msra.mxu0 %v1374
    %1455 = vmatpush.msra.mxu0 %v1373
    %1456 = vmatpush.msra.mxu0 %v1372
    %1457 = vmatpush.msra.mxu0 %v1371
    %1458 = vmatpush.msra.mxu0 %v1370
    %1459 = vmatpush.msra.mxu0 %v1369
    %1460 = vmatmul.f32.gmra.mxu0 %v1346
    %v1461 = vpop.f32.mrf.mxu0
    %v1462 = vadd.f32 %v1439, %v1461
    %1463 = vmatmul.f32.gmra.mxu0 %v1350
    %v1464 = vpop.f32.mrf.mxu0
    %v1465 = vadd.f32 %v1442, %v1464
    %1466 = vdwg.mxu0
    %1467 = vmatpush.msra.mxu0 %v1400
    %1468 = vmatpush.msra.mxu0 %v1399
    %1469 = vmatpush.msra.mxu0 %v1398
    %1470 = vmatpush.msra.mxu0 %v1397
    %1471 = vmatpush.msra.mxu0 %v1396
    %1472 = vmatpush.msra.mxu0 %v1395
    %1473 = vmatpush.msra.mxu0 %v1394
    %1474 = vmatpush.msra.mxu0 %v1393
    %1475 = vmatpush.msra.mxu0 %v1392
    %1476 = vmatpush.msra.mxu0 %v1391
    %1477 = vmatpush.msra.mxu0 %v1390
    %1478 = vmatpush.msra.mxu0 %v1389
    %1479 = vmatpush.msra.mxu0 %v1388
    %1480 = vmatpush.msra.mxu0 %v1387
    %1481 = vmatpush.msra.mxu0 %v1386
    %1482 = vmatpush.msra.mxu0 %v1385
    %1483 = vmatmul.f32.gmra.mxu0 %v1347
    %v1484 = vpop.f32.mrf.mxu0
    %v1485 = vadd.f32 %v1462, %v1484
    %1486 = vmatmul.f32.gmra.mxu0 %v1351
    %v1487 = vpop.f32.mrf.mxu0
    %v1488 = vadd.f32 %v1465, %v1487
    %1489 = vdwg.mxu0
    %1490 = vmatpush.msra.mxu0 %v1416
    %1491 = vmatpush.msra.mxu0 %v1415
    %1492 = vmatpush.msra.mxu0 %v1414
    %1493 = vmatpush.msra.mxu0 %v1413
    %1494 = vmatpush.msra.mxu0 %v1412
    %1495 = vmatpush.msra.mxu0 %v1411
    %1496 = vmatpush.msra.mxu0 %v1410
    %1497 = vmatpush.msra.mxu0 %v1409
    %1498 = vmatpush.msra.mxu0 %v1408
    %1499 = vmatpush.msra.mxu0 %v1407
    %1500 = vmatpush.msra.mxu0 %v1406
    %1501 = vmatpush.msra.mxu0 %v1405
    %1502 = vmatpush.msra.mxu0 %v1404
    %1503 = vmatpush.msra.mxu0 %v1403
    %1504 = vmatpush.msra.mxu0 %v1402
    %1505 = vmatpush.msra.mxu0 %v1401
    %1506 = vmatmul.f32.gmra.mxu0 %v1348
    %v1507 = vpop.f32.mrf.mxu0
    %v1508 = vadd.f32 %v1485, %v1507
    %1509 = vmatmul.f32.gmra.mxu0 %v1352
    %v1510 = vpop.f32.mrf.mxu0
    %v1511 = vadd.f32 %v1488, %v1510
    %1512 = vdwg.mxu0
    %1513 = vst.msk [vmem:[%s57] sm:$0xff] %vm529, %v1508
    %1514 = vst.msk [vmem:[%s57 + $0x8] sm:$0x3] %vm533, %v1511
    %v1515 = vld [vmem:[#allocation8] sm:$0xff]
    %v1516 = vld [vmem:[#allocation8 + $0x8] sm:$0xff]
    %v1517 = vld [vmem:[#allocation8 + $0x10] sm:$0xff]
    %v1518 = vld [vmem:[#allocation8 + $0x18] sm:$0xff]
    %v1519 = vld [vmem:[#allocation8 + $0x20] sm:$0xff]
    %v1520 = vld [vmem:[#allocation8 + $0x28] sm:$0xff]
    %v1521 = vld [vmem:[#allocation8 + $0x30] sm:$0xff]
    %v1522 = vld [vmem:[#allocation8 + $0x38] sm:$0xff]
    %v1523 = vld [vmem:[#allocation8 + $0x40] sm:$0xff]
    %v1524 = vld [vmem:[#allocation8 + $0x48] sm:$0xff]
    %v1525 = vld [vmem:[#allocation8 + $0x50] sm:$0xff]
    %v1526 = vld [vmem:[#allocation8 + $0x58] sm:$0xff]
    %v1527 = vld [vmem:[#allocation8 + $0x60] sm:$0xff]
    %v1528 = vld [vmem:[#allocation8 + $0x68] sm:$0xff]
    %v1529 = vld [vmem:[#allocation8 + $0x70] sm:$0xff]
    %v1530 = vld [vmem:[#allocation8 + $0x78] sm:$0xff]
    %v1531 = vld [vmem:[#allocation10] sm:$0x1]
    %v1533 = vperm.slane %v1531, 0
    %1535 = vmatpush.msra.mxu0 %v1530
    %1536 = vmatpush.msra.mxu0 %v1529
    %1537 = vmatpush.msra.mxu0 %v1528
    %1538 = vmatpush.msra.mxu0 %v1527
    %1539 = vmatpush.msra.mxu0 %v1526
    %1540 = vmatpush.msra.mxu0 %v1525
    %1541 = vmatpush.msra.mxu0 %v1524
    %1542 = vmatpush.msra.mxu0 %v1523
    %1543 = vmatpush.msra.mxu0 %v1522
    %1544 = vmatpush.msra.mxu0 %v1521
    %1545 = vmatpush.msra.mxu0 %v1520
    %1546 = vmatpush.msra.mxu0 %v1519
    %1547 = vmatpush.msra.mxu0 %v1518
    %1548 = vmatpush.msra.mxu0 %v1517
    %1549 = vmatpush.msra.mxu0 %v1516
    %1550 = vmatpush.msra.mxu0 %v1515
    %1551 = vmatmul.f32.gmra.mxu0 %v838
    %v1552 = vpop.f32.mrf.mxu0
    %v1553 = vadd.f32 %v1533, %v1552
    %1554 = vmatmul.f32.gmra.mxu0 %v841
    %v1555 = vpop.f32.mrf.mxu0
    %v1556 = vadd.f32 %v1533, %v1555
    %1557 = vdwg.mxu0
    %v1558 = vtanh.pop %v1553
    %v1559 = vtanh.pop %v1556
    %1560 = vst [vmem:[%s51] sm:$0xff] %v1558
    %1561 = vst [vmem:[%s51 + $0x8] sm:$0x3] %v1559
    %v1562 = vld [vmem:[%s25] sm:$0xff]
    %v1563 = vld [vmem:[#allocation11] sm:$0xff]
    %v1564 = vld [vmem:[#allocation11 + $0x8] sm:$0x3]
    %v1565 = vmul.f32 %v1558, %v1563
    %v1566 = vmul.f32 %v1559, %v1564
    %v1568 = vsel %vm529, %v1562, 0
    %v1571 = vsel %vm364, %v1566, 0
    %1573 = vmatpush.msra.mxu0 0.0
    %1574 = vmatpush.msra.mxu0 0.0
    %1575 = vmatpush.msra.mxu0 0.0
    %1576 = vmatpush.msra.mxu0 0.0
    %1577 = vmatpush.msra.mxu0 0.0
    %1578 = vmatpush.msra.mxu0 0.0
    %1579 = vmatpush.msra.mxu0 0.0
    %1580 = vmatpush.msra.mxu0 0.0
    %1581 = vmatpush.msra.mxu0 0.0
    %1582 = vmatpush.msra.mxu0 0.0
    %1583 = vmatpush.msra.mxu0 0.0
    %1584 = vmatpush.msra.mxu0 0.0
    %1585 = vmatpush.msra.mxu0 0.0
    %1586 = vmatpush.msra.mxu0 0.0
    %1587 = vmatpush.msra.mxu0 %v1571
    %1588 = vmatpush.msra.mxu0 %v1565
    %1589 = vmatmul.f32.gmra.mxu0 %v1568
    %v1590 = vpop.f32.mrf.mxu0
    %v1591 = vadd.f32 0.0, %v1590
    %1592 = vdwg.mxu0
    %v1593 = vtanh.pop %v1591
    %1594 = vst [vmem:[%s53] sm:$0xff] %v1593
    %v1595 = vld [vmem:[%s27] sm:$0xff]
    %v1596 = vld [vmem:[%s27 + $0x8] sm:$0xff]
    %v1597 = vmul.f32 %v1595, %v1595
    %v1598 = vmul.f32 %v1596, %v1596
    %1599 = vadd.xlane.f32.xlu0 %v1597
    %v1600 = vpop.xlane.xlu0 %1599
    %1601 = vadd.xlane.f32.xlu0 %v1598
    %v1602 = vpop.xlane.xlu0 %1601
    %v1603 = vrsqrt.pop %v1600
    %v1604 = vmul.f32 %v1603, %v1600
    %v1605 = vmul.f32 %v1604, %v1603
    %v1606 = vmul.f32 0.5, %v1605
    %v1607 = vsub.f32 1.5, %v1606
    %v1608 = vmul.f32 %v1603, %v1607
    %v1609 = vmul.f32 %v1600, %v1608
    %vm1610 = vcmp.eq.f32.partialorder %v1600, inf
    %v1611 = vsel %vm1610, %v1600, %v1609
    %vm1612 = vcmp.eq.f32.partialorder %v1600, 0.0
    %v1613 = vand.u32 %v1600, 2147483648
    %v1614 = vsel %vm1612, %v1613, %v1611
    %v1615 = vrsqrt.pop %v1602
    %v1616 = vmul.f32 %v1615, %v1602
    %v1617 = vmul.f32 %v1616, %v1615
    %v1618 = vmul.f32 0.5, %v1617
    %v1619 = vsub.f32 1.5, %v1618
    %v1620 = vmul.f32 %v1615, %v1619
    %v1621 = vmul.f32 %v1602, %v1620
    %vm1622 = vcmp.eq.f32.partialorder %v1602, inf
    %v1623 = vsel %vm1622, %v1602, %v1621
    %vm1624 = vcmp.eq.f32.partialorder %v1602, 0.0
    %v1625 = vand.u32 %v1602, 2147483648
    %v1626 = vsel %vm1624, %v1625, %v1623
    %v1627 = vmax.f32 %v1614, 1e-08
    %v1628 = vmax.f32 %v1626, 1e-08
    %v1629 = vrcp.pop %v1627
    %v1630 = vmul.f32 %v1627, %v1629
    %v1631 = vsub.f32 1.0, %v1630
    %v1632 = vmul.f32 %v1629, %v1631
    %v1633 = vadd.f32 %v1629, %v1632
    %vm1634 = vweird.f32 %v1627
    %vm1635 = vweird.f32 %v1629
    %vm1636 = vmor %vm1634, %vm1635
    %v1637 = vsel %vm1636, %v1629, %v1633
    %v1638 = vand.u32 2147483647, %v1627
    %vm1639 = vcmp.eq.f32.partialorder %v1638, 8.507059e+37
    %v1640 = vand.u32 %v1627, 2147483648
    %v1641 = vor.u32 1.1754944e-38, %v1640
    %v1642 = vsel %vm1639, %v1641, %v1637
    %v1643 = vmul.f32 %v1595, %v1642
    %v1644 = vrcp.pop %v1628
    %v1645 = vmul.f32 %v1628, %v1644
    %v1646 = vsub.f32 1.0, %v1645
    %v1647 = vmul.f32 %v1644, %v1646
    %v1648 = vadd.f32 %v1644, %v1647
    %vm1649 = vweird.f32 %v1628
    %vm1650 = vweird.f32 %v1644
    %vm1651 = vmor %vm1649, %vm1650
    %v1652 = vsel %vm1651, %v1644, %v1648
    %v1653 = vand.u32 2147483647, %v1628
    %vm1654 = vcmp.eq.f32.partialorder %v1653, 8.507059e+37
    %v1655 = vand.u32 %v1628, 2147483648
    %v1656 = vor.u32 1.1754944e-38, %v1655
    %v1657 = vsel %vm1654, %v1656, %v1652
    %v1658 = vmul.f32 %v1596, %v1657
    %1659 = vmatpush.xpose.msra.mxu0 0.0
    %1660 = vmatpush.xpose.msra.mxu0 0.0
    %1661 = vmatpush.xpose.msra.mxu0 0.0
    %1662 = vmatpush.xpose.msra.mxu0 0.0
    %1663 = vmatpush.xpose.msra.mxu0 0.0
    %1664 = vmatpush.xpose.msra.mxu0 0.0
    %1665 = vmatpush.xpose.msra.mxu0 0.0
    %1666 = vmatpush.xpose.msra.mxu0 0.0
    %1667 = vmatpush.xpose.msra.mxu0 0.0
    %1668 = vmatpush.xpose.msra.mxu0 0.0
    %1669 = vmatpush.xpose.msra.mxu0 0.0
    %1670 = vmatpush.xpose.msra.mxu0 0.0
    %1671 = vmatpush.xpose.msra.mxu0 0.0
    %1672 = vmatpush.xpose.msra.mxu0 0.0
    %1673 = vmatpush.xpose.msra.mxu0 %v1658
    %1674 = vmatpush.xpose.msra.mxu0 %v1643
    %1675 = vmatmul.f32.gmra.mxu0 %v1643
    %v1676 = vpop.f32.mrf.mxu0
    %v1677 = vadd.f32 0.0, %v1676
    %1678 = vmatmul.f32.gmra.mxu0 %v1658
    %v1679 = vpop.f32.mrf.mxu0
    %v1680 = vadd.f32 0.0, %v1679
    %1681 = vdwg.mxu0
    %vm1682 = vcmp.lt.f32.partialorder %v1677, 0.4
    %vm1683 = vcmp.lt.f32.partialorder %v1680, 0.4
    %v1684 = vsel %vm1682, 0.0, %v1677
    %v1685 = vsel %vm1683, 0.0, %v1680
    %v1686 = vld [vmem:[%s29] sm:$0xff]
    %v1687 = vld [vmem:[%s29 + $0x8] sm:$0xff]
    %v1688 = vld [vmem:[#allocation13] sm:$0xff]
    %v1689 = vld [vmem:[#allocation13 + $0x8] sm:$0xff]
    %v1690 = vld [vmem:[#allocation14] sm:$0x1]
    %v1692 = vperm.slane %v1690, 0
    %vm1694 = vcmask 130048
    %v1696 = vsel %vm1694, %v1686, 0
    %v1699 = vsel %vm1694, %v1687, 0
    %1701 = vmatpush.msra.mxu0 0.0
    %1702 = vmatpush.msra.mxu0 0.0
    %1703 = vmatpush.msra.mxu0 0.0
    %1704 = vmatpush.msra.mxu0 0.0
    %1705 = vmatpush.msra.mxu0 0.0
    %1706 = vmatpush.msra.mxu0 0.0
    %1707 = vmatpush.msra.mxu0 0.0
    %1708 = vmatpush.msra.mxu0 0.0
    %1709 = vmatpush.msra.mxu0 0.0
    %1710 = vmatpush.msra.mxu0 0.0
    %1711 = vmatpush.msra.mxu0 0.0
    %1712 = vmatpush.msra.mxu0 0.0
    %1713 = vmatpush.msra.mxu0 0.0
    %1714 = vmatpush.msra.mxu0 0.0
    %1715 = vmatpush.msra.mxu0 %v1689
    %1716 = vmatpush.msra.mxu0 %v1688
    %1717 = vmatmul.f32.gmra.mxu0 %v1696
    %v1718 = vpop.f32.mrf.mxu0
    %v1719 = vadd.f32 %v1692, %v1718
    %1720 = vmatmul.f32.gmra.mxu0 %v1699
    %v1721 = vpop.f32.mrf.mxu0
    %v1722 = vadd.f32 %v1692, %v1721
    %1723 = vdwg.mxu0
    %v1724 = vld [vmem:[#allocation16] sm:$0xff]
    %v1725 = vld [vmem:[#allocation16 + $0x8] sm:$0xff]
    %v1726 = vld [vmem:[#allocation17] sm:$0x1]
    %v1728 = vperm.slane %v1726, 0
    %v1731 = vsel %vm1694, %v1684, 0
    %v1734 = vsel %vm1694, %v1685, 0
    %1736 = vmatpush.msra.mxu0 0.0
    %1737 = vmatpush.msra.mxu0 0.0
    %1738 = vmatpush.msra.mxu0 0.0
    %1739 = vmatpush.msra.mxu0 0.0
    %1740 = vmatpush.msra.mxu0 0.0
    %1741 = vmatpush.msra.mxu0 0.0
    %1742 = vmatpush.msra.mxu0 0.0
    %1743 = vmatpush.msra.mxu0 0.0
    %1744 = vmatpush.msra.mxu0 0.0
    %1745 = vmatpush.msra.mxu0 0.0
    %1746 = vmatpush.msra.mxu0 0.0
    %1747 = vmatpush.msra.mxu0 0.0
    %1748 = vmatpush.msra.mxu0 0.0
    %1749 = vmatpush.msra.mxu0 0.0
    %1750 = vmatpush.msra.mxu0 %v1725
    %1751 = vmatpush.msra.mxu0 %v1724
    %1752 = vmatmul.f32.gmra.mxu0 %v1731
    %v1753 = vpop.f32.mrf.mxu0
    %v1754 = vadd.f32 %v1728, %v1753
    %1755 = vmatmul.f32.gmra.mxu0 %v1734
    %v1756 = vpop.f32.mrf.mxu0
    %v1757 = vadd.f32 %v1728, %v1756
    %1758 = vdwg.mxu0
    %v1759 = vadd.f32 %v1686, %v1754
    %v1760 = vadd.f32 %v1687, %v1757
    %v1761 = vadd.f32 %v1684, %v1719
    %v1762 = vadd.f32 %v1685, %v1722
    %1763 = vst.msk [vmem:[#allocation26] sm:$0xff] %vm1694, %v1759
    %1764 = vst.msk [vmem:[#allocation26 + $0x8] sm:$0xff] %vm1694, %v1760
    %1765 = vst.msk [vmem:[#allocation27] sm:$0xff] %vm1694, %v1761
    %1766 = vst.msk [vmem:[#allocation27 + $0x8] sm:$0xff] %vm1694, %v1762
    %v1767 = vmul.f32 %v1759, 0.5
    %v1768 = vmul.f32 %v1760, 0.5
    %v1769 = vmul.f32 %v1761, 0.5
    %v1770 = vmul.f32 %v1762, 0.5
    %v1771 = vadd.f32 %v1767, %v1769
    %v1772 = vadd.f32 %v1768, %v1770
    %v1773 = vadd.f32 %v1771, %v525
    %v1774 = vadd.f32 %v1772, %v526
    %v1775 = vsel %vm1694, %v1773, 0.0
    %1776 = vadd.xlane.f32.xlu0 %v1775
    %v1777 = vpop.xlane.xlu0 %1776
    %v1778 = vsel %vm1694, %v1774, 0.0
    %1779 = vadd.xlane.f32.xlu0 %v1778
    %v1780 = vpop.xlane.xlu0 %1779
    %v1781 = vmax.f32 %v1777, 1e-12
    %v1782 = vmax.f32 %v1780, 1e-12
    %v1783 = vrsqrt.pop %v1781
    %v1784 = vmul.f32 %v1783, %v1781
    %v1785 = vmul.f32 %v1784, %v1783
    %v1786 = vmul.f32 0.5, %v1785
    %v1787 = vsub.f32 1.5, %v1786
    %v1788 = vmul.f32 %v1783, %v1787
    %vm1789 = vweird.f32 %v1781
    %vm1790 = vweird.f32 %v1783
    %vm1791 = vmor %vm1789, %vm1790
    %v1792 = vsel %vm1791, %v1783, %v1788
    %v1793 = vrsqrt.pop %v1782
    %v1794 = vmul.f32 %v1793, %v1782
    %v1795 = vmul.f32 %v1794, %v1793
    %v1796 = vmul.f32 0.5, %v1795
    %v1797 = vsub.f32 1.5, %v1796
    %v1798 = vmul.f32 %v1793, %v1797
    %vm1799 = vweird.f32 %v1782
    %vm1800 = vweird.f32 %v1793
    %vm1801 = vmor %vm1799, %vm1800
    %v1802 = vsel %vm1801, %v1793, %v1798
    %v1803 = vmul.f32 %v525, %v1792
    %v1804 = vmul.f32 %v526, %v1802
    %v1805 = vsel %vm1694, %v1803, 0.0
    %v1806 = vsel %vm1694, %v1804, 0.0
    %v1807 = vadd.f32 %v1805, %v1806
    %v1808 = vrot.slane %v1807, 4
    %v1809 = vadd.f32 %v1807, %v1808
    %v1810 = vrot.slane %v1809, 2
    %v1811 = vadd.f32 %v1809, %v1810
    %v1812 = vrot.slane %v1811, 1
    %v1813 = vadd.f32 %v1811, %v1812
    %v1814 = vmul.f32 %v1773, %v1792
    %v1815 = vmul.f32 %v1774, %v1802
    %v1816 = vmul.f32 %v1814, %v1813
    %v1817 = vmul.f32 %v1815, %v1813
    %v1818 = vld [vmem:[%s39] sm:$0xf]
    %v1819 = vld [vmem:[%s39 + $0x4] sm:$0xf]
    %v1820 = vld [vmem:[%s39 + $0x8] sm:$0xf]
    %v1821 = vld [vmem:[%s39 + $0xc] sm:$0xf]
    %v1822 = vld [vmem:[%s39 + $0x10] sm:$0xf]
    %v1823 = vld [vmem:[%s39 + $0x14] sm:$0xf]
    %v1824 = vld [vmem:[%s39 + $0x18] sm:$0xf]
    %v1825 = vld [vmem:[%s39 + $0x1c] sm:$0xf]
    %v1826 = vld [vmem:[%s39 + $0x20] sm:$0xf]
    %v1827 = vld [vmem:[%s39 + $0x24] sm:$0xf]
    %v1828 = vld [vmem:[%s39 + $0x28] sm:$0xf]
    %v1829 = vld [vmem:[%s39 + $0x2c] sm:$0xf]
    %v1830 = vld [vmem:[%s39 + $0x30] sm:$0xf]
    %v1831 = vld [vmem:[%s39 + $0x34] sm:$0xf]
    %v1832 = vld [vmem:[%s39 + $0x38] sm:$0xf]
    %v1833 = vld [vmem:[%s39 + $0x3c] sm:$0xf]
    %v1834 = vpack.c.bf16 %v1596, %v1595
    %v1851 = vunpack.c.l.b16 %v1818
    %v1852 = vunpack.c.l.b16 %v1819
    %v1853 = vunpack.c.l.b16 %v1820
    %v1854 = vunpack.c.l.b16 %v1821
    %v1855 = vunpack.c.l.b16 %v1822
    %v1856 = vunpack.c.l.b16 %v1823
    %v1857 = vunpack.c.l.b16 %v1824
    %v1858 = vunpack.c.l.b16 %v1825
    %v1859 = vunpack.c.l.b16 %v1826
    %v1860 = vunpack.c.l.b16 %v1827
    %v1861 = vunpack.c.l.b16 %v1828
    %v1862 = vunpack.c.l.b16 %v1829
    %v1863 = vunpack.c.l.b16 %v1830
    %v1864 = vunpack.c.l.b16 %v1831
    %v1865 = vunpack.c.l.b16 %v1832
    %v1866 = vunpack.c.l.b16 %v1833
    %v1867 = vpack.c.b16 %v1852, %v1851
    %v1868 = vpack.c.b16 %v1854, %v1853
    %v1869 = vpack.c.b16 %v1856, %v1855
    %v1870 = vpack.c.b16 %v1858, %v1857
    %v1871 = vpack.c.b16 %v1860, %v1859
    %v1872 = vpack.c.b16 %v1862, %v1861
    %v1873 = vpack.c.b16 %v1864, %v1863
    %v1874 = vpack.c.b16 %v1866, %v1865
    %1883 = vmatpush.bf16.msra.mxu0 %v1874
    %1884 = vmatpush.bf16.msra.mxu0 %v1873
    %1885 = vmatpush.bf16.msra.mxu0 %v1872
    %1886 = vmatpush.bf16.msra.mxu0 %v1871
    %1887 = vmatpush.bf16.msra.mxu0 %v1870
    %1888 = vmatpush.bf16.msra.mxu0 %v1869
    %1889 = vmatpush.bf16.msra.mxu0 %v1868
    %1890 = vmatpush.bf16.msra.mxu0 %v1867
    %1891 = vmatmul.bf16.gmra.mxu0 %v1834
    %v1892 = vpop.f32.mrf.mxu0
    %v1893 = vadd.f32 0.0, %v1892
    %v1894 = vpop.f32.mrf.mxu0
    %v1895 = vadd.f32 0.0, %v1894
    %1896 = vdwg.mxu0
    %v1898 = vsel %vm1694, %v1816, 0
    %v1901 = vsel %vm1694, %v1817, 0
    %1903 = vmatpush.msra.mxu0 0.0
    %1904 = vmatpush.msra.mxu0 0.0
    %1905 = vmatpush.msra.mxu0 0.0
    %1906 = vmatpush.msra.mxu0 0.0
    %1907 = vmatpush.msra.mxu0 0.0
    %1908 = vmatpush.msra.mxu0 0.0
    %1909 = vmatpush.msra.mxu0 0.0
    %1910 = vmatpush.msra.mxu0 0.0
    %1911 = vmatpush.msra.mxu0 0.0
    %1912 = vmatpush.msra.mxu0 0.0
    %1913 = vmatpush.msra.mxu0 0.0
    %1914 = vmatpush.msra.mxu0 0.0
    %1915 = vmatpush.msra.mxu0 0.0
    %1916 = vmatpush.msra.mxu0 0.0
    %1917 = vmatpush.msra.mxu0 %v1895
    %1918 = vmatpush.msra.mxu0 %v1893
    %1919 = vmatmul.f32.gmra.mxu0 %v1898
    %v1920 = vpop.f32.mrf.mxu0
    %v1921 = vadd.f32 0.0, %v1920
    %1922 = vmatmul.f32.gmra.mxu0 %v1901
    %v1923 = vpop.f32.mrf.mxu0
    %v1924 = vadd.f32 0.0, %v1923
    %1925 = vdwg.mxu0
    %v1926 = vmax.f32 %v1921, 0.0
    %v1927 = vmax.f32 %v1924, 0.0
    %v1928 = vld [vmem:[#allocation19] sm:$0xf]
    %v1929 = vld [vmem:[#allocation19 + $0x4] sm:$0xf]
    %v1930 = vld [vmem:[#allocation19 + $0x8] sm:$0xf]
    %v1931 = vld [vmem:[#allocation19 + $0xc] sm:$0xf]
    %v1932 = vld [vmem:[#allocation19 + $0x10] sm:$0xf]
    %v1933 = vld [vmem:[#allocation19 + $0x14] sm:$0xf]
    %v1934 = vld [vmem:[#allocation19 + $0x18] sm:$0xf]
    %v1935 = vld [vmem:[#allocation19 + $0x1c] sm:$0xf]
    %v1936 = vld [vmem:[#allocation19 + $0x20] sm:$0xf]
    %v1937 = vld [vmem:[#allocation19 + $0x24] sm:$0xf]
    %v1938 = vld [vmem:[#allocation19 + $0x28] sm:$0xf]
    %v1939 = vld [vmem:[#allocation19 + $0x2c] sm:$0xf]
    %v1940 = vld [vmem:[#allocation19 + $0x30] sm:$0xf]
    %v1941 = vld [vmem:[#allocation19 + $0x34] sm:$0xf]
    %v1942 = vld [vmem:[#allocation19 + $0x38] sm:$0xf]
    %v1943 = vld [vmem:[#allocation19 + $0x3c] sm:$0xf]
    %v1944 = vpack.c.bf16 %v1927, %v1926
    %v1961 = vunpack.c.l.b16 %v1928
    %v1962 = vunpack.c.l.b16 %v1929
    %v1963 = vunpack.c.l.b16 %v1930
    %v1964 = vunpack.c.l.b16 %v1931
    %v1965 = vunpack.c.l.b16 %v1932
    %v1966 = vunpack.c.l.b16 %v1933
    %v1967 = vunpack.c.l.b16 %v1934
    %v1968 = vunpack.c.l.b16 %v1935
    %v1969 = vunpack.c.l.b16 %v1936
    %v1970 = vunpack.c.l.b16 %v1937
    %v1971 = vunpack.c.l.b16 %v1938
    %v1972 = vunpack.c.l.b16 %v1939
    %v1973 = vunpack.c.l.b16 %v1940
    %v1974 = vunpack.c.l.b16 %v1941
    %v1975 = vunpack.c.l.b16 %v1942
    %v1976 = vunpack.c.l.b16 %v1943
    %v1977 = vpack.c.b16 %v1962, %v1961
    %v1978 = vpack.c.b16 %v1964, %v1963
    %v1979 = vpack.c.b16 %v1966, %v1965
    %v1980 = vpack.c.b16 %v1968, %v1967
    %v1981 = vpack.c.b16 %v1970, %v1969
    %v1982 = vpack.c.b16 %v1972, %v1971
    %v1983 = vpack.c.b16 %v1974, %v1973
    %v1984 = vpack.c.b16 %v1976, %v1975
    %1993 = vmatpush.bf16.msra.mxu0 %v1984
    %1994 = vmatpush.bf16.msra.mxu0 %v1983
    %1995 = vmatpush.bf16.msra.mxu0 %v1982
    %1996 = vmatpush.bf16.msra.mxu0 %v1981
    %1997 = vmatpush.bf16.msra.mxu0 %v1980
    %1998 = vmatpush.bf16.msra.mxu0 %v1979
    %1999 = vmatpush.bf16.msra.mxu0 %v1978
    %2000 = vmatpush.bf16.msra.mxu0 %v1977
    %2001 = vmatmul.bf16.gmra.mxu0 %v1944
    %v2002 = vpop.f32.mrf.mxu0
    %v2003 = vadd.f32 0.0, %v2002
    %v2004 = vpop.f32.mrf.mxu0
    %v2005 = vadd.f32 0.0, %v2004
    %2006 = vdwg.mxu0
    %2007 = vmatpush.msra.mxu0 0.0
    %2008 = vmatpush.msra.mxu0 0.0
    %2009 = vmatpush.msra.mxu0 0.0
    %2010 = vmatpush.msra.mxu0 0.0
    %2011 = vmatpush.msra.mxu0 0.0
    %2012 = vmatpush.msra.mxu0 0.0
    %2013 = vmatpush.msra.mxu0 0.0
    %2014 = vmatpush.msra.mxu0 0.0
    %2015 = vmatpush.msra.mxu0 0.0
    %2016 = vmatpush.msra.mxu0 0.0
    %2017 = vmatpush.msra.mxu0 0.0
    %2018 = vmatpush.msra.mxu0 0.0
    %2019 = vmatpush.msra.mxu0 0.0
    %2020 = vmatpush.msra.mxu0 0.0
    %2021 = vmatpush.msra.mxu0 %v2005
    %2022 = vmatpush.msra.mxu0 %v2003
    %2023 = vmatmul.f32.gmra.mxu0 %v1898
    %v2024 = vpop.f32.mrf.mxu0
    %v2025 = vadd.f32 0.0, %v2024
    %2026 = vmatmul.f32.gmra.mxu0 %v1901
    %v2027 = vpop.f32.mrf.mxu0
    %v2028 = vadd.f32 0.0, %v2027
    %2029 = vdwg.mxu0
    %v2030 = vmax.f32 %v2025, 0.0
    %v2031 = vmax.f32 %v2028, 0.0
    %v2032 = vld [vmem:[#allocation20] sm:$0xf]
    %v2033 = vld [vmem:[#allocation20 + $0x4] sm:$0xf]
    %v2034 = vld [vmem:[#allocation20 + $0x8] sm:$0xf]
    %v2035 = vld [vmem:[#allocation20 + $0xc] sm:$0xf]
    %v2036 = vld [vmem:[#allocation20 + $0x10] sm:$0xf]
    %v2037 = vld [vmem:[#allocation20 + $0x14] sm:$0xf]
    %v2038 = vld [vmem:[#allocation20 + $0x18] sm:$0xf]
    %v2039 = vld [vmem:[#allocation20 + $0x1c] sm:$0xf]
    %v2040 = vld [vmem:[#allocation20 + $0x20] sm:$0xf]
    %v2041 = vld [vmem:[#allocation20 + $0x24] sm:$0xf]
    %v2042 = vld [vmem:[#allocation20 + $0x28] sm:$0xf]
    %v2043 = vld [vmem:[#allocation20 + $0x2c] sm:$0xf]
    %v2044 = vld [vmem:[#allocation20 + $0x30] sm:$0xf]
    %v2045 = vld [vmem:[#allocation20 + $0x34] sm:$0xf]
    %v2046 = vld [vmem:[#allocation20 + $0x38] sm:$0xf]
    %v2047 = vld [vmem:[#allocation20 + $0x3c] sm:$0xf]
    %v2048 = vpack.c.bf16 %v2030, %v2030
    %v2049 = vld [vmem:[#allocation22] sm:$0x1]
    %v2051 = vperm.slane %v2049, 0
    %v2069 = vunpack.c.l.b16 %v2032
    %v2070 = vunpack.c.l.b16 %v2033
    %v2071 = vunpack.c.l.b16 %v2034
    %v2072 = vunpack.c.l.b16 %v2035
    %v2073 = vunpack.c.l.b16 %v2036
    %v2074 = vunpack.c.l.b16 %v2037
    %v2075 = vunpack.c.l.b16 %v2038
    %v2076 = vunpack.c.l.b16 %v2039
    %v2077 = vunpack.c.l.b16 %v2040
    %v2078 = vunpack.c.l.b16 %v2041
    %v2079 = vunpack.c.l.b16 %v2042
    %v2080 = vunpack.c.l.b16 %v2043
    %v2081 = vunpack.c.l.b16 %v2044
    %v2082 = vunpack.c.l.b16 %v2045
    %v2083 = vunpack.c.l.b16 %v2046
    %v2084 = vunpack.c.l.b16 %v2047
    %v2085 = vpack.c.b16 %v2070, %v2069
    %v2086 = vpack.c.b16 %v2072, %v2071
    %v2087 = vpack.c.b16 %v2074, %v2073
    %v2088 = vpack.c.b16 %v2076, %v2075
    %v2089 = vpack.c.b16 %v2078, %v2077
    %v2090 = vpack.c.b16 %v2080, %v2079
    %v2091 = vpack.c.b16 %v2082, %v2081
    %v2092 = vpack.c.b16 %v2084, %v2083
    %2101 = vmatpush.bf16.msra.mxu0 %v2092
    %2102 = vmatpush.bf16.msra.mxu0 %v2091
    %2103 = vmatpush.bf16.msra.mxu0 %v2090
    %2104 = vmatpush.bf16.msra.mxu0 %v2089
    %2105 = vmatpush.bf16.msra.mxu0 %v2088
    %2106 = vmatpush.bf16.msra.mxu0 %v2087
    %2107 = vmatpush.bf16.msra.mxu0 %v2086
    %2108 = vmatpush.bf16.msra.mxu0 %v2085
    %2109 = vmatmul.bf16.gmra.mxu0 %v2048
    %v2110 = vpop.f32.mrf.mxu0
    %v2111 = vadd.f32 %v2051, %v2110
    %v2112 = vpop.f32.mrf.mxu0
    %2113 = vdwg.mxu0
    %v2114 = vtanh.pop %v2111
    %2115 = vst [vmem:[%s59] sm:$0xff] %v2114
    %v2116 = vld [vmem:[#allocation23] sm:$0xf]
    %v2117 = vld [vmem:[#allocation23 + $0x4] sm:$0xf]
    %v2118 = vld [vmem:[#allocation23 + $0x8] sm:$0xf]
    %v2119 = vld [vmem:[#allocation23 + $0xc] sm:$0xf]
    %v2120 = vld [vmem:[#allocation23 + $0x10] sm:$0xf]
    %v2121 = vld [vmem:[#allocation23 + $0x14] sm:$0xf]
    %v2122 = vld [vmem:[#allocation23 + $0x18] sm:$0xf]
    %v2123 = vld [vmem:[#allocation23 + $0x1c] sm:$0xf]
    %v2124 = vld [vmem:[#allocation23 + $0x20] sm:$0xf]
    %v2125 = vld [vmem:[#allocation23 + $0x24] sm:$0xf]
    %v2126 = vld [vmem:[#allocation23 + $0x28] sm:$0xf]
    %v2127 = vld [vmem:[#allocation23 + $0x2c] sm:$0xf]
    %v2128 = vld [vmem:[#allocation23 + $0x30] sm:$0xf]
    %v2129 = vld [vmem:[#allocation23 + $0x34] sm:$0xf]
    %v2130 = vld [vmem:[#allocation23 + $0x38] sm:$0xf]
    %v2131 = vld [vmem:[#allocation23 + $0x3c] sm:$0xf]
    %v2132 = vpack.c.bf16 %v2031, %v2031
    %v2133 = vld [vmem:[#allocation25] sm:$0x1]
    %v2135 = vperm.slane %v2133, 0
    %v2153 = vunpack.c.l.b16 %v2116
    %v2154 = vunpack.c.l.b16 %v2117
    %v2155 = vunpack.c.l.b16 %v2118
    %v2156 = vunpack.c.l.b16 %v2119
    %v2157 = vunpack.c.l.b16 %v2120
    %v2158 = vunpack.c.l.b16 %v2121
    %v2159 = vunpack.c.l.b16 %v2122
    %v2160 = vunpack.c.l.b16 %v2123
    %v2161 = vunpack.c.l.b16 %v2124
    %v2162 = vunpack.c.l.b16 %v2125
    %v2163 = vunpack.c.l.b16 %v2126
    %v2164 = vunpack.c.l.b16 %v2127
    %v2165 = vunpack.c.l.b16 %v2128
    %v2166 = vunpack.c.l.b16 %v2129
    %v2167 = vunpack.c.l.b16 %v2130
    %v2168 = vunpack.c.l.b16 %v2131
    %v2169 = vpack.c.b16 %v2154, %v2153
    %v2170 = vpack.c.b16 %v2156, %v2155
    %v2171 = vpack.c.b16 %v2158, %v2157
    %v2172 = vpack.c.b16 %v2160, %v2159
    %v2173 = vpack.c.b16 %v2162, %v2161
    %v2174 = vpack.c.b16 %v2164, %v2163
    %v2175 = vpack.c.b16 %v2166, %v2165
    %v2176 = vpack.c.b16 %v2168, %v2167
    %2185 = vmatpush.bf16.msra.mxu0 %v2176
    %2186 = vmatpush.bf16.msra.mxu0 %v2175
    %2187 = vmatpush.bf16.msra.mxu0 %v2174
    %2188 = vmatpush.bf16.msra.mxu0 %v2173
    %2189 = vmatpush.bf16.msra.mxu0 %v2172
    %2190 = vmatpush.bf16.msra.mxu0 %v2171
    %2191 = vmatpush.bf16.msra.mxu0 %v2170
    %2192 = vmatpush.bf16.msra.mxu0 %v2169
    %2193 = vmatmul.bf16.gmra.mxu0 %v2132
    %v2194 = vpop.f32.mrf.mxu0
    %v2195 = vadd.f32 %v2135, %v2194
    %v2196 = vpop.f32.mrf.mxu0
    %2197 = vdwg.mxu0
    %v2198 = vtanh.pop %v2195
    %2199 = vst [vmem:[%s61] sm:$0xff] %v2198
    // Predicated region
    $region162: #{teann_forward.3} parent=1 // pred_check
      _
    $region163: #{teann_forward.3} parent=1 // pred_check_branch
      %2201 = sbr.rel (0) target = $region165
    $region164: #{teann_forward.3} parent=1 // pred_region
      _
    $region165: #{teann_forward.3} parent=1 // pred_fallthru
      _
    // Predicated region
    $region166: #{teann_forward.3} parent=1 // pred_check
      _
    $region167: #{teann_forward.3} parent=1 // pred_check_branch
      %2203 = sbr.rel (0) target = $region169
    $region168: #{teann_forward.3} parent=1 // pred_region
      _
    $region169: #{teann_forward.3} parent=1 // pred_fallthru
      _
    // Predicated region
    $region170: #{teann_forward.3} parent=1 // pred_check
      _
    $region171: #{teann_forward.3} parent=1 // pred_check_branch
      %2205 = sbr.rel (0) target = $region173
    $region172: #{teann_forward.3} parent=1 // pred_region
      _
    $region173: #{teann_forward.3} parent=1 // pred_fallthru
      _
    // Predicated region
    $region174: #{teann_forward.3} parent=1 // pred_check
      _
    $region175: #{teann_forward.3} parent=1 // pred_check_branch
      %2207 = sbr.rel (0) target = $region177
    $region176: #{teann_forward.3} parent=1 // pred_region
      _
    $region177: #{teann_forward.3} parent=1 // pred_fallthru
      _
    // Predicated region
    $region178: #{teann_forward.3} parent=1 // pred_check
      _
    $region179: #{teann_forward.3} parent=1 // pred_check_branch
      %2209 = sbr.rel (0) target = $region181
    $region180: #{teann_forward.3} parent=1 // pred_region
      _
    $region181: #{teann_forward.3} parent=1 // pred_fallthru
      _
    // Predicated region
    $region182: #{teann_forward.3} parent=1 // pred_check
      _
    $region183: #{teann_forward.3} parent=1 // pred_check_branch
      %2211 = sbr.rel (0) target = $region185
    $region184: #{teann_forward.3} parent=1 // pred_region
      _
    $region185: #{teann_forward.3} parent=1 // pred_fallthru
      _
    // Predicated region
    $region186: #{teann_forward.3} parent=1 // pred_check
      _
    $region187: #{teann_forward.3} parent=1 // pred_check_branch
      %2213 = sbr.rel (0) target = $region189
    $region188: #{teann_forward.3} parent=1 // pred_region
      %2215 = vsyncadd [#allocation4], 0
      %s2216 = sshll.u32 [#allocation26], 4
      %s2217 = int_to_ptr.vmem [resolvable:$true] %s2216
      %s2218 = sshll.u32 %s63, 4
      %s2219 = int_to_ptr.hbm [resolvable:$true] %s2218
      %2224 = dma.vmem_to_hbm [thread:$0]  %s2217, 256, %s2219, [#allocation4], 128, 128, 8
    $region189: #{teann_forward.3} parent=1 // pred_fallthru
      _
    // Predicated region
    $region190: #{teann_forward.3} parent=1 // pred_check
      _
    $region191: #{teann_forward.3} parent=1 // pred_check_branch
      %2226 = sbr.rel (0) target = $region193
    $region192: #{teann_forward.3} parent=1 // pred_region
      %2228 = vsyncadd [#allocation28], 0
      %s2229 = sshll.u32 [#allocation27], 4
      %s2230 = int_to_ptr.vmem [resolvable:$true] %s2229
      %s2231 = sshll.u32 %s65, 4
      %s2232 = int_to_ptr.hbm [resolvable:$true] %s2231
      %2237 = dma.vmem_to_hbm [thread:$0]  %s2230, 256, %s2232, [#allocation28], 128, 128, 8
    $region193: #{teann_forward.3} parent=1 // pred_fallthru
      _
    // Predicated region
    $region194: #{teann_forward.3} parent=1 // pred_check
      _
    $region195: #{teann_forward.3} parent=1 // pred_check_branch
      %2239 = sbr.rel (0) target = $region197
    $region196: #{teann_forward.3} parent=1 // pred_region
      _
    $region197: #{teann_forward.3} parent=1 // pred_fallthru
      _
    // Predicated region
    $region198: #{teann_forward.3} parent=1 // pred_check
      _
    $region199: #{teann_forward.3} parent=1 // pred_check_branch
      %2241 = sbr.rel (0) target = $region201
    $region200: #{teann_forward.3} parent=1 // pred_region
      _
    $region201: #{teann_forward.3} parent=1 // pred_fallthru
      _
    // Predicated region
    $region202: #{teann_forward.3} parent=1 // pred_check
      _
    $region203: #{teann_forward.3} parent=1 // pred_check_branch
      %2243 = sbr.rel (0) target = $region205
    $region204: #{teann_forward.3} parent=1 // pred_region
      _
    $region205: #{teann_forward.3} parent=1 // pred_fallthru
      _
    // Predicated region
    $region206: #{teann_forward.3} parent=1 // pred_check
      _
    $region207: #{teann_forward.3} parent=1 // pred_check_branch
      %2245 = sbr.rel (0) target = $region209
    $region208: #{teann_forward.3} parent=1 // pred_region
      _
    $region209: #{teann_forward.3} parent=1 // pred_fallthru
      _
    // Predicated region
    $region210: #{teann_forward.3} parent=1 // pred_check
      _
    $region211: #{teann_forward.3} parent=1 // pred_check_branch
      %2247 = sbr.rel (0) target = $region213
    $region212: #{teann_forward.3} parent=1 // pred_region
      _
    $region213: #{teann_forward.3} parent=1 // pred_fallthru
      _
    // Predicated region
    $region214: #{teann_forward.3} parent=1 // pred_check
      _
    $region215: #{teann_forward.3} parent=1 // pred_check_branch
      %2249 = sbr.rel (0) target = $region217
    $region216: #{teann_forward.3} parent=1 // pred_region
      _
    $region217: #{teann_forward.3} parent=1 // pred_fallthru
      _
    // Predicated region
    $region218: #{teann_forward.3} parent=1 // pred_check
      _
    $region219: #{teann_forward.3} parent=1 // pred_check_branch
      %2251 = sbr.rel (0) target = $region221
    $region220: #{teann_forward.3} parent=1 // pred_region
      %2253 = dma.done [#allocation4], 256
    $region221: #{teann_forward.3} parent=1 // pred_fallthru
      _
    // Predicated region
    $region222: #{teann_forward.3} parent=1 // pred_check
      _
    $region223: #{teann_forward.3} parent=1 // pred_check_branch
      %2255 = sbr.rel (0) target = $region225
    $region224: #{teann_forward.3} parent=1 // pred_region
      %2257 = dma.done [#allocation28], 256
    $region225: #{teann_forward.3} parent=1 // pred_fallthru
      _
    %2258 = vsyncpa [#allocation3], 1
    %2259 = vsyncpa [#allocation6], 1
    %2260 = vsyncpa [#allocation9], 1
    %2261 = vsyncpa [#allocation12], 1
    %2262 = vsyncpa [#allocation15], 1
    %2263 = vsyncpa [#allocation18], 1
    %2264 = vsyncpa [#allocation21], 1
    %2265 = vsyncpa [#allocation24], 1
    %2266 = vsyncpa [#allocation4], 1
    %2267 = vsyncpa [#allocation28], 1

</llo_original>
